<compile_context>
chip_gen: v7x
topology: tpu7x:2x2x1
jax: 0.10.0
libtpu: 0.0.40
codegen_flags: <defaults>
</compile_context>

<pallas_src>
import functools

import numpy as np

import jax
import jax.numpy as jnp
from jax import lax
from jax.experimental import pallas as pl
from jax.experimental.pallas import tpu as pltpu


_MM_DTYPE = jnp.bfloat16  # MXU operand dtype (f32 accumulation)

_PARAM_ORDER = (
    "conv1_B", "conv1_bias", "pool1_row", "pool1_col",
    "conv2_B", "conv2_bias", "pool2_row", "pool2_col",
    "conv3_B", "conv3_bias", "sel3",
    "fc1_w", "fc1_bias", "fc2_w", "fc2_bias",
)


# ---------------------------------------------------------------------------
# One-time parameter repacking (outside jit).
# ---------------------------------------------------------------------------
def _conv_band(w_oihw, w_in):
    """K-stacked banded matrix B_cat (k*w_in*cin, wo*cout) such that, with the
    activation slab A = concat_i act[i:i+M, :] (lane concat of the 5 shifted
    row-slices in (H, W*Cin) layout),   out = A @ B_cat   is the valid conv
    output rows (plus cross-image junk rows that are discarded later)."""
    w = np.asarray(w_oihw, dtype=np.float32)           # (Cout, Cin, K, K)
    cout, cin, k, _ = w.shape
    wo = w_in - k + 1
    B = np.zeros((k, w_in * cin, wo * cout), np.float32)
    for i in range(k):
        for j in range(k):
            blk = w[:, :, i, j].T                       # (Cin, Cout)
            for x in range(wo):
                B[i, (x + j) * cin:(x + j + 1) * cin, x * cout:(x + 1) * cout] = blk
    return jnp.asarray(B.reshape(k * w_in * cin, wo * cout), _MM_DTYPE)


def _pool_col(w, c):
    """2x-average pooling of the lane axis in (x*C + c) layout: X @ Pcol."""
    pcol = np.zeros((w * c, (w // 2) * c), np.float32)
    for xo in range(w // 2):
        for cc in range(c):
            pcol[(2 * xo) * c + cc, xo * c + cc] = 0.5
            pcol[(2 * xo + 1) * c + cc, xo * c + cc] = 0.5
    return jnp.asarray(pcol, _MM_DTYPE)


def _pool_row_bd(tb, h_in, conv_h):
    """Block-diagonal row-pooling matrix (tb*conv_h//2, tb*h_in - 4).
    Image b's conv output row r lives at stacked row b*h_in + r; this matrix
    both 2x-average-pools rows and discards the cross-image junk rows."""
    hp = conv_h // 2
    rows_total = tb * h_in - 4
    m = np.zeros((tb * hp, rows_total), np.float32)
    for b in range(tb):
        for ro in range(hp):
            m[b * hp + ro, b * h_in + 2 * ro] = 0.5
            m[b * hp + ro, b * h_in + 2 * ro + 1] = 0.5
    return jnp.asarray(m, _MM_DTYPE)


def prepare_params(raw, tb=8):
    """Repack PyTorch-layout parameters into matmul-ready kernel inputs."""
    f32 = jnp.float32
    nc = int(raw["fc2_w"].shape[0])
    nc_pad = ((nc + 127) // 128) * 128           # lane-dense output width

    fc2_w = np.zeros((84, nc_pad), np.float32)
    fc2_w[:, :nc] = np.asarray(raw["fc2_w"], np.float32).T
    fc2_b = np.full((1, nc_pad), -1e30, np.float32)   # padded logits ~ -inf
    fc2_b[0, :nc] = np.asarray(raw["fc2_b"], np.float32)

    sel3 = np.zeros((tb, tb * 5 - 4), np.float32)     # picks row 5*b per image
    sel3[np.arange(tb), 5 * np.arange(tb)] = 1.0

    prep = {
        "conv1_B": _conv_band(raw["w1"], 32),                              # (160, 168)
        "conv1_bias": jnp.tile(raw["b1"], 28).reshape(1, -1).astype(f32),  # (1, 168)
        "pool1_row": _pool_row_bd(tb, 32, 28),                             # (tb*14, tb*32-4)
        "pool1_col": _pool_col(28, 6),                                     # (168, 84)
        "conv2_B": _conv_band(raw["w2"], 14),                              # (420, 160)
        "conv2_bias": jnp.tile(raw["b2"], 10).reshape(1, -1).astype(f32),  # (1, 160)
        "pool2_row": _pool_row_bd(tb, 14, 10),                             # (tb*5, tb*14-4)
        "pool2_col": _pool_col(10, 16),                                    # (160, 80)
        "conv3_B": _conv_band(raw["w3"], 5),                               # (400, 120)
        "conv3_bias": raw["b3"].reshape(1, -1).astype(f32),                # (1, 120)
        "sel3": jnp.asarray(sel3, _MM_DTYPE),                              # (tb, tb*5-4)
        "fc1_w": raw["fc1_w"].T.astype(_MM_DTYPE),                         # (120, 84)
        "fc1_bias": raw["fc1_b"].reshape(1, -1).astype(f32),               # (1, 84)
        "fc2_w": jnp.asarray(fc2_w, _MM_DTYPE),                            # (84, nc_pad)
        "fc2_bias": jnp.asarray(fc2_b, f32),                               # (1, nc_pad)
        "n_classes": nc,
        "tb": tb,
    }
    return prep


# ---------------------------------------------------------------------------
# Fused Pallas kernel: TB images per grid step, all layers in VMEM/vregs.
# ---------------------------------------------------------------------------
def _make_kernel(tb):
    r1 = tb * 32 - 4   # stacked conv1 output rows (incl. cross-image junk)
    r2 = tb * 14 - 4   # stacked conv2 output rows
    r3 = tb * 5 - 4    # stacked conv3 output rows

    def kernel(x_ref,
               c1B, c1b, p1r, p1c,
               c2B, c2b, p2r, p2c,
               c3B, c3b, sel3,
               fc1w, fc1b, fc2w, fc2b,
               logits_ref, probs_ref):

        def mm(a, b):
            # bf16 MXU operands, f32 accumulation; epilogues stay f32.
            return jnp.dot(a.astype(_MM_DTYPE), b.astype(_MM_DTYPE),
                           preferred_element_type=jnp.float32)

        x = x_ref[...]                                                   # (tb*32, 32) bf16

        # stage 1: conv1 (1->6, 5x5) as ONE K-fused matmul, +bias, tanh, pool
        a1 = jnp.concatenate([x[i:i + r1, :] for i in range(5)], axis=-1)   # (r1, 160)
        t1 = jnp.tanh(mm(a1, c1B[...]) + c1b[...])                          # (r1, 168) f32
        p1 = mm(p1r[...], mm(t1, p1c[...])).astype(_MM_DTYPE)               # (tb*14, 84)

        # stage 2: conv2 (6->16, 5x5), +bias, tanh, pool
        a2 = jnp.concatenate([p1[i:i + r2, :] for i in range(5)], axis=-1)  # (r2, 420)
        t2 = jnp.tanh(mm(a2, c2B[...]) + c2b[...])                          # (r2, 160) f32
        p2 = mm(p2r[...], mm(t2, p2c[...])).astype(_MM_DTYPE)               # (tb*5, 80)

        # stage 3: conv3 (16->120, 5x5 -> 1x1) as one dense matmul + row select
        a3 = jnp.concatenate([p2[i:i + r3, :] for i in range(5)], axis=-1)  # (r3, 400)
        t3 = jnp.tanh(mm(sel3[...], mm(a3, c3B[...])) + c3b[...])           # (tb, 120)

        # classifier: FC(120->84)+tanh, FC(84->nc_pad), softmax (lane-dense)
        z1 = jnp.tanh(mm(t3, fc1w[...]) + fc1b[...])                        # (tb, 84)
        logits = mm(z1, fc2w[...]) + fc2b[...]                              # (tb, nc_pad)
        logits_ref[...] = logits

        m = jnp.max(logits, axis=-1, keepdims=True)
        e = jnp.exp(logits - m)            # padded lanes underflow to exactly 0
        s = jnp.sum(e, axis=-1, keepdims=True)
        probs_ref[...] = e * pl.reciprocal(s, approx=True)

    return kernel


def _const_spec(arr):
    zeros = (0,) * arr.ndim
    return pl.BlockSpec(arr.shape, lambda b, z=zeros: z)


def lenet5_forward(prep, x_nchw):
    # x_nchw: (N, 1, 32, 32), NCHW just like the PyTorch module.
    tb = prep["tb"]
    nc = prep["n_classes"]
    nc_pad = prep["fc2_bias"].shape[1]
    weights = [prep[k] for k in _PARAM_ORDER]

    n = x_nchw.shape[0]
    n_pad = ((n + tb - 1) // tb) * tb

    x = x_nchw.astype(jnp.bfloat16).reshape(n, 32, 32)          # Cin == 1
    if n_pad != n:
        x = jnp.concatenate(
            [x, jnp.zeros((n_pad - n, 32, 32), jnp.bfloat16)], axis=0)
    x2 = x.reshape(n_pad * 32, 32)                              # stacked rows

    out_shape = (jax.ShapeDtypeStruct((n_pad, nc_pad), jnp.float32),
                 jax.ShapeDtypeStruct((n_pad, nc_pad), jnp.float32))
    out_spec = pl.BlockSpec((tb, nc_pad), lambda b: (b, 0))

    logits_p, probs_p = pl.pallas_call(
        _make_kernel(tb),
        grid=(n_pad // tb,),
        out_shape=out_shape,
        in_specs=[pl.BlockSpec((tb * 32, 32), lambda b: (b, 0))]
                 + [_const_spec(w) for w in weights],
        out_specs=(out_spec, out_spec),
        compiler_params=pltpu.CompilerParams(
            dimension_semantics=("parallel",)),
    )(x2, *weights)

    return logits_p[:n, :nc], probs_p[:n, :nc]


# ---------------------------------------------------------------------------
# PyTorch-style init + pure-JAX reference (for correctness checking only)
# ---------------------------------------------------------------------------
def init_params(key, n_classes):
    keys = jax.random.split(key, 10)

    def u(k, shape, fan_in):
        bound = 1.0 / jnp.sqrt(jnp.float32(fan_in))
        return jax.random.uniform(k, shape, jnp.float32, -bound, bound)

    return {
        "w1": u(keys[0], (6, 1, 5, 5), 1 * 25),
        "b1": u(keys[1], (6,), 1 * 25),
        "w2": u(keys[2], (16, 6, 5, 5), 6 * 25),
        "b2": u(keys[3], (16,), 6 * 25),
        "w3": u(keys[4], (120, 16, 5, 5), 16 * 25),
        "b3": u(keys[5], (120,), 16 * 25),
        "fc1_w": u(keys[6], (84, 120), 120),
        "fc1_b": u(keys[7], (84,), 120),
        "fc2_w": u(keys[8], (n_classes, 84), 84),
        "fc2_b": u(keys[9], (n_classes,), 84),
    }


def lenet5_reference(raw, x_nchw):
    def conv(x, w, b):
        y = lax.conv_general_dilated(x, w, (1, 1), "VALID",
                                     dimension_numbers=("NCHW", "OIHW", "NCHW"))
        return y + b[None, :, None, None]

    def pool(x):
        n, c, h, w = x.shape
        return x.reshape(n, c, h // 2, 2, w // 2, 2).mean(axis=(3, 5))

    x = x_nchw.astype(jnp.float32)
    x = pool(jnp.tanh(conv(x, raw["w1"], raw["b1"])))
    x = pool(jnp.tanh(conv(x, raw["w2"], raw["b2"])))
    x = jnp.tanh(conv(x, raw["w3"], raw["b3"])).reshape(x.shape[0], -1)
    x = jnp.tanh(x @ raw["fc1_w"].T + raw["fc1_b"])
    logits = x @ raw["fc2_w"].T + raw["fc2_b"]
    return logits, jax.nn.softmax(logits, axis=-1)


if __name__ == "__main__":
    key = jax.random.PRNGKey(0)
    pkey, xkey = jax.random.split(key)
    n_classes = 10
    tb = 8                                    # images per grid step

    raw = init_params(pkey, n_classes)
    prep = prepare_params(raw, tb=tb)

    # LeNet5 requires 32x32 spatial input; batch 16 -> grid of 2 "parallel"
    # steps (keeps both v7x TensorCores busy).
    x = jax.random.normal(xkey, (16, 1, 32, 32), jnp.float32)   # NCHW

    fwd = jax.jit(functools.partial(lenet5_forward, prep))
    logits, probs = fwd(x)
    jax.block_until_ready((logits, probs))

    assert logits.shape == (16, n_classes)
    assert probs.shape == (16, n_classes)
    assert bool(jnp.allclose(jnp.sum(probs, axis=1), 1.0, atol=1e-2))

    # Loose-tolerance check vs a pure-JAX/XLA reference (bf16 MXU operands +
    # approximate reciprocal in the kernel -> not bit exact).
    ref_logits, ref_probs = jax.jit(functools.partial(lenet5_reference, raw))(x)
    assert bool(jnp.allclose(logits, ref_logits, atol=1e-1))
    assert bool(jnp.allclose(probs, ref_probs, atol=3e-2))

    print("KERNEL_OK")
</pallas_src>

<mosaic_0001>
module attributes {stable_mosaic.version = 11 : i64} {
  func.func @kernel(%arg0: i32, %arg1: memref<256x32xbf16, #tpu.memory_space<vmem>>, %arg2: memref<160x168xbf16, #tpu.memory_space<vmem>>, %arg3: memref<1x168xf32, #tpu.memory_space<vmem>>, %arg4: memref<112x252xbf16, #tpu.memory_space<vmem>>, %arg5: memref<168x84xbf16, #tpu.memory_space<vmem>>, %arg6: memref<420x160xbf16, #tpu.memory_space<vmem>>, %arg7: memref<1x160xf32, #tpu.memory_space<vmem>>, %arg8: memref<40x108xbf16, #tpu.memory_space<vmem>>, %arg9: memref<160x80xbf16, #tpu.memory_space<vmem>>, %arg10: memref<400x120xbf16, #tpu.memory_space<vmem>>, %arg11: memref<1x120xf32, #tpu.memory_space<vmem>>, %arg12: memref<8x36xbf16, #tpu.memory_space<vmem>>, %arg13: memref<120x84xbf16, #tpu.memory_space<vmem>>, %arg14: memref<1x84xf32, #tpu.memory_space<vmem>>, %arg15: memref<84x128xbf16, #tpu.memory_space<vmem>>, %arg16: memref<1x128xf32, #tpu.memory_space<vmem>>, %arg17: memref<8x128xf32, #tpu.memory_space<vmem>>, %arg18: memref<8x128xf32, #tpu.memory_space<vmem>>) attributes {dimension_semantics = [#tpu.dimension_semantics<parallel>], iteration_bounds = array<i64: 2>, scalar_prefetch = 0 : i64, scratch_operands = 0 : i64, tpu.core_type = #tpu.core_type<tc>, window_params = [{transform_indices = @transform_0, window_bounds = array<i64: 256, 32>}, {pipeline_mode = #tpu.pipeline_mode<synchronous>, transform_indices = @transform_1, window_bounds = array<i64: 160, 168>}, {pipeline_mode = #tpu.pipeline_mode<synchronous>, transform_indices = @transform_2, window_bounds = array<i64: 1, 168>}, {pipeline_mode = #tpu.pipeline_mode<synchronous>, transform_indices = @transform_3, window_bounds = array<i64: 112, 252>}, {pipeline_mode = #tpu.pipeline_mode<synchronous>, transform_indices = @transform_4, window_bounds = array<i64: 168, 84>}, {pipeline_mode = #tpu.pipeline_mode<synchronous>, transform_indices = @transform_5, window_bounds = array<i64: 420, 160>}, {pipeline_mode = #tpu.pipeline_mode<synchronous>, transform_indices = @transform_6, window_bounds = array<i64: 1, 160>}, {pipeline_mode = #tpu.pipeline_mode<synchronous>, transform_indices = @transform_7, window_bounds = array<i64: 40, 108>}, {pipeline_mode = #tpu.pipeline_mode<synchronous>, transform_indices = @transform_8, window_bounds = array<i64: 160, 80>}, {pipeline_mode = #tpu.pipeline_mode<synchronous>, transform_indices = @transform_9, window_bounds = array<i64: 400, 120>}, {pipeline_mode = #tpu.pipeline_mode<synchronous>, transform_indices = @transform_10, window_bounds = array<i64: 1, 120>}, {pipeline_mode = #tpu.pipeline_mode<synchronous>, transform_indices = @transform_11, window_bounds = array<i64: 8, 36>}, {pipeline_mode = #tpu.pipeline_mode<synchronous>, transform_indices = @transform_12, window_bounds = array<i64: 120, 84>}, {pipeline_mode = #tpu.pipeline_mode<synchronous>, transform_indices = @transform_13, window_bounds = array<i64: 1, 84>}, {pipeline_mode = #tpu.pipeline_mode<synchronous>, transform_indices = @transform_14, window_bounds = array<i64: 84, 128>}, {pipeline_mode = #tpu.pipeline_mode<synchronous>, transform_indices = @transform_15, window_bounds = array<i64: 1, 128>}, {transform_indices = @transform_16, window_bounds = array<i64: 8, 128>}, {transform_indices = @transform_17, window_bounds = array<i64: 8, 128>}]} {
    %c0 = arith.constant 0 : index
    %c0_0 = arith.constant 0 : index
    %0 = vector.load %arg1[%c0, %c0_0] : memref<256x32xbf16, #tpu.memory_space<vmem>>, vector<256x32xbf16>
    %1 = vector.extract_strided_slice %0 {offsets = [0, 0], sizes = [252, 32], strides = [1, 1]} : vector<256x32xbf16> to vector<252x32xbf16>
    %2 = vector.extract_strided_slice %0 {offsets = [1, 0], sizes = [252, 32], strides = [1, 1]} : vector<256x32xbf16> to vector<252x32xbf16>
    %3 = vector.extract_strided_slice %0 {offsets = [2, 0], sizes = [252, 32], strides = [1, 1]} : vector<256x32xbf16> to vector<252x32xbf16>
    %4 = vector.extract_strided_slice %0 {offsets = [3, 0], sizes = [252, 32], strides = [1, 1]} : vector<256x32xbf16> to vector<252x32xbf16>
    %5 = vector.extract_strided_slice %0 {offsets = [4, 0], sizes = [252, 32], strides = [1, 1]} : vector<256x32xbf16> to vector<252x32xbf16>
    %6 = tpu.concatenate %1, %2, %3, %4, %5 in 1 : vector<252x32xbf16>, vector<252x32xbf16>, vector<252x32xbf16>, vector<252x32xbf16>, vector<252x32xbf16> -> vector<252x160xbf16>
    %c0_1 = arith.constant 0 : index
    %c0_2 = arith.constant 0 : index
    %7 = vector.load %arg2[%c0_1, %c0_2] : memref<160x168xbf16, #tpu.memory_space<vmem>>, vector<160x168xbf16>
    %cst = arith.constant dense<0.000000e+00> : vector<252x168xf32>
    %8 = tpu.matmul %6, %7, %cst {dimension_numbers = #tpu.dot_dimension_numbers<[1], [0], [0], [1], [0, 0, 1, 1], [], []>} : vector<252x160xbf16>, vector<160x168xbf16>, vector<252x168xf32> -> vector<252x168xf32>
    %c0_3 = arith.constant 0 : index
    %c0_4 = arith.constant 0 : index
    %9 = vector.load %arg3[%c0_3, %c0_4] : memref<1x168xf32, #tpu.memory_space<vmem>>, vector<1x168xf32>
    %10 = vector.broadcast %9 : vector<1x168xf32> to vector<252x168xf32>
    %11 = arith.addf %8, %10 : vector<252x168xf32>
    %12 = math.tanh %11 : vector<252x168xf32>
    %c0_5 = arith.constant 0 : index
    %c0_6 = arith.constant 0 : index
    %13 = vector.load %arg4[%c0_5, %c0_6] : memref<112x252xbf16, #tpu.memory_space<vmem>>, vector<112x252xbf16>
    %c0_7 = arith.constant 0 : index
    %c0_8 = arith.constant 0 : index
    %14 = vector.load %arg5[%c0_7, %c0_8] : memref<168x84xbf16, #tpu.memory_space<vmem>>, vector<168x84xbf16>
    %15 = arith.truncf %12 : vector<252x168xf32> to vector<252x168xbf16>
    %cst_9 = arith.constant dense<0.000000e+00> : vector<252x84xf32>
    %16 = tpu.matmul %15, %14, %cst_9 {dimension_numbers = #tpu.dot_dimension_numbers<[1], [0], [0], [1], [0, 0, 1, 1], [], []>} : vector<252x168xbf16>, vector<168x84xbf16>, vector<252x84xf32> -> vector<252x84xf32>
    %17 = arith.truncf %16 : vector<252x84xf32> to vector<252x84xbf16>
    %cst_10 = arith.constant dense<0.000000e+00> : vector<112x84xf32>
    %18 = tpu.matmul %13, %17, %cst_10 {dimension_numbers = #tpu.dot_dimension_numbers<[1], [0], [0], [1], [0, 0, 1, 1], [], []>} : vector<112x252xbf16>, vector<252x84xbf16>, vector<112x84xf32> -> vector<112x84xf32>
    %19 = arith.truncf %18 : vector<112x84xf32> to vector<112x84xbf16>
    %20 = vector.extract_strided_slice %19 {offsets = [0, 0], sizes = [108, 84], strides = [1, 1]} : vector<112x84xbf16> to vector<108x84xbf16>
    %21 = vector.extract_strided_slice %19 {offsets = [1, 0], sizes = [108, 84], strides = [1, 1]} : vector<112x84xbf16> to vector<108x84xbf16>
    %22 = vector.extract_strided_slice %19 {offsets = [2, 0], sizes = [108, 84], strides = [1, 1]} : vector<112x84xbf16> to vector<108x84xbf16>
    %23 = vector.extract_strided_slice %19 {offsets = [3, 0], sizes = [108, 84], strides = [1, 1]} : vector<112x84xbf16> to vector<108x84xbf16>
    %24 = vector.extract_strided_slice %19 {offsets = [4, 0], sizes = [108, 84], strides = [1, 1]} : vector<112x84xbf16> to vector<108x84xbf16>
    %25 = tpu.concatenate %20, %21, %22, %23, %24 in 1 : vector<108x84xbf16>, vector<108x84xbf16>, vector<108x84xbf16>, vector<108x84xbf16>, vector<108x84xbf16> -> vector<108x420xbf16>
    %c0_11 = arith.constant 0 : index
    %c0_12 = arith.constant 0 : index
    %26 = vector.load %arg6[%c0_11, %c0_12] : memref<420x160xbf16, #tpu.memory_space<vmem>>, vector<420x160xbf16>
    %cst_13 = arith.constant dense<0.000000e+00> : vector<108x160xf32>
    %27 = tpu.matmul %25, %26, %cst_13 {dimension_numbers = #tpu.dot_dimension_numbers<[1], [0], [0], [1], [0, 0, 1, 1], [], []>} : vector<108x420xbf16>, vector<420x160xbf16>, vector<108x160xf32> -> vector<108x160xf32>
    %c0_14 = arith.constant 0 : index
    %c0_15 = arith.constant 0 : index
    %28 = vector.load %arg7[%c0_14, %c0_15] : memref<1x160xf32, #tpu.memory_space<vmem>>, vector<1x160xf32>
    %29 = vector.broadcast %28 : vector<1x160xf32> to vector<108x160xf32>
    %30 = arith.addf %27, %29 : vector<108x160xf32>
    %31 = math.tanh %30 : vector<108x160xf32>
    %c0_16 = arith.constant 0 : index
    %c0_17 = arith.constant 0 : index
    %32 = vector.load %arg8[%c0_16, %c0_17] : memref<40x108xbf16, #tpu.memory_space<vmem>>, vector<40x108xbf16>
    %c0_18 = arith.constant 0 : index
    %c0_19 = arith.constant 0 : index
    %33 = vector.load %arg9[%c0_18, %c0_19] : memref<160x80xbf16, #tpu.memory_space<vmem>>, vector<160x80xbf16>
    %34 = arith.truncf %31 : vector<108x160xf32> to vector<108x160xbf16>
    %cst_20 = arith.constant dense<0.000000e+00> : vector<108x80xf32>
    %35 = tpu.matmul %34, %33, %cst_20 {dimension_numbers = #tpu.dot_dimension_numbers<[1], [0], [0], [1], [0, 0, 1, 1], [], []>} : vector<108x160xbf16>, vector<160x80xbf16>, vector<108x80xf32> -> vector<108x80xf32>
    %36 = arith.truncf %35 : vector<108x80xf32> to vector<108x80xbf16>
    %cst_21 = arith.constant dense<0.000000e+00> : vector<40x80xf32>
    %37 = tpu.matmul %32, %36, %cst_21 {dimension_numbers = #tpu.dot_dimension_numbers<[1], [0], [0], [1], [0, 0, 1, 1], [], []>} : vector<40x108xbf16>, vector<108x80xbf16>, vector<40x80xf32> -> vector<40x80xf32>
    %38 = arith.truncf %37 : vector<40x80xf32> to vector<40x80xbf16>
    %39 = vector.extract_strided_slice %38 {offsets = [0, 0], sizes = [36, 80], strides = [1, 1]} : vector<40x80xbf16> to vector<36x80xbf16>
    %40 = vector.extract_strided_slice %38 {offsets = [1, 0], sizes = [36, 80], strides = [1, 1]} : vector<40x80xbf16> to vector<36x80xbf16>
    %41 = vector.extract_strided_slice %38 {offsets = [2, 0], sizes = [36, 80], strides = [1, 1]} : vector<40x80xbf16> to vector<36x80xbf16>
    %42 = vector.extract_strided_slice %38 {offsets = [3, 0], sizes = [36, 80], strides = [1, 1]} : vector<40x80xbf16> to vector<36x80xbf16>
    %43 = vector.extract_strided_slice %38 {offsets = [4, 0], sizes = [36, 80], strides = [1, 1]} : vector<40x80xbf16> to vector<36x80xbf16>
    %44 = tpu.concatenate %39, %40, %41, %42, %43 in 1 : vector<36x80xbf16>, vector<36x80xbf16>, vector<36x80xbf16>, vector<36x80xbf16>, vector<36x80xbf16> -> vector<36x400xbf16>
    %c0_22 = arith.constant 0 : index
    %c0_23 = arith.constant 0 : index
    %45 = vector.load %arg12[%c0_22, %c0_23] : memref<8x36xbf16, #tpu.memory_space<vmem>>, vector<8x36xbf16>
    %c0_24 = arith.constant 0 : index
    %c0_25 = arith.constant 0 : index
    %46 = vector.load %arg10[%c0_24, %c0_25] : memref<400x120xbf16, #tpu.memory_space<vmem>>, vector<400x120xbf16>
    %cst_26 = arith.constant dense<0.000000e+00> : vector<36x120xf32>
    %47 = tpu.matmul %44, %46, %cst_26 {dimension_numbers = #tpu.dot_dimension_numbers<[1], [0], [0], [1], [0, 0, 1, 1], [], []>} : vector<36x400xbf16>, vector<400x120xbf16>, vector<36x120xf32> -> vector<36x120xf32>
    %48 = arith.truncf %47 : vector<36x120xf32> to vector<36x120xbf16>
    %cst_27 = arith.constant dense<0.000000e+00> : vector<8x120xf32>
    %49 = tpu.matmul %45, %48, %cst_27 {dimension_numbers = #tpu.dot_dimension_numbers<[1], [0], [0], [1], [0, 0, 1, 1], [], []>} : vector<8x36xbf16>, vector<36x120xbf16>, vector<8x120xf32> -> vector<8x120xf32>
    %c0_28 = arith.constant 0 : index
    %c0_29 = arith.constant 0 : index
    %50 = vector.load %arg11[%c0_28, %c0_29] : memref<1x120xf32, #tpu.memory_space<vmem>>, vector<1x120xf32>
    %51 = vector.broadcast %50 : vector<1x120xf32> to vector<8x120xf32>
    %52 = arith.addf %49, %51 : vector<8x120xf32>
    %53 = math.tanh %52 : vector<8x120xf32>
    %c0_30 = arith.constant 0 : index
    %c0_31 = arith.constant 0 : index
    %54 = vector.load %arg13[%c0_30, %c0_31] : memref<120x84xbf16, #tpu.memory_space<vmem>>, vector<120x84xbf16>
    %55 = arith.truncf %53 : vector<8x120xf32> to vector<8x120xbf16>
    %cst_32 = arith.constant dense<0.000000e+00> : vector<8x84xf32>
    %56 = tpu.matmul %55, %54, %cst_32 {dimension_numbers = #tpu.dot_dimension_numbers<[1], [0], [0], [1], [0, 0, 1, 1], [], []>} : vector<8x120xbf16>, vector<120x84xbf16>, vector<8x84xf32> -> vector<8x84xf32>
    %c0_33 = arith.constant 0 : index
    %c0_34 = arith.constant 0 : index
    %57 = vector.load %arg14[%c0_33, %c0_34] : memref<1x84xf32, #tpu.memory_space<vmem>>, vector<1x84xf32>
    %58 = vector.broadcast %57 : vector<1x84xf32> to vector<8x84xf32>
    %59 = arith.addf %56, %58 : vector<8x84xf32>
    %60 = math.tanh %59 : vector<8x84xf32>
    %c0_35 = arith.constant 0 : index
    %c0_36 = arith.constant 0 : index
    %61 = vector.load %arg15[%c0_35, %c0_36] : memref<84x128xbf16, #tpu.memory_space<vmem>>, vector<84x128xbf16>
    %62 = arith.truncf %60 : vector<8x84xf32> to vector<8x84xbf16>
    %cst_37 = arith.constant dense<0.000000e+00> : vector<8x128xf32>
    %63 = tpu.matmul %62, %61, %cst_37 {dimension_numbers = #tpu.dot_dimension_numbers<[1], [0], [0], [1], [0, 0, 1, 1], [], []>} : vector<8x84xbf16>, vector<84x128xbf16>, vector<8x128xf32> -> vector<8x128xf32>
    %c0_38 = arith.constant 0 : index
    %c0_39 = arith.constant 0 : index
    %64 = vector.load %arg16[%c0_38, %c0_39] : memref<1x128xf32, #tpu.memory_space<vmem>>, vector<1x128xf32>
    %65 = vector.broadcast %64 : vector<1x128xf32> to vector<8x128xf32>
    %66 = arith.addf %63, %65 : vector<8x128xf32>
    %c0_40 = arith.constant 0 : index
    %c0_41 = arith.constant 0 : index
    %67 = vector.load %arg17[%c0_40, %c0_41] : memref<8x128xf32, #tpu.memory_space<vmem>>, vector<8x128xf32>
    tpu.vector_store %arg17[%c0_40, %c0_41], %66 {strides = array<i32>} : memref<8x128xf32, #tpu.memory_space<vmem>>, vector<8x128xf32>,
    %cst_42 = arith.constant dense<0xFF800000> : vector<8xf32>
    %68 = vector.multi_reduction <maximumf>, %66, %cst_42 [1] : vector<8x128xf32> to vector<8xf32>
    %69 = vector.shape_cast %68 : vector<8xf32> to vector<8x1xf32>
    %70 = vector.broadcast %69 : vector<8x1xf32> to vector<8x128xf32>
    %71 = arith.subf %66, %70 : vector<8x128xf32>
    %72 = math.exp %71 : vector<8x128xf32>
    %cst_43 = arith.constant dense<0.000000e+00> : vector<8xf32>
    %73 = vector.multi_reduction <add>, %72, %cst_43 [1] : vector<8x128xf32> to vector<8xf32>
    %74 = vector.shape_cast %73 : vector<8xf32> to vector<8x1xf32>
    %75 = tpu.reciprocal %74 {approx = true} : vector<8x1xf32> -> vector<8x1xf32>
    %76 = vector.broadcast %75 : vector<8x1xf32> to vector<8x128xf32>
    %77 = arith.mulf %72, %76 : vector<8x128xf32>
    %c0_44 = arith.constant 0 : index
    %c0_45 = arith.constant 0 : index
    %78 = vector.load %arg18[%c0_44, %c0_45] : memref<8x128xf32, #tpu.memory_space<vmem>>, vector<8x128xf32>
    tpu.vector_store %arg18[%c0_44, %c0_45], %77 {strides = array<i32>} : memref<8x128xf32, #tpu.memory_space<vmem>>, vector<8x128xf32>,
    return
  }
  func.func @transform_0(%arg0: i32) -> (i32, i32) {
    %c0_i32 = arith.constant 0 : i32
    %c0_i32_0 = arith.constant 0 : i32
    return %arg0, %c0_i32 : i32, i32
  }
  func.func @transform_1(%arg0: i32) -> (i32, i32) {
    %c0_i32 = arith.constant 0 : i32
    %c0_i32_0 = arith.constant 0 : i32
    %c0_i32_1 = arith.constant 0 : i32
    return %c0_i32, %c0_i32_0 : i32, i32
  }
  func.func @transform_2(%arg0: i32) -> (i32, i32) {
    %c0_i32 = arith.constant 0 : i32
    %c0_i32_0 = arith.constant 0 : i32
    %c0_i32_1 = arith.constant 0 : i32
    return %c0_i32, %c0_i32_0 : i32, i32
  }
  func.func @transform_3(%arg0: i32) -> (i32, i32) {
    %c0_i32 = arith.constant 0 : i32
    %c0_i32_0 = arith.constant 0 : i32
    %c0_i32_1 = arith.constant 0 : i32
    return %c0_i32, %c0_i32_0 : i32, i32
  }
  func.func @transform_4(%arg0: i32) -> (i32, i32) {
    %c0_i32 = arith.constant 0 : i32
    %c0_i32_0 = arith.constant 0 : i32
    %c0_i32_1 = arith.constant 0 : i32
    return %c0_i32, %c0_i32_0 : i32, i32
  }
  func.func @transform_5(%arg0: i32) -> (i32, i32) {
    %c0_i32 = arith.constant 0 : i32
    %c0_i32_0 = arith.constant 0 : i32
    %c0_i32_1 = arith.constant 0 : i32
    return %c0_i32, %c0_i32_0 : i32, i32
  }
  func.func @transform_6(%arg0: i32) -> (i32, i32) {
    %c0_i32 = arith.constant 0 : i32
    %c0_i32_0 = arith.constant 0 : i32
    %c0_i32_1 = arith.constant 0 : i32
    return %c0_i32, %c0_i32_0 : i32, i32
  }
  func.func @transform_7(%arg0: i32) -> (i32, i32) {
    %c0_i32 = arith.constant 0 : i32
    %c0_i32_0 = arith.constant 0 : i32
    %c0_i32_1 = arith.constant 0 : i32
    return %c0_i32, %c0_i32_0 : i32, i32
  }
  func.func @transform_8(%arg0: i32) -> (i32, i32) {
    %c0_i32 = arith.constant 0 : i32
    %c0_i32_0 = arith.constant 0 : i32
    %c0_i32_1 = arith.constant 0 : i32
    return %c0_i32, %c0_i32_0 : i32, i32
  }
  func.func @transform_9(%arg0: i32) -> (i32, i32) {
    %c0_i32 = arith.constant 0 : i32
    %c0_i32_0 = arith.constant 0 : i32
    %c0_i32_1 = arith.constant 0 : i32
    return %c0_i32, %c0_i32_0 : i32, i32
  }
  func.func @transform_10(%arg0: i32) -> (i32, i32) {
    %c0_i32 = arith.constant 0 : i32
    %c0_i32_0 = arith.constant 0 : i32
    %c0_i32_1 = arith.constant 0 : i32
    return %c0_i32, %c0_i32_0 : i32, i32
  }
  func.func @transform_11(%arg0: i32) -> (i32, i32) {
    %c0_i32 = arith.constant 0 : i32
    %c0_i32_0 = arith.constant 0 : i32
    %c0_i32_1 = arith.constant 0 : i32
    return %c0_i32, %c0_i32_0 : i32, i32
  }
  func.func @transform_12(%arg0: i32) -> (i32, i32) {
    %c0_i32 = arith.constant 0 : i32
    %c0_i32_0 = arith.constant 0 : i32
    %c0_i32_1 = arith.constant 0 : i32
    return %c0_i32, %c0_i32_0 : i32, i32
  }
  func.func @transform_13(%arg0: i32) -> (i32, i32) {
    %c0_i32 = arith.constant 0 : i32
    %c0_i32_0 = arith.constant 0 : i32
    %c0_i32_1 = arith.constant 0 : i32
    return %c0_i32, %c0_i32_0 : i32, i32
  }
  func.func @transform_14(%arg0: i32) -> (i32, i32) {
    %c0_i32 = arith.constant 0 : i32
    %c0_i32_0 = arith.constant 0 : i32
    %c0_i32_1 = arith.constant 0 : i32
    return %c0_i32, %c0_i32_0 : i32, i32
  }
  func.func @transform_15(%arg0: i32) -> (i32, i32) {
    %c0_i32 = arith.constant 0 : i32
    %c0_i32_0 = arith.constant 0 : i32
    %c0_i32_1 = arith.constant 0 : i32
    return %c0_i32, %c0_i32_0 : i32, i32
  }
  func.func @transform_16(%arg0: i32) -> (i32, i32) {
    %c0_i32 = arith.constant 0 : i32
    %c0_i32_0 = arith.constant 0 : i32
    return %arg0, %c0_i32 : i32, i32
  }
  func.func @transform_17(%arg0: i32) -> (i32, i32) {
    %c0_i32 = arith.constant 0 : i32
    %c0_i32_0 = arith.constant 0 : i32
    return %arg0, %c0_i32 : i32, i32
  }
}

</mosaic_0001>

<llo_original>
// kernel: lenet5_forward.1
$region0: #{lenet5_forward.1}
  #allocation0 [shape = 'u32[]', space=smem, size = 0x4, offset = 0x4, fixed_abs, tag = 'smem constant byte address 0x4 - core index']
  #allocation1 [shape = 'u32[144,128]{1,0:T(1,128)}', space=vmem, size = 0x12000, scoped, tag = 'internal scratch']
  %s0 = inlined_call_operand.vmem [shape: bf16[512,32], index: 0, kind: input, shape index: {}]
  %s1 = inlined_call_operand.vmem [shape: bf16[160,168], index: 1, kind: input, shape index: {}]
  %s2 = inlined_call_operand.hbm [shape: f32[1,168], index: 2, kind: input, shape index: {}]
  %s3 = inlined_call_operand.vmem [shape: bf16[112,252], index: 3, kind: input, shape index: {}]
  %s4 = inlined_call_operand.vmem [shape: bf16[168,84], index: 4, kind: input, shape index: {}]
  %s5 = inlined_call_operand.vmem [shape: bf16[420,160], index: 5, kind: input, shape index: {}]
  %s6 = inlined_call_operand.vmem [shape: f32[1,160], index: 6, kind: input, shape index: {}]
  %s7 = inlined_call_operand.hbm [shape: bf16[40,108], index: 7, kind: input, shape index: {}]
  %s8 = inlined_call_operand.vmem [shape: bf16[160,80], index: 8, kind: input, shape index: {}]
  %s9 = inlined_call_operand.vmem [shape: bf16[400,120], index: 9, kind: input, shape index: {}]
  %s10 = inlined_call_operand.hbm [shape: f32[1,120], index: 10, kind: input, shape index: {}]
  %s11 = inlined_call_operand.hbm [shape: bf16[8,36], index: 11, kind: input, shape index: {}]
  %s12 = inlined_call_operand.hbm [shape: bf16[120,84], index: 12, kind: input, shape index: {}]
  %s13 = inlined_call_operand.hbm [shape: f32[1,84], index: 13, kind: input, shape index: {}]
  %s14 = inlined_call_operand.vmem [shape: bf16[84,128], index: 14, kind: input, shape index: {}]
  %s15 = inlined_call_operand.vmem [shape: f32[1,128], index: 15, kind: input, shape index: {}]
  %s16 = inlined_call_operand.hbm [shape: f32[16,128], index: 16, kind: output, shape index: {0}]
  %s17 = inlined_call_operand.hbm [shape: f32[16,128], index: 17, kind: output, shape index: {1}]
  %18 = xla_tuple %s16, %s17
  %s19 = sld [smem:[#allocation0]]
  $region129: #{lenet5_forward.1} parent=0
    _
  %s21 = ssub.s32 1, %s19
  %s22 = scalar_select 0, %s21, %s19
  $region1: #{lenet5_forward.1} parent=0
    #allocation2 [shape = 'u8[1024]{0}', space=vmem, size = 0x400, scoped, tag = 'input window, operand 2, single buffered']
    #allocation3 [shape = 's32[2]{0}', space=sflag, size = 0x8, scoped, tag = 'scoped memory for lenet5_forward.1']
    #allocation4 [shape = 's32[2]{0}', space=sflag, size = 0x8, scoped, tag = 'scoped memory for lenet5_forward.1']
    #allocation5 [shape = 'u8[10240]{0}', space=vmem, size = 0x2800, scoped, tag = 'input window, operand 7, single buffered']
    #allocation6 [shape = 's32[1]{0}', space=sflag, size = 0x4, scoped, tag = 'scoped memory for lenet5_forward.1']
    #allocation7 [shape = 'u8[512]{0}', space=vmem, size = 0x400, scoped, tag = 'input window, operand 10, single buffered']
    #allocation8 [shape = 'u8[2048]{0}', space=vmem, size = 0x800, scoped, tag = 'input window, operand 11, single buffered']
    #allocation9 [shape = 's32[1]{0}', space=sflag, size = 0x4, scoped, tag = 'scoped memory for lenet5_forward.1']
    #allocation10 [shape = 'u8[30720]{0}', space=vmem, size = 0x7800, scoped, tag = 'input window, operand 12, single buffered']
    #allocation11 [shape = 'u8[512]{0}', space=vmem, size = 0x400, scoped, tag = 'input window, operand 13, single buffered']
    #allocation12 [shape = 's32[1]{0}', space=sflag, size = 0x4, scoped, tag = 'scoped memory for lenet5_forward.1']
    #allocation13 [shape = 'u8[8192]{0}', space=vmem, size = 0x2000, scoped, tag = 'output window, operand 0']
    #allocation14 [shape = 'u8[8192]{0}', space=vmem, size = 0x2000, scoped, tag = 'output window, operand 1']
    #allocation15 [shape = 's32[2]{0}', space=sflag, size = 0x8, scoped, tag = 'scoped memory for lenet5_forward.1']
    %23 = vsyncpa [#allocation3], 0
    %24 = vsyncpa [#allocation6], 0
    %25 = vsyncpa [#allocation9], 0
    %26 = vsyncpa [#allocation12], 0
    %27 = vsyncpa [#allocation4], 0
    %s28 = scalar_lea.sflag [#allocation4], 1
    %29 = vsyncpa %s28, 0
    %30 = vsyncpa [#allocation15], 0
    %s31 = scalar_lea.sflag [#allocation15], 1
    %32 = vsyncpa %s31, 0
    loop: start=0, step=1, limit=4
    $region2: #{lenet5_forward.1} parent=1 // loop_pre_header
      _
    $region3: #{lenet5_forward.1} parent=1 // loop_header
      %s34 = sphi 0, %s38
      %p35 = scmp.ge.s32.totalorder %s34, 4
      %s44 = sphi 0, %s46
      %s47 = sphi 0, %s44
      %s48 = sphi 0, %s47
      %s64 = sphi 0, %s48
      %s68 = sphi 0, %s68
      %s70 = sphi 0, %s68
      %s71 = sphi 0, %s70
      %s85 = sphi 0, %s71
      %s89 = sphi 0, %s89
      %s91 = sphi 0, %s89
      %s92 = sphi 0, %s91
      %s106 = sphi 0, %s92
      %s110 = sphi 0, %s110
      %s112 = sphi 0, %s110
      %s113 = sphi 0, %s112
      %s127 = sphi 0, %s113
      %s131 = sphi 0, %s131
      %s133 = sphi 0, %s131
      %s134 = sphi 0, %s133
      %s148 = sphi 0, %s134
      %s152 = sphi 0, %s152
      %s154 = sphi 0, %s152
      %s155 = sphi 0, %s154
      %s169 = sphi 0, %s155
      %s173 = sphi 0, %s173
      %s175 = sphi 0, %s173
      %s176 = sphi 0, %s175
      %s190 = sphi 0, %s176
      %s194 = sphi 0, %s194
      %s196 = sphi 0, %s194
      %s197 = sphi 0, %s196
      %s211 = sphi 0, %s197
      %s215 = sphi 0, %s215
      %s217 = sphi 0, %s215
      %s218 = sphi 0, %s217
      %s232 = sphi 0, %s218
      %s236 = sphi 0, %s236
      %s238 = sphi 0, %s236
      %s239 = sphi 0, %s238
      %s253 = sphi 0, %s239
      %s257 = sphi 0, %s257
      %s259 = sphi 0, %s257
      %s260 = sphi 0, %s259
      %s274 = sphi 0, %s260
      %s278 = sphi 0, %s278
      %s280 = sphi 0, %s278
      %s281 = sphi 0, %s280
      %s295 = sphi 0, %s281
      %s299 = sphi 0, %s299
      %s301 = sphi 0, %s299
      %s302 = sphi 0, %s301
      %s316 = sphi 0, %s302
      %s320 = sphi 0, %s320
      %s322 = sphi 0, %s320
      %s323 = sphi 0, %s322
      %s337 = sphi 0, %s323
      %s341 = sphi 0, %s341
      %s343 = sphi 0, %s341
      %s344 = sphi 0, %s343
      %s358 = sphi 0, %s344
      %s362 = sphi 0, %s362
      %s364 = sphi 0, %s362
      %s365 = sphi 0, %s364
      %s379 = sphi 0, %s365
      %s385 = sphi 0, %s387
      %s388 = sphi 0, %s385
      %s389 = sphi 0, %s388
      %s405 = sphi 0, %s389
      %s411 = sphi 0, %s413
      %s414 = sphi 0, %s411
      %s415 = sphi 0, %s414
      %s431 = sphi 0, %s415
    $region4: #{lenet5_forward.1} parent=1 // loop_header_branch
      %37 = sbr.rel (%p35) target = $region8
    $region5: #{lenet5_forward.1} parent=1 // loop_body
      %s39 = ssub.s32 %s34, 1
      %s40 = ssub.s32 %s34, 2
      %s41 = sadd.s32 %s34, 1
      %s42 = ssub.s32 %s34, %s41
      %p43 = scmp.eq.s32.totalorder %s42, 0
      %s45 = sadd.s32 %s44, 1
      %s46 = scalar_select %p43, %s44, %s45
      %p49 = pneg %p43
      %p50 = scmp.eq.s32.totalorder %s34, 1
      %p51 = por %p49, %p50
      %p52 = scmp.ne.s32.totalorder %s44, %s47
      %p53 = scmp.eq.s32.totalorder %s34, 0
      %p54 = por %p52, %p53
      %p55 = scmp.ne.s32.totalorder %s44, %s47
      %p56 = scmp.eq.s32.totalorder %s39, 1
      %p57 = por %p55, %p56
      %p58 = scmp.ne.s32.totalorder %s47, %s48
      %p59 = scmp.eq.s32.totalorder %s39, 0
      %p60 = por %p58, %p59
      %p61 = scmp.ne.s32.totalorder %s47, %s48
      %p62 = scmp.eq.s32.totalorder %s40, 1
      %p63 = por %p61, %p62
      %p65 = scmp.ne.s32.totalorder %s48, %s64
      %p66 = scmp.eq.s32.totalorder %s40, 0
      %p67 = por %p65, %p66
      %s69 = sadd.s32 %s68, 1
      %p72 = scmp.eq.s32.totalorder %s34, 1
      %p73 = scmp.ne.s32.totalorder %s68, %s70
      %p74 = scmp.eq.s32.totalorder %s34, 0
      %p75 = por %p73, %p74
      %p76 = scmp.ne.s32.totalorder %s68, %s70
      %p77 = scmp.eq.s32.totalorder %s39, 1
      %p78 = por %p76, %p77
      %p79 = scmp.ne.s32.totalorder %s70, %s71
      %p80 = scmp.eq.s32.totalorder %s39, 0
      %p81 = por %p79, %p80
      %p82 = scmp.ne.s32.totalorder %s70, %s71
      %p83 = scmp.eq.s32.totalorder %s40, 1
      %p84 = por %p82, %p83
      %p86 = scmp.ne.s32.totalorder %s71, %s85
      %p87 = scmp.eq.s32.totalorder %s40, 0
      %p88 = por %p86, %p87
      %s90 = sadd.s32 %s89, 1
      %p93 = scmp.eq.s32.totalorder %s34, 1
      %p94 = scmp.ne.s32.totalorder %s89, %s91
      %p95 = scmp.eq.s32.totalorder %s34, 0
      %p96 = por %p94, %p95
      %p97 = scmp.ne.s32.totalorder %s89, %s91
      %p98 = scmp.eq.s32.totalorder %s39, 1
      %p99 = por %p97, %p98
      %p100 = scmp.ne.s32.totalorder %s91, %s92
      %p101 = scmp.eq.s32.totalorder %s39, 0
      %p102 = por %p100, %p101
      %p103 = scmp.ne.s32.totalorder %s91, %s92
      %p104 = scmp.eq.s32.totalorder %s40, 1
      %p105 = por %p103, %p104
      %p107 = scmp.ne.s32.totalorder %s92, %s106
      %p108 = scmp.eq.s32.totalorder %s40, 0
      %p109 = por %p107, %p108
      %s111 = sadd.s32 %s110, 1
      %p114 = scmp.eq.s32.totalorder %s34, 1
      %p115 = scmp.ne.s32.totalorder %s110, %s112
      %p116 = scmp.eq.s32.totalorder %s34, 0
      %p117 = por %p115, %p116
      %p118 = scmp.ne.s32.totalorder %s110, %s112
      %p119 = scmp.eq.s32.totalorder %s39, 1
      %p120 = por %p118, %p119
      %p121 = scmp.ne.s32.totalorder %s112, %s113
      %p122 = scmp.eq.s32.totalorder %s39, 0
      %p123 = por %p121, %p122
      %p124 = scmp.ne.s32.totalorder %s112, %s113
      %p125 = scmp.eq.s32.totalorder %s40, 1
      %p126 = por %p124, %p125
      %p128 = scmp.ne.s32.totalorder %s113, %s127
      %p129 = scmp.eq.s32.totalorder %s40, 0
      %p130 = por %p128, %p129
      %s132 = sadd.s32 %s131, 1
      %p135 = scmp.eq.s32.totalorder %s34, 1
      %p136 = scmp.ne.s32.totalorder %s131, %s133
      %p137 = scmp.eq.s32.totalorder %s34, 0
      %p138 = por %p136, %p137
      %p139 = scmp.ne.s32.totalorder %s131, %s133
      %p140 = scmp.eq.s32.totalorder %s39, 1
      %p141 = por %p139, %p140
      %p142 = scmp.ne.s32.totalorder %s133, %s134
      %p143 = scmp.eq.s32.totalorder %s39, 0
      %p144 = por %p142, %p143
      %p145 = scmp.ne.s32.totalorder %s133, %s134
      %p146 = scmp.eq.s32.totalorder %s40, 1
      %p147 = por %p145, %p146
      %p149 = scmp.ne.s32.totalorder %s134, %s148
      %p150 = scmp.eq.s32.totalorder %s40, 0
      %p151 = por %p149, %p150
      %s153 = sadd.s32 %s152, 1
      %p156 = scmp.eq.s32.totalorder %s34, 1
      %p157 = scmp.ne.s32.totalorder %s152, %s154
      %p158 = scmp.eq.s32.totalorder %s34, 0
      %p159 = por %p157, %p158
      %p160 = scmp.ne.s32.totalorder %s152, %s154
      %p161 = scmp.eq.s32.totalorder %s39, 1
      %p162 = por %p160, %p161
      %p163 = scmp.ne.s32.totalorder %s154, %s155
      %p164 = scmp.eq.s32.totalorder %s39, 0
      %p165 = por %p163, %p164
      %p166 = scmp.ne.s32.totalorder %s154, %s155
      %p167 = scmp.eq.s32.totalorder %s40, 1
      %p168 = por %p166, %p167
      %p170 = scmp.ne.s32.totalorder %s155, %s169
      %p171 = scmp.eq.s32.totalorder %s40, 0
      %p172 = por %p170, %p171
      %s174 = sadd.s32 %s173, 1
      %p177 = scmp.eq.s32.totalorder %s34, 1
      %p178 = scmp.ne.s32.totalorder %s173, %s175
      %p179 = scmp.eq.s32.totalorder %s34, 0
      %p180 = por %p178, %p179
      %p181 = scmp.ne.s32.totalorder %s173, %s175
      %p182 = scmp.eq.s32.totalorder %s39, 1
      %p183 = por %p181, %p182
      %p184 = scmp.ne.s32.totalorder %s175, %s176
      %p185 = scmp.eq.s32.totalorder %s39, 0
      %p186 = por %p184, %p185
      %p187 = scmp.ne.s32.totalorder %s175, %s176
      %p188 = scmp.eq.s32.totalorder %s40, 1
      %p189 = por %p187, %p188
      %p191 = scmp.ne.s32.totalorder %s176, %s190
      %p192 = scmp.eq.s32.totalorder %s40, 0
      %p193 = por %p191, %p192
      %s195 = sadd.s32 %s194, 1
      %p198 = scmp.eq.s32.totalorder %s34, 1
      %p199 = scmp.ne.s32.totalorder %s194, %s196
      %p200 = scmp.eq.s32.totalorder %s34, 0
      %p201 = por %p199, %p200
      %p202 = scmp.ne.s32.totalorder %s194, %s196
      %p203 = scmp.eq.s32.totalorder %s39, 1
      %p204 = por %p202, %p203
      %p205 = scmp.ne.s32.totalorder %s196, %s197
      %p206 = scmp.eq.s32.totalorder %s39, 0
      %p207 = por %p205, %p206
      %p208 = scmp.ne.s32.totalorder %s196, %s197
      %p209 = scmp.eq.s32.totalorder %s40, 1
      %p210 = por %p208, %p209
      %p212 = scmp.ne.s32.totalorder %s197, %s211
      %p213 = scmp.eq.s32.totalorder %s40, 0
      %p214 = por %p212, %p213
      %s216 = sadd.s32 %s215, 1
      %p219 = scmp.eq.s32.totalorder %s34, 1
      %p220 = scmp.ne.s32.totalorder %s215, %s217
      %p221 = scmp.eq.s32.totalorder %s34, 0
      %p222 = por %p220, %p221
      %p223 = scmp.ne.s32.totalorder %s215, %s217
      %p224 = scmp.eq.s32.totalorder %s39, 1
      %p225 = por %p223, %p224
      %p226 = scmp.ne.s32.totalorder %s217, %s218
      %p227 = scmp.eq.s32.totalorder %s39, 0
      %p228 = por %p226, %p227
      %p229 = scmp.ne.s32.totalorder %s217, %s218
      %p230 = scmp.eq.s32.totalorder %s40, 1
      %p231 = por %p229, %p230
      %p233 = scmp.ne.s32.totalorder %s218, %s232
      %p234 = scmp.eq.s32.totalorder %s40, 0
      %p235 = por %p233, %p234
      %s237 = sadd.s32 %s236, 1
      %p240 = scmp.eq.s32.totalorder %s34, 1
      %p241 = scmp.ne.s32.totalorder %s236, %s238
      %p242 = scmp.eq.s32.totalorder %s34, 0
      %p243 = por %p241, %p242
      %p244 = scmp.ne.s32.totalorder %s236, %s238
      %p245 = scmp.eq.s32.totalorder %s39, 1
      %p246 = por %p244, %p245
      %p247 = scmp.ne.s32.totalorder %s238, %s239
      %p248 = scmp.eq.s32.totalorder %s39, 0
      %p249 = por %p247, %p248
      %p250 = scmp.ne.s32.totalorder %s238, %s239
      %p251 = scmp.eq.s32.totalorder %s40, 1
      %p252 = por %p250, %p251
      %p254 = scmp.ne.s32.totalorder %s239, %s253
      %p255 = scmp.eq.s32.totalorder %s40, 0
      %p256 = por %p254, %p255
      %s258 = sadd.s32 %s257, 1
      %p261 = scmp.eq.s32.totalorder %s34, 1
      %p262 = scmp.ne.s32.totalorder %s257, %s259
      %p263 = scmp.eq.s32.totalorder %s34, 0
      %p264 = por %p262, %p263
      %p265 = scmp.ne.s32.totalorder %s257, %s259
      %p266 = scmp.eq.s32.totalorder %s39, 1
      %p267 = por %p265, %p266
      %p268 = scmp.ne.s32.totalorder %s259, %s260
      %p269 = scmp.eq.s32.totalorder %s39, 0
      %p270 = por %p268, %p269
      %p271 = scmp.ne.s32.totalorder %s259, %s260
      %p272 = scmp.eq.s32.totalorder %s40, 1
      %p273 = por %p271, %p272
      %p275 = scmp.ne.s32.totalorder %s260, %s274
      %p276 = scmp.eq.s32.totalorder %s40, 0
      %p277 = por %p275, %p276
      %s279 = sadd.s32 %s278, 1
      %p282 = scmp.eq.s32.totalorder %s34, 1
      %p283 = scmp.ne.s32.totalorder %s278, %s280
      %p284 = scmp.eq.s32.totalorder %s34, 0
      %p285 = por %p283, %p284
      %p286 = scmp.ne.s32.totalorder %s278, %s280
      %p287 = scmp.eq.s32.totalorder %s39, 1
      %p288 = por %p286, %p287
      %p289 = scmp.ne.s32.totalorder %s280, %s281
      %p290 = scmp.eq.s32.totalorder %s39, 0
      %p291 = por %p289, %p290
      %p292 = scmp.ne.s32.totalorder %s280, %s281
      %p293 = scmp.eq.s32.totalorder %s40, 1
      %p294 = por %p292, %p293
      %p296 = scmp.ne.s32.totalorder %s281, %s295
      %p297 = scmp.eq.s32.totalorder %s40, 0
      %p298 = por %p296, %p297
      %s300 = sadd.s32 %s299, 1
      %p303 = scmp.eq.s32.totalorder %s34, 1
      %p304 = scmp.ne.s32.totalorder %s299, %s301
      %p305 = scmp.eq.s32.totalorder %s34, 0
      %p306 = por %p304, %p305
      %p307 = scmp.ne.s32.totalorder %s299, %s301
      %p308 = scmp.eq.s32.totalorder %s39, 1
      %p309 = por %p307, %p308
      %p310 = scmp.ne.s32.totalorder %s301, %s302
      %p311 = scmp.eq.s32.totalorder %s39, 0
      %p312 = por %p310, %p311
      %p313 = scmp.ne.s32.totalorder %s301, %s302
      %p314 = scmp.eq.s32.totalorder %s40, 1
      %p315 = por %p313, %p314
      %p317 = scmp.ne.s32.totalorder %s302, %s316
      %p318 = scmp.eq.s32.totalorder %s40, 0
      %p319 = por %p317, %p318
      %s321 = sadd.s32 %s320, 1
      %p324 = scmp.eq.s32.totalorder %s34, 1
      %p325 = scmp.ne.s32.totalorder %s320, %s322
      %p326 = scmp.eq.s32.totalorder %s34, 0
      %p327 = por %p325, %p326
      %p328 = scmp.ne.s32.totalorder %s320, %s322
      %p329 = scmp.eq.s32.totalorder %s39, 1
      %p330 = por %p328, %p329
      %p331 = scmp.ne.s32.totalorder %s322, %s323
      %p332 = scmp.eq.s32.totalorder %s39, 0
      %p333 = por %p331, %p332
      %p334 = scmp.ne.s32.totalorder %s322, %s323
      %p335 = scmp.eq.s32.totalorder %s40, 1
      %p336 = por %p334, %p335
      %p338 = scmp.ne.s32.totalorder %s323, %s337
      %p339 = scmp.eq.s32.totalorder %s40, 0
      %p340 = por %p338, %p339
      %s342 = sadd.s32 %s341, 1
      %p345 = scmp.eq.s32.totalorder %s34, 1
      %p346 = scmp.ne.s32.totalorder %s341, %s343
      %p347 = scmp.eq.s32.totalorder %s34, 0
      %p348 = por %p346, %p347
      %p349 = scmp.ne.s32.totalorder %s341, %s343
      %p350 = scmp.eq.s32.totalorder %s39, 1
      %p351 = por %p349, %p350
      %p352 = scmp.ne.s32.totalorder %s343, %s344
      %p353 = scmp.eq.s32.totalorder %s39, 0
      %p354 = por %p352, %p353
      %p355 = scmp.ne.s32.totalorder %s343, %s344
      %p356 = scmp.eq.s32.totalorder %s40, 1
      %p357 = por %p355, %p356
      %p359 = scmp.ne.s32.totalorder %s344, %s358
      %p360 = scmp.eq.s32.totalorder %s40, 0
      %p361 = por %p359, %p360
      %s363 = sadd.s32 %s362, 1
      %p366 = scmp.eq.s32.totalorder %s34, 1
      %p367 = scmp.ne.s32.totalorder %s362, %s364
      %p368 = scmp.eq.s32.totalorder %s34, 0
      %p369 = por %p367, %p368
      %p370 = scmp.ne.s32.totalorder %s362, %s364
      %p371 = scmp.eq.s32.totalorder %s39, 1
      %p372 = por %p370, %p371
      %p373 = scmp.ne.s32.totalorder %s364, %s365
      %p374 = scmp.eq.s32.totalorder %s39, 0
      %p375 = por %p373, %p374
      %p376 = scmp.ne.s32.totalorder %s364, %s365
      %p377 = scmp.eq.s32.totalorder %s40, 1
      %p378 = por %p376, %p377
      %p380 = scmp.ne.s32.totalorder %s365, %s379
      %p381 = scmp.eq.s32.totalorder %s40, 0
      %p382 = por %p380, %p381
      %s383 = ssub.s32 %s34, %s41
      %p384 = scmp.eq.s32.totalorder %s383, 0
      %s386 = sadd.s32 %s385, 1
      %s387 = scalar_select %p384, %s385, %s386
      %p390 = pneg %p384
      %p391 = scmp.eq.s32.totalorder %s34, 1
      %p392 = por %p390, %p391
      %p393 = scmp.ne.s32.totalorder %s385, %s388
      %p394 = scmp.eq.s32.totalorder %s34, 0
      %p395 = por %p393, %p394
      %p396 = scmp.ne.s32.totalorder %s385, %s388
      %p397 = scmp.eq.s32.totalorder %s39, 1
      %p398 = por %p396, %p397
      %p399 = scmp.ne.s32.totalorder %s388, %s389
      %p400 = scmp.eq.s32.totalorder %s39, 0
      %p401 = por %p399, %p400
      %p402 = scmp.ne.s32.totalorder %s388, %s389
      %p403 = scmp.eq.s32.totalorder %s40, 1
      %p404 = por %p402, %p403
      %p406 = scmp.ne.s32.totalorder %s389, %s405
      %p407 = scmp.eq.s32.totalorder %s40, 0
      %p408 = por %p406, %p407
      %s409 = ssub.s32 %s34, %s41
      %p410 = scmp.eq.s32.totalorder %s409, 0
      %s412 = sadd.s32 %s411, 1
      %s413 = scalar_select %p410, %s411, %s412
      %p416 = pneg %p410
      %p417 = scmp.eq.s32.totalorder %s34, 1
      %p418 = por %p416, %p417
      %p419 = scmp.ne.s32.totalorder %s411, %s414
      %p420 = scmp.eq.s32.totalorder %s34, 0
      %p421 = por %p419, %p420
      %p422 = scmp.ne.s32.totalorder %s411, %s414
      %p423 = scmp.eq.s32.totalorder %s39, 1
      %p424 = por %p422, %p423
      %p425 = scmp.ne.s32.totalorder %s414, %s415
      %p426 = scmp.eq.s32.totalorder %s39, 0
      %p427 = por %p425, %p426
      %p428 = scmp.ne.s32.totalorder %s414, %s415
      %p429 = scmp.eq.s32.totalorder %s40, 1
      %p430 = por %p428, %p429
      %p432 = scmp.ne.s32.totalorder %s415, %s431
      %p433 = scmp.eq.s32.totalorder %s40, 0
      %p434 = por %p432, %p433
      %p435 = scmp.le.s32.totalorder 1, %s34
      %p436 = scmp.lt.s32.totalorder %s34, 3
      %p437 = pnand %p435, %p436
      %p438 = pneg %p437
      // Predicated region
      $region9: #{lenet5_forward.1} parent=5 // pred_check
        _
      $region10: #{lenet5_forward.1} parent=5 // pred_check_branch
        %440 = sbr.rel (%p437) target = $region12
      $region11: #{lenet5_forward.1} parent=5 // pred_region
        %s441 = ssub.s32 %s34, 1
        // Predicated region
        $region13: #{lenet5_forward.1} parent=11 // pred_check
          %p442 = pneg %p81
        $region14: #{lenet5_forward.1} parent=11 // pred_check_branch
          %444 = sbr.rel (%p442) target = $region16
        $region15: #{lenet5_forward.1} parent=11 // pred_region
          _
        $region16: #{lenet5_forward.1} parent=11 // pred_fallthru
          _
        // Predicated region
        $region17: #{lenet5_forward.1} parent=11 // pred_check
          %p445 = pneg %p102
        $region18: #{lenet5_forward.1} parent=11 // pred_check_branch
          %447 = sbr.rel (%p445) target = $region20
        $region19: #{lenet5_forward.1} parent=11 // pred_region
          %s449 = ssub.s32 32, 32
          %450 = vsyncadd [#allocation3], %s449
          %s452 = sshll.u32 [#allocation2], 4
          %s453 = int_to_ptr.vmem [resolvable:$true] %s452
          %455 = dma.hbm_to_vmem [thread:$0]  %s2, 32, %s453, [#allocation3]
        $region20: #{lenet5_forward.1} parent=11 // pred_fallthru
          _
        // Predicated region
        $region21: #{lenet5_forward.1} parent=11 // pred_check
          %p456 = pneg %p123
        $region22: #{lenet5_forward.1} parent=11 // pred_check_branch
          %458 = sbr.rel (%p456) target = $region24
        $region23: #{lenet5_forward.1} parent=11 // pred_region
          _
        $region24: #{lenet5_forward.1} parent=11 // pred_fallthru
          _
        // Predicated region
        $region25: #{lenet5_forward.1} parent=11 // pred_check
          %p459 = pneg %p144
        $region26: #{lenet5_forward.1} parent=11 // pred_check_branch
          %461 = sbr.rel (%p459) target = $region28
        $region27: #{lenet5_forward.1} parent=11 // pred_region
          _
        $region28: #{lenet5_forward.1} parent=11 // pred_fallthru
          _
        // Predicated region
        $region29: #{lenet5_forward.1} parent=11 // pred_check
          %p462 = pneg %p165
        $region30: #{lenet5_forward.1} parent=11 // pred_check_branch
          %464 = sbr.rel (%p462) target = $region32
        $region31: #{lenet5_forward.1} parent=11 // pred_region
          _
        $region32: #{lenet5_forward.1} parent=11 // pred_fallthru
          _
        // Predicated region
        $region33: #{lenet5_forward.1} parent=11 // pred_check
          %p465 = pneg %p186
        $region34: #{lenet5_forward.1} parent=11 // pred_check_branch
          %467 = sbr.rel (%p465) target = $region36
        $region35: #{lenet5_forward.1} parent=11 // pred_region
          _
        $region36: #{lenet5_forward.1} parent=11 // pred_fallthru
          _
        // Predicated region
        $region37: #{lenet5_forward.1} parent=11 // pred_check
          %p468 = pneg %p207
        $region38: #{lenet5_forward.1} parent=11 // pred_check_branch
          %470 = sbr.rel (%p468) target = $region40
        $region39: #{lenet5_forward.1} parent=11 // pred_region
          %s472 = ssub.s32 320, 320
          %473 = vsyncadd [#allocation6], %s472
          %s474 = sshll.u32 [#allocation5], 4
          %s475 = int_to_ptr.vmem [resolvable:$true] %s474
          %480 = dma.hbm_to_vmem [thread:$0]  %s7, 320, %s475, [#allocation6], 64, 64, 4
        $region40: #{lenet5_forward.1} parent=11 // pred_fallthru
          _
        // Predicated region
        $region41: #{lenet5_forward.1} parent=11 // pred_check
          %p481 = pneg %p228
        $region42: #{lenet5_forward.1} parent=11 // pred_check_branch
          %483 = sbr.rel (%p481) target = $region44
        $region43: #{lenet5_forward.1} parent=11 // pred_region
          _
        $region44: #{lenet5_forward.1} parent=11 // pred_fallthru
          _
        // Predicated region
        $region45: #{lenet5_forward.1} parent=11 // pred_check
          %p484 = pneg %p249
        $region46: #{lenet5_forward.1} parent=11 // pred_check_branch
          %486 = sbr.rel (%p484) target = $region48
        $region47: #{lenet5_forward.1} parent=11 // pred_region
          _
        $region48: #{lenet5_forward.1} parent=11 // pred_fallthru
          _
        // Predicated region
        $region49: #{lenet5_forward.1} parent=11 // pred_check
          %p487 = pneg %p270
        $region50: #{lenet5_forward.1} parent=11 // pred_check_branch
          %489 = sbr.rel (%p487) target = $region52
        $region51: #{lenet5_forward.1} parent=11 // pred_region
          %s491 = ssub.s32 16, 16
          %492 = vsyncadd [#allocation6], %s491
          %s494 = sshll.u32 [#allocation7], 4
          %s495 = int_to_ptr.vmem [resolvable:$true] %s494
          %497 = dma.hbm_to_vmem [thread:$0]  %s10, 16, %s495, [#allocation6]
        $region52: #{lenet5_forward.1} parent=11 // pred_fallthru
          _
        // Predicated region
        $region53: #{lenet5_forward.1} parent=11 // pred_check
          %p498 = pneg %p291
        $region54: #{lenet5_forward.1} parent=11 // pred_check_branch
          %500 = sbr.rel (%p498) target = $region56
        $region55: #{lenet5_forward.1} parent=11 // pred_region
          %s502 = ssub.s32 64, 64
          %503 = vsyncadd [#allocation9], %s502
          %s505 = sshll.u32 [#allocation8], 4
          %s506 = int_to_ptr.vmem [resolvable:$true] %s505
          %508 = dma.hbm_to_vmem [thread:$0]  %s11, 64, %s506, [#allocation9]
        $region56: #{lenet5_forward.1} parent=11 // pred_fallthru
          _
        // Predicated region
        $region57: #{lenet5_forward.1} parent=11 // pred_check
          %p509 = pneg %p312
        $region58: #{lenet5_forward.1} parent=11 // pred_check_branch
          %511 = sbr.rel (%p509) target = $region60
        $region59: #{lenet5_forward.1} parent=11 // pred_region
          %s513 = ssub.s32 960, 960
          %514 = vsyncadd [#allocation9], %s513
          %s515 = sshll.u32 [#allocation10], 4
          %s516 = int_to_ptr.vmem [resolvable:$true] %s515
          %521 = dma.hbm_to_vmem [thread:$0]  %s12, 960, %s516, [#allocation9], 64, 64, 4
        $region60: #{lenet5_forward.1} parent=11 // pred_fallthru
          _
        // Predicated region
        $region61: #{lenet5_forward.1} parent=11 // pred_check
          %p522 = pneg %p333
        $region62: #{lenet5_forward.1} parent=11 // pred_check_branch
          %524 = sbr.rel (%p522) target = $region64
        $region63: #{lenet5_forward.1} parent=11 // pred_region
          %s526 = ssub.s32 16, 16
          %527 = vsyncadd [#allocation12], %s526
          %s529 = sshll.u32 [#allocation11], 4
          %s530 = int_to_ptr.vmem [resolvable:$true] %s529
          %532 = dma.hbm_to_vmem [thread:$0]  %s13, 16, %s530, [#allocation12]
        $region64: #{lenet5_forward.1} parent=11 // pred_fallthru
          _
        // Predicated region
        $region65: #{lenet5_forward.1} parent=11 // pred_check
          %p533 = pneg %p354
        $region66: #{lenet5_forward.1} parent=11 // pred_check_branch
          %535 = sbr.rel (%p533) target = $region68
        $region67: #{lenet5_forward.1} parent=11 // pred_region
          _
        $region68: #{lenet5_forward.1} parent=11 // pred_fallthru
          _
        // Predicated region
        $region69: #{lenet5_forward.1} parent=11 // pred_check
          %p536 = pneg %p375
        $region70: #{lenet5_forward.1} parent=11 // pred_check_branch
          %538 = sbr.rel (%p536) target = $region72
        $region71: #{lenet5_forward.1} parent=11 // pred_region
          _
        $region72: #{lenet5_forward.1} parent=11 // pred_fallthru
          _
      $region12: #{lenet5_forward.1} parent=5 // pred_fallthru
        _
      %p539 = scmp.lt.s32.totalorder %s34, 2
      // Predicated region
      $region73: #{lenet5_forward.1} parent=5 // pred_check
        %p540 = pneg %p539
      $region74: #{lenet5_forward.1} parent=5 // pred_check_branch
        %542 = sbr.rel (%p540) target = $region76
      $region75: #{lenet5_forward.1} parent=5 // pred_region
        // Predicated region
        $region77: #{lenet5_forward.1} parent=75 // pred_check
          %p543 = pneg %p54
        $region78: #{lenet5_forward.1} parent=75 // pred_check_branch
          %545 = sbr.rel (%p543) target = $region80
        $region79: #{lenet5_forward.1} parent=75 // pred_region
          %s546 = smul.u32 32, %s34
          %p547 = scmp.lt.s32.totalorder %s546, 63
          %s548 = scalar_select %p547, %s546, 63
          %s549 = smul.addr %s548, 4
          %s550 = scalar_lea.vmem %s0, %s549
          %s551 = smul.u32 32, %s34
        $region80: #{lenet5_forward.1} parent=75 // pred_fallthru
          _
      $region76: #{lenet5_forward.1} parent=5 // pred_fallthru
        _
      %p552 = scmp.le.s32.totalorder 1, %s34
      %p553 = scmp.lt.s32.totalorder %s34, 3
      %p554 = pnand %p552, %p553
      %p555 = pneg %p554
      // Predicated region
      $region81: #{lenet5_forward.1} parent=5 // pred_check
        _
      $region82: #{lenet5_forward.1} parent=5 // pred_check_branch
        %557 = sbr.rel (%p554) target = $region84
      $region83: #{lenet5_forward.1} parent=5 // pred_region
        %s558 = ssub.s32 %s34, 1
        // Predicated region
        $region85: #{lenet5_forward.1} parent=83 // pred_check
          %p559 = pneg %p102
        $region86: #{lenet5_forward.1} parent=83 // pred_check_branch
          %561 = sbr.rel (%p559) target = $region88
        $region87: #{lenet5_forward.1} parent=83 // pred_region
          %562 = dma.done [#allocation3], 32
        $region88: #{lenet5_forward.1} parent=83 // pred_fallthru
          _
        // Predicated region
        $region89: #{lenet5_forward.1} parent=83 // pred_check
          %p563 = pneg %p207
        $region90: #{lenet5_forward.1} parent=83 // pred_check_branch
          %565 = sbr.rel (%p563) target = $region92
        $region91: #{lenet5_forward.1} parent=83 // pred_region
          %566 = dma.done [#allocation6], 320
        $region92: #{lenet5_forward.1} parent=83 // pred_fallthru
          _
        // Predicated region
        $region93: #{lenet5_forward.1} parent=83 // pred_check
          %p567 = pneg %p270
        $region94: #{lenet5_forward.1} parent=83 // pred_check_branch
          %569 = sbr.rel (%p567) target = $region96
        $region95: #{lenet5_forward.1} parent=83 // pred_region
          %570 = dma.done [#allocation6], 16
        $region96: #{lenet5_forward.1} parent=83 // pred_fallthru
          _
        // Predicated region
        $region97: #{lenet5_forward.1} parent=83 // pred_check
          %p571 = pneg %p291
        $region98: #{lenet5_forward.1} parent=83 // pred_check_branch
          %573 = sbr.rel (%p571) target = $region100
        $region99: #{lenet5_forward.1} parent=83 // pred_region
          %574 = dma.done [#allocation9], 64
        $region100: #{lenet5_forward.1} parent=83 // pred_fallthru
          _
        // Predicated region
        $region101: #{lenet5_forward.1} parent=83 // pred_check
          %p575 = pneg %p312
        $region102: #{lenet5_forward.1} parent=83 // pred_check_branch
          %577 = sbr.rel (%p575) target = $region104
        $region103: #{lenet5_forward.1} parent=83 // pred_region
          %578 = dma.done [#allocation9], 960
        $region104: #{lenet5_forward.1} parent=83 // pred_fallthru
          _
        // Predicated region
        $region105: #{lenet5_forward.1} parent=83 // pred_check
          %p579 = pneg %p333
        $region106: #{lenet5_forward.1} parent=83 // pred_check_branch
          %581 = sbr.rel (%p579) target = $region108
        $region107: #{lenet5_forward.1} parent=83 // pred_region
          %582 = dma.done [#allocation12], 16
        $region108: #{lenet5_forward.1} parent=83 // pred_fallthru
          _
        %s583 = smul.u32 32, %s39
        %p584 = scmp.lt.s32.totalorder %s583, 63
        %s585 = scalar_select %p584, %s583, 63
        %s586 = smul.addr %s585, 4
        %s587 = scalar_lea.vmem %s0, %s586
        %p588 = pneg %p60
        %p589 = pneg %p57
        %p590 = pneg %p81
        %p591 = pneg %p78
        %p592 = pneg %p102
        %p593 = pneg %p99
        %p594 = pneg %p123
        %p595 = pneg %p120
        %p596 = pneg %p144
        %p597 = pneg %p141
        %p598 = pneg %p165
        %p599 = pneg %p162
        %p600 = pneg %p186
        %p601 = pneg %p183
        %p602 = pneg %p207
        %p603 = pneg %p204
        %p604 = pneg %p228
        %p605 = pneg %p225
        %p606 = pneg %p249
        %p607 = pneg %p246
        %p608 = pneg %p270
        %p609 = pneg %p267
        %p610 = pneg %p291
        %p611 = pneg %p288
        %p612 = pneg %p312
        %p613 = pneg %p309
        %p614 = pneg %p333
        %p615 = pneg %p330
        %p616 = pneg %p354
        %p617 = pneg %p351
        %p618 = pneg %p375
        %p619 = pneg %p372
        %p620 = pneg %p401
        %p621 = pneg %p398
        %s622 = sand.u32 %s388, 1
        %s623 = scalar_lea.sflag [#allocation4], %s622
        %s624 = sand.u32 %s388, 1
        %s625 = smul.addr %s624, 8
        %s626 = scalar_lea.vmem [#allocation13], %s625
        %p627 = pneg %p427
        %p628 = pneg %p424
        %s629 = sand.u32 %s414, 1
        %s630 = scalar_lea.sflag [#allocation15], %s629
        %s631 = sand.u32 %s414, 1
        %s632 = smul.addr %s631, 8
        %s633 = scalar_lea.vmem [#allocation14], %s632
        %s634 = smul.u32 32, %s39
        %p635 = scmp.lt.s32.totalorder %s634, 63
        %s636 = scalar_select %p635, %s634, 63
        %s637 = smul.addr %s636, 4
        %s638 = scalar_lea.vmem %s0, %s637
        %s639 = smul.u32 32, %s39
        %v641 = vld [vmem:[%s638] sm:$0xf]
        %v642 = vld [vmem:[%s638 + $0x4] sm:$0xf]
        %v643 = vld [vmem:[%s638 + $0x8] sm:$0xf]
        %v644 = vld [vmem:[%s638 + $0xc] sm:$0xf]
        %v645 = vld [vmem:[%s638 + $0x10] sm:$0xf]
        %v646 = vld [vmem:[%s638 + $0x14] sm:$0xf]
        %v647 = vld [vmem:[%s638 + $0x18] sm:$0xf]
        %v648 = vld [vmem:[%s638 + $0x1c] sm:$0xf]
        %v649 = vld [vmem:[%s638 + $0x20] sm:$0xf]
        %v650 = vld [vmem:[%s638 + $0x24] sm:$0xf]
        %v651 = vld [vmem:[%s638 + $0x28] sm:$0xf]
        %v652 = vld [vmem:[%s638 + $0x2c] sm:$0xf]
        %v653 = vld [vmem:[%s638 + $0x30] sm:$0xf]
        %v654 = vld [vmem:[%s638 + $0x34] sm:$0xf]
        %v655 = vld [vmem:[%s638 + $0x38] sm:$0xf]
        %v656 = vld [vmem:[%s638 + $0x3c] sm:$0xf]
        %v657 = vld [vmem:[%s638 + $0x40] sm:$0xf]
        %v658 = vld [vmem:[%s638 + $0x44] sm:$0xf]
        %v659 = vld [vmem:[%s638 + $0x48] sm:$0xf]
        %v660 = vld [vmem:[%s638 + $0x4c] sm:$0xf]
        %v661 = vld [vmem:[%s638 + $0x50] sm:$0xf]
        %v662 = vld [vmem:[%s638 + $0x54] sm:$0xf]
        %v663 = vld [vmem:[%s638 + $0x58] sm:$0xf]
        %v664 = vld [vmem:[%s638 + $0x5c] sm:$0xf]
        %v665 = vld [vmem:[%s638 + $0x60] sm:$0xf]
        %v666 = vld [vmem:[%s638 + $0x64] sm:$0xf]
        %v667 = vld [vmem:[%s638 + $0x68] sm:$0xf]
        %v668 = vld [vmem:[%s638 + $0x6c] sm:$0xf]
        %v669 = vld [vmem:[%s638 + $0x70] sm:$0xf]
        %v670 = vld [vmem:[%s638 + $0x74] sm:$0xf]
        %v671 = vld [vmem:[%s638 + $0x78] sm:$0xf]
        %v672 = vld [vmem:[%s638 + $0x7c] sm:$0xf]
        %v705 = vunpack.c.l.b16 %v641
        %v706 = vunpack.c.l.b16 %v642
        %v707 = vunpack.c.l.b16 %v643
        %v708 = vunpack.c.l.b16 %v644
        %v709 = vunpack.c.l.b16 %v645
        %v710 = vunpack.c.l.b16 %v646
        %v711 = vunpack.c.l.b16 %v647
        %v712 = vunpack.c.l.b16 %v648
        %v713 = vunpack.c.l.b16 %v649
        %v714 = vunpack.c.l.b16 %v650
        %v715 = vunpack.c.l.b16 %v651
        %v716 = vunpack.c.l.b16 %v652
        %v717 = vunpack.c.l.b16 %v653
        %v718 = vunpack.c.l.b16 %v654
        %v719 = vunpack.c.l.b16 %v655
        %v720 = vunpack.c.l.b16 %v656
        %v721 = vunpack.c.l.b16 %v657
        %v722 = vunpack.c.l.b16 %v658
        %v723 = vunpack.c.l.b16 %v659
        %v724 = vunpack.c.l.b16 %v660
        %v725 = vunpack.c.l.b16 %v661
        %v726 = vunpack.c.l.b16 %v662
        %v727 = vunpack.c.l.b16 %v663
        %v728 = vunpack.c.l.b16 %v664
        %v729 = vunpack.c.l.b16 %v665
        %v730 = vunpack.c.l.b16 %v666
        %v731 = vunpack.c.l.b16 %v667
        %v732 = vunpack.c.l.b16 %v668
        %v733 = vunpack.c.l.b16 %v669
        %v734 = vunpack.c.l.b16 %v670
        %v735 = vunpack.c.l.b16 %v671
        %v736 = vunpack.c.l.b16 %v672
        %v737 = vpack.c.b16 %v706, %v705
        %v738 = vpack.c.b16 %v708, %v707
        %v739 = vpack.c.b16 %v710, %v709
        %v740 = vpack.c.b16 %v712, %v711
        %v741 = vpack.c.b16 %v714, %v713
        %v742 = vpack.c.b16 %v716, %v715
        %v743 = vpack.c.b16 %v718, %v717
        %v744 = vpack.c.b16 %v720, %v719
        %v745 = vpack.c.b16 %v722, %v721
        %v746 = vpack.c.b16 %v724, %v723
        %v747 = vpack.c.b16 %v726, %v725
        %v748 = vpack.c.b16 %v728, %v727
        %v749 = vpack.c.b16 %v730, %v729
        %v750 = vpack.c.b16 %v732, %v731
        %v751 = vpack.c.b16 %v734, %v733
        %v752 = vpack.c.b16 %v736, %v735
        %vm753 = vsmask.f32 7424
        %v755 = vshrl.u32 %v737, 16
        %v757 = vshll.u32 %v737, 16
        %v759 = vrot.slane %v757, 1
        %v760 = vor.u32 %v755, %v759
        %v762 = vshll.u32 %v738, 16
        %v764 = vrot.slane %v762, 1
        %v765 = vsel %vm753, %v760, %v764
        %v766 = vshrl.u32 %v738, 16
        %v768 = vor.u32 %v766, %v764
        %v770 = vshll.u32 %v739, 16
        %v772 = vrot.slane %v770, 1
        %v773 = vsel %vm753, %v768, %v772
        %v774 = vshrl.u32 %v739, 16
        %v776 = vor.u32 %v774, %v772
        %v778 = vshll.u32 %v740, 16
        %v780 = vrot.slane %v778, 1
        %v781 = vsel %vm753, %v776, %v780
        %v782 = vshrl.u32 %v740, 16
        %v784 = vor.u32 %v782, %v780
        %v786 = vshll.u32 %v741, 16
        %v788 = vrot.slane %v786, 1
        %v789 = vsel %vm753, %v784, %v788
        %v790 = vshrl.u32 %v741, 16
        %v792 = vor.u32 %v790, %v788
        %v794 = vshll.u32 %v742, 16
        %v796 = vrot.slane %v794, 1
        %v797 = vsel %vm753, %v792, %v796
        %v798 = vshrl.u32 %v742, 16
        %v800 = vor.u32 %v798, %v796
        %v802 = vshll.u32 %v743, 16
        %v804 = vrot.slane %v802, 1
        %v805 = vsel %vm753, %v800, %v804
        %v806 = vshrl.u32 %v743, 16
        %v808 = vor.u32 %v806, %v804
        %v810 = vshll.u32 %v744, 16
        %v812 = vrot.slane %v810, 1
        %v813 = vsel %vm753, %v808, %v812
        %v814 = vshrl.u32 %v744, 16
        %v816 = vor.u32 %v814, %v812
        %v818 = vshll.u32 %v745, 16
        %v820 = vrot.slane %v818, 1
        %v821 = vsel %vm753, %v816, %v820
        %v822 = vshrl.u32 %v745, 16
        %v824 = vor.u32 %v822, %v820
        %v826 = vshll.u32 %v746, 16
        %v828 = vrot.slane %v826, 1
        %v829 = vsel %vm753, %v824, %v828
        %v830 = vshrl.u32 %v746, 16
        %v832 = vor.u32 %v830, %v828
        %v834 = vshll.u32 %v747, 16
        %v836 = vrot.slane %v834, 1
        %v837 = vsel %vm753, %v832, %v836
        %v838 = vshrl.u32 %v747, 16
        %v840 = vor.u32 %v838, %v836
        %v842 = vshll.u32 %v748, 16
        %v844 = vrot.slane %v842, 1
        %v845 = vsel %vm753, %v840, %v844
        %v846 = vshrl.u32 %v748, 16
        %v848 = vor.u32 %v846, %v844
        %v850 = vshll.u32 %v749, 16
        %v852 = vrot.slane %v850, 1
        %v853 = vsel %vm753, %v848, %v852
        %v854 = vshrl.u32 %v749, 16
        %v856 = vor.u32 %v854, %v852
        %v858 = vshll.u32 %v750, 16
        %v860 = vrot.slane %v858, 1
        %v861 = vsel %vm753, %v856, %v860
        %v862 = vshrl.u32 %v750, 16
        %v864 = vor.u32 %v862, %v860
        %v866 = vshll.u32 %v751, 16
        %v868 = vrot.slane %v866, 1
        %v869 = vsel %vm753, %v864, %v868
        %v870 = vshrl.u32 %v751, 16
        %v872 = vor.u32 %v870, %v868
        %v874 = vshll.u32 %v752, 16
        %v876 = vrot.slane %v874, 1
        %v877 = vsel %vm753, %v872, %v876
        %v878 = vshrl.u32 %v752, 16
        %v880 = vor.u32 %v878, %v876
        %881 = vrot.lane.b32.xlu0 %v765, 32
        %v882 = vpop.permute.xlu0 %881
        %883 = vrot.lane.b32.xlu0 %v773, 32
        %v884 = vpop.permute.xlu0 %883
        %885 = vrot.lane.b32.xlu0 %v781, 32
        %v886 = vpop.permute.xlu0 %885
        %887 = vrot.lane.b32.xlu0 %v789, 32
        %v888 = vpop.permute.xlu0 %887
        %889 = vrot.lane.b32.xlu0 %v797, 32
        %v890 = vpop.permute.xlu0 %889
        %891 = vrot.lane.b32.xlu0 %v805, 32
        %v892 = vpop.permute.xlu0 %891
        %893 = vrot.lane.b32.xlu0 %v813, 32
        %v894 = vpop.permute.xlu0 %893
        %895 = vrot.lane.b32.xlu0 %v821, 32
        %v896 = vpop.permute.xlu0 %895
        %897 = vrot.lane.b32.xlu0 %v829, 32
        %v898 = vpop.permute.xlu0 %897
        %899 = vrot.lane.b32.xlu0 %v837, 32
        %v900 = vpop.permute.xlu0 %899
        %901 = vrot.lane.b32.xlu0 %v845, 32
        %v902 = vpop.permute.xlu0 %901
        %903 = vrot.lane.b32.xlu0 %v853, 32
        %v904 = vpop.permute.xlu0 %903
        %905 = vrot.lane.b32.xlu0 %v861, 32
        %v906 = vpop.permute.xlu0 %905
        %907 = vrot.lane.b32.xlu0 %v869, 32
        %v908 = vpop.permute.xlu0 %907
        %909 = vrot.lane.b32.xlu0 %v877, 32
        %v910 = vpop.permute.xlu0 %909
        %911 = vrot.lane.b32.xlu0 %v880, 32
        %v912 = vpop.permute.xlu0 %911
        %vm913 = vcmask 1046528
        %v914 = vrot.slane %v737, 1
        %v915 = vrot.slane %v738, 1
        %v916 = vsel %vm913, %v914, %v915
        %v917 = vrot.slane %v739, 1
        %v918 = vsel %vm913, %v915, %v917
        %v919 = vrot.slane %v740, 1
        %v920 = vsel %vm913, %v917, %v919
        %v921 = vrot.slane %v741, 1
        %v922 = vsel %vm913, %v919, %v921
        %v923 = vrot.slane %v742, 1
        %v924 = vsel %vm913, %v921, %v923
        %v925 = vrot.slane %v743, 1
        %v926 = vsel %vm913, %v923, %v925
        %v927 = vrot.slane %v744, 1
        %v928 = vsel %vm913, %v925, %v927
        %v929 = vrot.slane %v745, 1
        %v930 = vsel %vm913, %v927, %v929
        %v931 = vrot.slane %v746, 1
        %v932 = vsel %vm913, %v929, %v931
        %v933 = vrot.slane %v747, 1
        %v934 = vsel %vm913, %v931, %v933
        %v935 = vrot.slane %v748, 1
        %v936 = vsel %vm913, %v933, %v935
        %v937 = vrot.slane %v749, 1
        %v938 = vsel %vm913, %v935, %v937
        %v939 = vrot.slane %v750, 1
        %v940 = vsel %vm913, %v937, %v939
        %v941 = vrot.slane %v751, 1
        %v942 = vsel %vm913, %v939, %v941
        %v943 = vrot.slane %v752, 1
        %v944 = vsel %vm913, %v941, %v943
        %945 = vrot.lane.b32.xlu0 %v916, 64
        %v946 = vpop.permute.xlu0 %945
        %947 = vrot.lane.b32.xlu0 %v918, 64
        %v948 = vpop.permute.xlu0 %947
        %949 = vrot.lane.b32.xlu0 %v920, 64
        %v950 = vpop.permute.xlu0 %949
        %951 = vrot.lane.b32.xlu0 %v922, 64
        %v952 = vpop.permute.xlu0 %951
        %953 = vrot.lane.b32.xlu0 %v924, 64
        %v954 = vpop.permute.xlu0 %953
        %955 = vrot.lane.b32.xlu0 %v926, 64
        %v956 = vpop.permute.xlu0 %955
        %957 = vrot.lane.b32.xlu0 %v928, 64
        %v958 = vpop.permute.xlu0 %957
        %959 = vrot.lane.b32.xlu0 %v930, 64
        %v960 = vpop.permute.xlu0 %959
        %961 = vrot.lane.b32.xlu0 %v932, 64
        %v962 = vpop.permute.xlu0 %961
        %963 = vrot.lane.b32.xlu0 %v934, 64
        %v964 = vpop.permute.xlu0 %963
        %965 = vrot.lane.b32.xlu0 %v936, 64
        %v966 = vpop.permute.xlu0 %965
        %967 = vrot.lane.b32.xlu0 %v938, 64
        %v968 = vpop.permute.xlu0 %967
        %969 = vrot.lane.b32.xlu0 %v940, 64
        %v970 = vpop.permute.xlu0 %969
        %971 = vrot.lane.b32.xlu0 %v942, 64
        %v972 = vpop.permute.xlu0 %971
        %973 = vrot.lane.b32.xlu0 %v944, 64
        %v974 = vpop.permute.xlu0 %973
        %975 = vrot.lane.b32.xlu0 %v943, 64
        %v976 = vpop.permute.xlu0 %975
        %vm977 = vsmask.f32 6400
        %v978 = vrot.slane %v755, 1
        %v979 = vrot.slane %v757, 2
        %v980 = vor.u32 %v978, %v979
        %v981 = vrot.slane %v766, 1
        %v982 = vrot.slane %v762, 2
        %v983 = vor.u32 %v981, %v982
        %v984 = vsel %vm977, %v980, %v983
        %v985 = vrot.slane %v774, 1
        %v986 = vrot.slane %v770, 2
        %v987 = vor.u32 %v985, %v986
        %v988 = vsel %vm977, %v983, %v987
        %v989 = vrot.slane %v782, 1
        %v990 = vrot.slane %v778, 2
        %v991 = vor.u32 %v989, %v990
        %v992 = vsel %vm977, %v987, %v991
        %v993 = vrot.slane %v790, 1
        %v994 = vrot.slane %v786, 2
        %v995 = vor.u32 %v993, %v994
        %v996 = vsel %vm977, %v991, %v995
        %v997 = vrot.slane %v798, 1
        %v998 = vrot.slane %v794, 2
        %v999 = vor.u32 %v997, %v998
        %v1000 = vsel %vm977, %v995, %v999
        %v1001 = vrot.slane %v806, 1
        %v1002 = vrot.slane %v802, 2
        %v1003 = vor.u32 %v1001, %v1002
        %v1004 = vsel %vm977, %v999, %v1003
        %v1005 = vrot.slane %v814, 1
        %v1006 = vrot.slane %v810, 2
        %v1007 = vor.u32 %v1005, %v1006
        %v1008 = vsel %vm977, %v1003, %v1007
        %v1009 = vrot.slane %v822, 1
        %v1010 = vrot.slane %v818, 2
        %v1011 = vor.u32 %v1009, %v1010
        %v1012 = vsel %vm977, %v1007, %v1011
        %v1013 = vrot.slane %v830, 1
        %v1014 = vrot.slane %v826, 2
        %v1015 = vor.u32 %v1013, %v1014
        %v1016 = vsel %vm977, %v1011, %v1015
        %v1017 = vrot.slane %v838, 1
        %v1018 = vrot.slane %v834, 2
        %v1019 = vor.u32 %v1017, %v1018
        %v1020 = vsel %vm977, %v1015, %v1019
        %v1021 = vrot.slane %v846, 1
        %v1022 = vrot.slane %v842, 2
        %v1023 = vor.u32 %v1021, %v1022
        %v1024 = vsel %vm977, %v1019, %v1023
        %v1025 = vrot.slane %v854, 1
        %v1026 = vrot.slane %v850, 2
        %v1027 = vor.u32 %v1025, %v1026
        %v1028 = vsel %vm977, %v1023, %v1027
        %v1029 = vrot.slane %v862, 1
        %v1030 = vrot.slane %v858, 2
        %v1031 = vor.u32 %v1029, %v1030
        %v1032 = vsel %vm977, %v1027, %v1031
        %v1033 = vrot.slane %v870, 1
        %v1034 = vrot.slane %v866, 2
        %v1035 = vor.u32 %v1033, %v1034
        %v1036 = vsel %vm977, %v1031, %v1035
        %v1037 = vrot.slane %v878, 1
        %v1038 = vrot.slane %v874, 2
        %v1039 = vor.u32 %v1037, %v1038
        %v1040 = vsel %vm977, %v1035, %v1039
        %1041 = vrot.lane.b32.xlu0 %v984, 96
        %v1042 = vpop.permute.xlu0 %1041
        %1043 = vrot.lane.b32.xlu0 %v988, 96
        %v1044 = vpop.permute.xlu0 %1043
        %1045 = vrot.lane.b32.xlu0 %v992, 96
        %v1046 = vpop.permute.xlu0 %1045
        %1047 = vrot.lane.b32.xlu0 %v996, 96
        %v1048 = vpop.permute.xlu0 %1047
        %1049 = vrot.lane.b32.xlu0 %v1000, 96
        %v1050 = vpop.permute.xlu0 %1049
        %1051 = vrot.lane.b32.xlu0 %v1004, 96
        %v1052 = vpop.permute.xlu0 %1051
        %1053 = vrot.lane.b32.xlu0 %v1008, 96
        %v1054 = vpop.permute.xlu0 %1053
        %1055 = vrot.lane.b32.xlu0 %v1012, 96
        %v1056 = vpop.permute.xlu0 %1055
        %1057 = vrot.lane.b32.xlu0 %v1016, 96
        %v1058 = vpop.permute.xlu0 %1057
        %1059 = vrot.lane.b32.xlu0 %v1020, 96
        %v1060 = vpop.permute.xlu0 %1059
        %1061 = vrot.lane.b32.xlu0 %v1024, 96
        %v1062 = vpop.permute.xlu0 %1061
        %1063 = vrot.lane.b32.xlu0 %v1028, 96
        %v1064 = vpop.permute.xlu0 %1063
        %1065 = vrot.lane.b32.xlu0 %v1032, 96
        %v1066 = vpop.permute.xlu0 %1065
        %1067 = vrot.lane.b32.xlu0 %v1036, 96
        %v1068 = vpop.permute.xlu0 %1067
        %1069 = vrot.lane.b32.xlu0 %v1040, 96
        %v1070 = vpop.permute.xlu0 %1069
        %1071 = vrot.lane.b32.xlu0 %v1039, 96
        %v1072 = vpop.permute.xlu0 %1071
        %vm1073 = vcmask 1045504
        %v1074 = vrot.slane %v737, 2
        %v1075 = vrot.slane %v738, 2
        %v1076 = vsel %vm1073, %v1074, %v1075
        %v1077 = vrot.slane %v739, 2
        %v1078 = vsel %vm1073, %v1075, %v1077
        %v1079 = vrot.slane %v740, 2
        %v1080 = vsel %vm1073, %v1077, %v1079
        %v1081 = vrot.slane %v741, 2
        %v1082 = vsel %vm1073, %v1079, %v1081
        %v1083 = vrot.slane %v742, 2
        %v1084 = vsel %vm1073, %v1081, %v1083
        %v1085 = vrot.slane %v743, 2
        %v1086 = vsel %vm1073, %v1083, %v1085
        %v1087 = vrot.slane %v744, 2
        %v1088 = vsel %vm1073, %v1085, %v1087
        %v1089 = vrot.slane %v745, 2
        %v1090 = vsel %vm1073, %v1087, %v1089
        %v1091 = vrot.slane %v746, 2
        %v1092 = vsel %vm1073, %v1089, %v1091
        %v1093 = vrot.slane %v747, 2
        %v1094 = vsel %vm1073, %v1091, %v1093
        %v1095 = vrot.slane %v748, 2
        %v1096 = vsel %vm1073, %v1093, %v1095
        %v1097 = vrot.slane %v749, 2
        %v1098 = vsel %vm1073, %v1095, %v1097
        %v1099 = vrot.slane %v750, 2
        %v1100 = vsel %vm1073, %v1097, %v1099
        %v1101 = vrot.slane %v751, 2
        %v1102 = vsel %vm1073, %v1099, %v1101
        %v1103 = vrot.slane %v752, 2
        %v1104 = vsel %vm1073, %v1101, %v1103
        %vm1105 = vcmask 261120
        %v1107 = vsel %vm1105, %v737, %v882
        %v1109 = vsel %vm1105, %v738, %v884
        %v1111 = vsel %vm1105, %v739, %v886
        %v1113 = vsel %vm1105, %v740, %v888
        %v1115 = vsel %vm1105, %v741, %v890
        %v1117 = vsel %vm1105, %v742, %v892
        %v1119 = vsel %vm1105, %v743, %v894
        %v1121 = vsel %vm1105, %v744, %v896
        %v1123 = vsel %vm1105, %v745, %v898
        %v1125 = vsel %vm1105, %v746, %v900
        %v1127 = vsel %vm1105, %v747, %v902
        %v1129 = vsel %vm1105, %v748, %v904
        %v1131 = vsel %vm1105, %v749, %v906
        %v1133 = vsel %vm1105, %v750, %v908
        %v1135 = vsel %vm1105, %v751, %v910
        %v1137 = vsel %vm1105, %v752, %v912
        %vm1138 = vcmask 523264
        %v1140 = vsel %vm1138, %v1107, %v946
        %v1142 = vsel %vm1138, %v1109, %v948
        %v1144 = vsel %vm1138, %v1111, %v950
        %v1146 = vsel %vm1138, %v1113, %v952
        %v1148 = vsel %vm1138, %v1115, %v954
        %v1150 = vsel %vm1138, %v1117, %v956
        %v1152 = vsel %vm1138, %v1119, %v958
        %v1154 = vsel %vm1138, %v1121, %v960
        %v1156 = vsel %vm1138, %v1123, %v962
        %v1158 = vsel %vm1138, %v1125, %v964
        %v1160 = vsel %vm1138, %v1127, %v966
        %v1162 = vsel %vm1138, %v1129, %v968
        %v1164 = vsel %vm1138, %v1131, %v970
        %v1166 = vsel %vm1138, %v1133, %v972
        %v1168 = vsel %vm1138, %v1135, %v974
        %v1170 = vsel %vm1138, %v1137, %v976
        %vm1171 = vcmask 785408
        %v1173 = vsel %vm1171, %v1140, %v1042
        %v1176 = vsel %vm1171, %v1142, %v1044
        %v1179 = vsel %vm1171, %v1144, %v1046
        %v1182 = vsel %vm1171, %v1146, %v1048
        %v1185 = vsel %vm1171, %v1148, %v1050
        %v1188 = vsel %vm1171, %v1150, %v1052
        %v1191 = vsel %vm1171, %v1152, %v1054
        %v1194 = vsel %vm1171, %v1154, %v1056
        %v1197 = vsel %vm1171, %v1156, %v1058
        %v1200 = vsel %vm1171, %v1158, %v1060
        %v1203 = vsel %vm1171, %v1160, %v1062
        %v1206 = vsel %vm1171, %v1162, %v1064
        %v1209 = vsel %vm1171, %v1164, %v1066
        %v1212 = vsel %vm1171, %v1166, %v1068
        %v1215 = vsel %vm1171, %v1168, %v1070
        %v1218 = vsel %vm1171, %v1170, %v1072
        %v1220 = vld [vmem:[%s1] sm:$0xff]
        %v1221 = vld [vmem:[%s1 + $0x8] sm:$0xff]
        %v1222 = vld [vmem:[%s1 + $0x10] sm:$0xff]
        %v1223 = vld [vmem:[%s1 + $0x18] sm:$0xff]
        %v1224 = vld [vmem:[%s1 + $0x20] sm:$0xff]
        %v1225 = vld [vmem:[%s1 + $0x28] sm:$0xff]
        %v1226 = vld [vmem:[%s1 + $0x30] sm:$0xff]
        %v1227 = vld [vmem:[%s1 + $0x38] sm:$0xff]
        %v1228 = vld [vmem:[%s1 + $0x40] sm:$0xff]
        %v1229 = vld [vmem:[%s1 + $0x48] sm:$0xff]
        %v1230 = vld [vmem:[%s1 + $0x50] sm:$0xff]
        %v1231 = vld [vmem:[%s1 + $0x58] sm:$0xff]
        %v1232 = vld [vmem:[%s1 + $0x60] sm:$0xff]
        %v1233 = vld [vmem:[%s1 + $0x68] sm:$0xff]
        %v1234 = vld [vmem:[%s1 + $0x70] sm:$0xff]
        %v1235 = vld [vmem:[%s1 + $0x78] sm:$0xff]
        %v1236 = vld [vmem:[%s1 + $0x80] sm:$0xff]
        %v1237 = vld [vmem:[%s1 + $0x88] sm:$0xff]
        %v1238 = vld [vmem:[%s1 + $0x90] sm:$0xff]
        %v1239 = vld [vmem:[%s1 + $0x98] sm:$0xff]
        %v1240 = vld [vmem:[#allocation2] sm:$0x3]
        %v1242 = vlaneseq
        %v1243 = vshrl.u32 %v1242, 7
        %v1244 = vsub.s32 0, %v1243
        %v1245 = vrot.slane %v1240, %v1244
        %v1246 = vlaneseq
        %v1247 = vshrl.u32 %v1246, 7
        %v1248 = vsub.s32 1, %v1247
        %v1249 = vrot.slane %v1240, %v1248
        %v1272 = vunpack.c.l.b16 %v1220
        %v1273 = vunpack.c.h.b16 %v1220
        %v1274 = vunpack.c.l.b16 %v1221
        %v1275 = vunpack.c.h.b16 %v1221
        %v1276 = vunpack.c.l.b16 %v1222
        %v1277 = vunpack.c.h.b16 %v1222
        %v1278 = vunpack.c.l.b16 %v1223
        %v1279 = vunpack.c.h.b16 %v1223
        %v1280 = vunpack.c.l.b16 %v1224
        %v1281 = vunpack.c.h.b16 %v1224
        %v1282 = vunpack.c.l.b16 %v1225
        %v1283 = vunpack.c.h.b16 %v1225
        %v1284 = vunpack.c.l.b16 %v1226
        %v1285 = vunpack.c.h.b16 %v1226
        %v1286 = vunpack.c.l.b16 %v1227
        %v1287 = vunpack.c.h.b16 %v1227
        %v1288 = vunpack.c.l.b16 %v1228
        %v1289 = vunpack.c.h.b16 %v1228
        %v1290 = vunpack.c.l.b16 %v1229
        %v1291 = vunpack.c.h.b16 %v1229
        %v1292 = vunpack.c.l.b16 %v1230
        %v1293 = vunpack.c.h.b16 %v1230
        %v1294 = vunpack.c.l.b16 %v1231
        %v1295 = vunpack.c.h.b16 %v1231
        %v1296 = vunpack.c.l.b16 %v1232
        %v1297 = vunpack.c.h.b16 %v1232
        %v1298 = vunpack.c.l.b16 %v1233
        %v1299 = vunpack.c.h.b16 %v1233
        %v1300 = vunpack.c.l.b16 %v1234
        %v1301 = vunpack.c.h.b16 %v1234
        %v1302 = vunpack.c.l.b16 %v1235
        %v1303 = vunpack.c.h.b16 %v1235
        %v1304 = vunpack.c.l.b16 %v1236
        %v1305 = vunpack.c.h.b16 %v1236
        %v1306 = vunpack.c.l.b16 %v1237
        %v1307 = vunpack.c.h.b16 %v1237
        %v1308 = vunpack.c.l.b16 %v1238
        %v1309 = vunpack.c.h.b16 %v1238
        %v1310 = vunpack.c.l.b16 %v1239
        %v1311 = vunpack.c.h.b16 %v1239
        %v1312 = vpack.c.b16 %v1274, %v1272
        %v1313 = vpack.c.b16 %v1275, %v1273
        %v1314 = vpack.c.b16 %v1278, %v1276
        %v1315 = vpack.c.b16 %v1279, %v1277
        %v1316 = vpack.c.b16 %v1282, %v1280
        %v1317 = vpack.c.b16 %v1283, %v1281
        %v1318 = vpack.c.b16 %v1286, %v1284
        %v1319 = vpack.c.b16 %v1287, %v1285
        %v1320 = vpack.c.b16 %v1290, %v1288
        %v1321 = vpack.c.b16 %v1291, %v1289
        %v1322 = vpack.c.b16 %v1294, %v1292
        %v1323 = vpack.c.b16 %v1295, %v1293
        %v1324 = vpack.c.b16 %v1298, %v1296
        %v1325 = vpack.c.b16 %v1299, %v1297
        %v1326 = vpack.c.b16 %v1302, %v1300
        %v1327 = vpack.c.b16 %v1303, %v1301
        %v1328 = vpack.c.b16 %v1306, %v1304
        %v1329 = vpack.c.b16 %v1307, %v1305
        %v1330 = vpack.c.b16 %v1310, %v1308
        %v1331 = vpack.c.b16 %v1311, %v1309
        %v1353 = vsel %vm1105, %v1076, 0
        %v1356 = vsel %vm1105, %v1078, 0
        %v1359 = vsel %vm1105, %v1080, 0
        %v1362 = vsel %vm1105, %v1082, 0
        %v1365 = vsel %vm1105, %v1084, 0
        %v1368 = vsel %vm1105, %v1086, 0
        %v1371 = vsel %vm1105, %v1088, 0
        %v1374 = vsel %vm1105, %v1090, 0
        %v1377 = vsel %vm1105, %v1092, 0
        %v1380 = vsel %vm1105, %v1094, 0
        %v1383 = vsel %vm1105, %v1096, 0
        %v1386 = vsel %vm1105, %v1098, 0
        %v1389 = vsel %vm1105, %v1100, 0
        %v1392 = vsel %vm1105, %v1102, 0
        %v1395 = vsel %vm1105, %v1104, 0
        %v1398 = vsel %vm1105, %v1103, 0
        %1400 = vmatprep.subr.bf16.mxu0 %v1313
        %1401 = vmatpush1.bf16.msra.mxu0 %v1312
        %1402 = vmatprep.subr.bf16.mxu0 %v1315
        %1403 = vmatpush1.bf16.msra.mxu0 %v1314
        %1404 = vmatprep.subr.bf16.mxu0 %v1317
        %1405 = vmatpush1.bf16.msra.mxu0 %v1316
        %1406 = vmatprep.subr.bf16.mxu0 %v1319
        %1407 = vmatpush1.bf16.msra.mxu0 %v1318
        %1408 = vmatprep.subr.bf16.mxu0 %v1321
        %1409 = vmatpush1.bf16.msra.mxu0 %v1320
        %1410 = vmatprep.subr.bf16.mxu0 %v1323
        %1411 = vmatpush1.bf16.msra.mxu0 %v1322
        %1412 = vmatprep.subr.bf16.mxu0 %v1325
        %1413 = vmatpush1.bf16.msra.mxu0 %v1324
        %1414 = vmatprep.subr.bf16.mxu0 %v1327
        %1415 = vmatpush1.bf16.msra.mxu0 %v1326
        %1416 = vmatprep.subr.bf16.mxu0 %v1329
        %1417 = vmatpush1.bf16.msra.mxu0 %v1328
        %1418 = vmatprep.subr.bf16.mxu0 %v1331
        %1419 = vmatpush1.bf16.msra.mxu0 %v1330
        %1420 = vmatprep.subr.bf16.mxu0 0
        %1421 = vmatpush1.bf16.msra.mxu0 0
        %1422 = vmatprep.subr.bf16.mxu0 0
        %1423 = vmatpush1.bf16.msra.mxu0 0
        %1424 = vmatprep.subr.bf16.mxu0 0
        %1425 = vmatpush1.bf16.msra.mxu0 0
        %1426 = vmatprep.subr.bf16.mxu0 0
        %1427 = vmatpush1.bf16.msra.mxu0 0
        %1428 = vmatprep.subr.bf16.mxu0 0
        %1429 = vmatpush1.bf16.msra.mxu0 0
        %1430 = vmatprep.subr.bf16.mxu0 0
        %1431 = vmatpush1.bf16.msra.mxu0 0
        %1432 = vmatprep.mubr.bf16.mxu0 %v1353
        %1433 = vmatmul.mubr.bf16.gmra.mrb[0].mxu0 %v1173
        %v1434 = vpop.f32.mrb[0].mxu0
        %v1435 = vadd.f32 %v1245, %v1434
        %v1436 = vpop.f32.mrb[0].mxu0
        %v1437 = vadd.f32 %v1249, %v1436
        %v1438 = vpop.f32.mrb[0].mxu0
        %v1439 = vadd.f32 %v1245, %v1438
        %v1440 = vpop.f32.mrb[0].mxu0
        %v1441 = vadd.f32 %v1249, %v1440
        %1442 = vmatprep.mubr.bf16.mxu0 %v1356
        %1443 = vmatmul.mubr.bf16.gmra.mrb[0].mxu0 %v1176
        %v1444 = vpop.f32.mrb[0].mxu0
        %v1445 = vadd.f32 %v1245, %v1444
        %v1446 = vpop.f32.mrb[0].mxu0
        %v1447 = vadd.f32 %v1249, %v1446
        %v1448 = vpop.f32.mrb[0].mxu0
        %v1449 = vadd.f32 %v1245, %v1448
        %v1450 = vpop.f32.mrb[0].mxu0
        %v1451 = vadd.f32 %v1249, %v1450
        %1452 = vmatprep.mubr.bf16.mxu0 %v1359
        %1453 = vmatmul.mubr.bf16.gmra.mrb[0].mxu0 %v1179
        %v1454 = vpop.f32.mrb[0].mxu0
        %v1455 = vadd.f32 %v1245, %v1454
        %v1456 = vpop.f32.mrb[0].mxu0
        %v1457 = vadd.f32 %v1249, %v1456
        %v1458 = vpop.f32.mrb[0].mxu0
        %v1459 = vadd.f32 %v1245, %v1458
        %v1460 = vpop.f32.mrb[0].mxu0
        %v1461 = vadd.f32 %v1249, %v1460
        %1462 = vmatprep.mubr.bf16.mxu0 %v1362
        %1463 = vmatmul.mubr.bf16.gmra.mrb[0].mxu0 %v1182
        %v1464 = vpop.f32.mrb[0].mxu0
        %v1465 = vadd.f32 %v1245, %v1464
        %v1466 = vpop.f32.mrb[0].mxu0
        %v1467 = vadd.f32 %v1249, %v1466
        %v1468 = vpop.f32.mrb[0].mxu0
        %v1469 = vadd.f32 %v1245, %v1468
        %v1470 = vpop.f32.mrb[0].mxu0
        %v1471 = vadd.f32 %v1249, %v1470
        %1472 = vmatprep.mubr.bf16.mxu0 %v1365
        %1473 = vmatmul.mubr.bf16.gmra.mrb[0].mxu0 %v1185
        %v1474 = vpop.f32.mrb[0].mxu0
        %v1475 = vadd.f32 %v1245, %v1474
        %v1476 = vpop.f32.mrb[0].mxu0
        %v1477 = vadd.f32 %v1249, %v1476
        %v1478 = vpop.f32.mrb[0].mxu0
        %v1479 = vadd.f32 %v1245, %v1478
        %v1480 = vpop.f32.mrb[0].mxu0
        %v1481 = vadd.f32 %v1249, %v1480
        %1482 = vmatprep.mubr.bf16.mxu0 %v1368
        %1483 = vmatmul.mubr.bf16.gmra.mrb[0].mxu0 %v1188
        %v1484 = vpop.f32.mrb[0].mxu0
        %v1485 = vadd.f32 %v1245, %v1484
        %v1486 = vpop.f32.mrb[0].mxu0
        %v1487 = vadd.f32 %v1249, %v1486
        %v1488 = vpop.f32.mrb[0].mxu0
        %v1489 = vadd.f32 %v1245, %v1488
        %v1490 = vpop.f32.mrb[0].mxu0
        %v1491 = vadd.f32 %v1249, %v1490
        %1492 = vmatprep.mubr.bf16.mxu0 %v1371
        %1493 = vmatmul.mubr.bf16.gmra.mrb[0].mxu0 %v1191
        %v1494 = vpop.f32.mrb[0].mxu0
        %v1495 = vadd.f32 %v1245, %v1494
        %v1496 = vpop.f32.mrb[0].mxu0
        %v1497 = vadd.f32 %v1249, %v1496
        %v1498 = vpop.f32.mrb[0].mxu0
        %v1499 = vadd.f32 %v1245, %v1498
        %v1500 = vpop.f32.mrb[0].mxu0
        %v1501 = vadd.f32 %v1249, %v1500
        %1502 = vmatprep.mubr.bf16.mxu0 %v1374
        %1503 = vmatmul.mubr.bf16.gmra.mrb[0].mxu0 %v1194
        %v1504 = vpop.f32.mrb[0].mxu0
        %v1505 = vadd.f32 %v1245, %v1504
        %v1506 = vpop.f32.mrb[0].mxu0
        %v1507 = vadd.f32 %v1249, %v1506
        %v1508 = vpop.f32.mrb[0].mxu0
        %v1509 = vadd.f32 %v1245, %v1508
        %v1510 = vpop.f32.mrb[0].mxu0
        %v1511 = vadd.f32 %v1249, %v1510
        %1512 = vmatprep.mubr.bf16.mxu0 %v1377
        %1513 = vmatmul.mubr.bf16.gmra.mrb[0].mxu0 %v1197
        %v1514 = vpop.f32.mrb[0].mxu0
        %v1515 = vadd.f32 %v1245, %v1514
        %v1516 = vpop.f32.mrb[0].mxu0
        %v1517 = vadd.f32 %v1249, %v1516
        %v1518 = vpop.f32.mrb[0].mxu0
        %v1519 = vadd.f32 %v1245, %v1518
        %v1520 = vpop.f32.mrb[0].mxu0
        %v1521 = vadd.f32 %v1249, %v1520
        %1522 = vmatprep.mubr.bf16.mxu0 %v1380
        %1523 = vmatmul.mubr.bf16.gmra.mrb[0].mxu0 %v1200
        %v1524 = vpop.f32.mrb[0].mxu0
        %v1525 = vadd.f32 %v1245, %v1524
        %v1526 = vpop.f32.mrb[0].mxu0
        %v1527 = vadd.f32 %v1249, %v1526
        %v1528 = vpop.f32.mrb[0].mxu0
        %v1529 = vadd.f32 %v1245, %v1528
        %v1530 = vpop.f32.mrb[0].mxu0
        %v1531 = vadd.f32 %v1249, %v1530
        %1532 = vmatprep.mubr.bf16.mxu0 %v1383
        %1533 = vmatmul.mubr.bf16.gmra.mrb[0].mxu0 %v1203
        %v1534 = vpop.f32.mrb[0].mxu0
        %v1535 = vadd.f32 %v1245, %v1534
        %v1536 = vpop.f32.mrb[0].mxu0
        %v1537 = vadd.f32 %v1249, %v1536
        %v1538 = vpop.f32.mrb[0].mxu0
        %v1539 = vadd.f32 %v1245, %v1538
        %v1540 = vpop.f32.mrb[0].mxu0
        %v1541 = vadd.f32 %v1249, %v1540
        %1542 = vmatprep.mubr.bf16.mxu0 %v1386
        %1543 = vmatmul.mubr.bf16.gmra.mrb[0].mxu0 %v1206
        %v1544 = vpop.f32.mrb[0].mxu0
        %v1545 = vadd.f32 %v1245, %v1544
        %v1546 = vpop.f32.mrb[0].mxu0
        %v1547 = vadd.f32 %v1249, %v1546
        %v1548 = vpop.f32.mrb[0].mxu0
        %v1549 = vadd.f32 %v1245, %v1548
        %v1550 = vpop.f32.mrb[0].mxu0
        %v1551 = vadd.f32 %v1249, %v1550
        %1552 = vmatprep.mubr.bf16.mxu0 %v1389
        %1553 = vmatmul.mubr.bf16.gmra.mrb[0].mxu0 %v1209
        %v1554 = vpop.f32.mrb[0].mxu0
        %v1555 = vadd.f32 %v1245, %v1554
        %v1556 = vpop.f32.mrb[0].mxu0
        %v1557 = vadd.f32 %v1249, %v1556
        %v1558 = vpop.f32.mrb[0].mxu0
        %v1559 = vadd.f32 %v1245, %v1558
        %v1560 = vpop.f32.mrb[0].mxu0
        %v1561 = vadd.f32 %v1249, %v1560
        %1562 = vmatprep.mubr.bf16.mxu0 %v1392
        %1563 = vmatmul.mubr.bf16.gmra.mrb[0].mxu0 %v1212
        %v1564 = vpop.f32.mrb[0].mxu0
        %v1565 = vadd.f32 %v1245, %v1564
        %v1566 = vpop.f32.mrb[0].mxu0
        %v1567 = vadd.f32 %v1249, %v1566
        %v1568 = vpop.f32.mrb[0].mxu0
        %v1569 = vadd.f32 %v1245, %v1568
        %v1570 = vpop.f32.mrb[0].mxu0
        %v1571 = vadd.f32 %v1249, %v1570
        %1572 = vmatprep.mubr.bf16.mxu0 %v1395
        %1573 = vmatmul.mubr.bf16.gmra.mrb[0].mxu0 %v1215
        %v1574 = vpop.f32.mrb[0].mxu0
        %v1575 = vadd.f32 %v1245, %v1574
        %v1576 = vpop.f32.mrb[0].mxu0
        %v1577 = vadd.f32 %v1249, %v1576
        %v1578 = vpop.f32.mrb[0].mxu0
        %v1579 = vadd.f32 %v1245, %v1578
        %v1580 = vpop.f32.mrb[0].mxu0
        %v1581 = vadd.f32 %v1249, %v1580
        %1582 = vmatprep.mubr.bf16.mxu0 %v1398
        %1583 = vmatmul.mubr.bf16.gmra.mrb[0].mxu0 %v1218
        %v1584 = vpop.f32.mrb[0].mxu0
        %v1585 = vadd.f32 %v1245, %v1584
        %v1586 = vpop.f32.mrb[0].mxu0
        %v1587 = vadd.f32 %v1249, %v1586
        %v1588 = vpop.f32.mrb[0].mxu0
        %v1589 = vadd.f32 %v1245, %v1588
        %v1590 = vpop.f32.mrb[0].mxu0
        %v1591 = vadd.f32 %v1249, %v1590
        %1592 = vdwg.mxu0
        %v1593 = vtanh.pop %v1435
        %v1594 = vtanh.pop %v1437
        %v1595 = vtanh.pop %v1439
        %v1596 = vtanh.pop %v1441
        %v1597 = vtanh.pop %v1445
        %v1598 = vtanh.pop %v1447
        %v1599 = vtanh.pop %v1449
        %v1600 = vtanh.pop %v1451
        %v1601 = vtanh.pop %v1455
        %v1602 = vtanh.pop %v1457
        %v1603 = vtanh.pop %v1459
        %v1604 = vtanh.pop %v1461
        %v1605 = vtanh.pop %v1465
        %v1606 = vtanh.pop %v1467
        %v1607 = vtanh.pop %v1469
        %v1608 = vtanh.pop %v1471
        %v1609 = vtanh.pop %v1475
        %v1610 = vtanh.pop %v1477
        %v1611 = vtanh.pop %v1479
        %v1612 = vtanh.pop %v1481
        %v1613 = vtanh.pop %v1485
        %v1614 = vtanh.pop %v1487
        %v1615 = vtanh.pop %v1489
        %v1616 = vtanh.pop %v1491
        %v1617 = vtanh.pop %v1495
        %v1618 = vtanh.pop %v1497
        %v1619 = vtanh.pop %v1499
        %v1620 = vtanh.pop %v1501
        %v1621 = vtanh.pop %v1505
        %v1622 = vtanh.pop %v1507
        %v1623 = vtanh.pop %v1509
        %v1624 = vtanh.pop %v1511
        %v1625 = vtanh.pop %v1515
        %v1626 = vtanh.pop %v1517
        %v1627 = vtanh.pop %v1519
        %v1628 = vtanh.pop %v1521
        %v1629 = vtanh.pop %v1525
        %v1630 = vtanh.pop %v1527
        %v1631 = vtanh.pop %v1529
        %v1632 = vtanh.pop %v1531
        %v1633 = vtanh.pop %v1535
        %v1634 = vtanh.pop %v1537
        %v1635 = vtanh.pop %v1539
        %v1636 = vtanh.pop %v1541
        %v1637 = vtanh.pop %v1545
        %v1638 = vtanh.pop %v1547
        %v1639 = vtanh.pop %v1549
        %v1640 = vtanh.pop %v1551
        %v1641 = vtanh.pop %v1555
        %v1642 = vtanh.pop %v1557
        %v1643 = vtanh.pop %v1559
        %v1644 = vtanh.pop %v1561
        %v1645 = vtanh.pop %v1565
        %v1646 = vtanh.pop %v1567
        %v1647 = vtanh.pop %v1569
        %v1648 = vtanh.pop %v1571
        %v1649 = vtanh.pop %v1575
        %v1650 = vtanh.pop %v1577
        %v1651 = vtanh.pop %v1579
        %v1652 = vtanh.pop %v1581
        %v1653 = vtanh.pop %v1585
        %v1654 = vtanh.pop %v1587
        %v1655 = vtanh.pop %v1589
        %v1656 = vtanh.pop %v1591
        %v1657 = vld [vmem:[%s3] sm:$0xff]
        %v1658 = vld [vmem:[%s3 + $0x8] sm:$0xff]
        %v1659 = vld [vmem:[%s3 + $0x10] sm:$0xff]
        %v1660 = vld [vmem:[%s3 + $0x18] sm:$0xff]
        %v1661 = vld [vmem:[%s3 + $0x20] sm:$0xff]
        %v1662 = vld [vmem:[%s3 + $0x28] sm:$0xff]
        %v1663 = vld [vmem:[%s3 + $0x30] sm:$0xff]
        %v1664 = vld [vmem:[%s3 + $0x38] sm:$0xff]
        %v1665 = vld [vmem:[%s3 + $0x40] sm:$0xff]
        %v1666 = vld [vmem:[%s3 + $0x48] sm:$0xff]
        %v1667 = vld [vmem:[%s3 + $0x50] sm:$0xff]
        %v1668 = vld [vmem:[%s3 + $0x58] sm:$0xff]
        %v1669 = vld [vmem:[%s3 + $0x60] sm:$0xff]
        %v1670 = vld [vmem:[%s3 + $0x68] sm:$0xff]
        %v1671 = vld [vmem:[%s4] sm:$0xf]
        %v1672 = vld [vmem:[%s4 + $0x4] sm:$0xf]
        %v1673 = vld [vmem:[%s4 + $0x8] sm:$0xf]
        %v1674 = vld [vmem:[%s4 + $0xc] sm:$0xf]
        %v1675 = vld [vmem:[%s4 + $0x10] sm:$0xf]
        %v1676 = vld [vmem:[%s4 + $0x14] sm:$0xf]
        %v1677 = vld [vmem:[%s4 + $0x18] sm:$0xf]
        %v1678 = vld [vmem:[%s4 + $0x1c] sm:$0xf]
        %v1679 = vld [vmem:[%s4 + $0x20] sm:$0xf]
        %v1680 = vld [vmem:[%s4 + $0x24] sm:$0xf]
        %v1681 = vld [vmem:[%s4 + $0x28] sm:$0xf]
        %v1682 = vld [vmem:[%s4 + $0x2c] sm:$0xf]
        %v1683 = vld [vmem:[%s4 + $0x30] sm:$0xf]
        %v1684 = vld [vmem:[%s4 + $0x34] sm:$0xf]
        %v1685 = vld [vmem:[%s4 + $0x38] sm:$0xf]
        %v1686 = vld [vmem:[%s4 + $0x3c] sm:$0xf]
        %v1687 = vld [vmem:[%s4 + $0x40] sm:$0xf]
        %v1688 = vld [vmem:[%s4 + $0x44] sm:$0xf]
        %v1689 = vld [vmem:[%s4 + $0x48] sm:$0xf]
        %v1690 = vld [vmem:[%s4 + $0x4c] sm:$0xf]
        %v1691 = vld [vmem:[%s4 + $0x50] sm:$0xf]
        %v1692 = vpack.c.bf16 %v1595, %v1593
        %v1693 = vpack.c.bf16 %v1596, %v1594
        %v1694 = vpack.c.bf16 %v1599, %v1597
        %v1695 = vpack.c.bf16 %v1600, %v1598
        %v1696 = vpack.c.bf16 %v1603, %v1601
        %v1697 = vpack.c.bf16 %v1604, %v1602
        %v1698 = vpack.c.bf16 %v1607, %v1605
        %v1699 = vpack.c.bf16 %v1608, %v1606
        %v1700 = vpack.c.bf16 %v1611, %v1609
        %v1701 = vpack.c.bf16 %v1612, %v1610
        %v1702 = vpack.c.bf16 %v1615, %v1613
        %v1703 = vpack.c.bf16 %v1616, %v1614
        %v1704 = vpack.c.bf16 %v1619, %v1617
        %v1705 = vpack.c.bf16 %v1620, %v1618
        %v1706 = vpack.c.bf16 %v1623, %v1621
        %v1707 = vpack.c.bf16 %v1624, %v1622
        %v1708 = vpack.c.bf16 %v1627, %v1625
        %v1709 = vpack.c.bf16 %v1628, %v1626
        %v1710 = vpack.c.bf16 %v1631, %v1629
        %v1711 = vpack.c.bf16 %v1632, %v1630
        %v1712 = vpack.c.bf16 %v1635, %v1633
        %v1713 = vpack.c.bf16 %v1636, %v1634
        %v1714 = vpack.c.bf16 %v1639, %v1637
        %v1715 = vpack.c.bf16 %v1640, %v1638
        %v1716 = vpack.c.bf16 %v1643, %v1641
        %v1717 = vpack.c.bf16 %v1644, %v1642
        %v1718 = vpack.c.bf16 %v1647, %v1645
        %v1719 = vpack.c.bf16 %v1648, %v1646
        %v1720 = vpack.c.bf16 %v1651, %v1649
        %v1721 = vpack.c.bf16 %v1652, %v1650
        %v1722 = vpack.c.bf16 %v1655, %v1653
        %v1723 = vpack.c.bf16 %v1656, %v1654
        %v1745 = vunpack.c.l.b16 %v1671
        %v1746 = vunpack.c.l.b16 %v1672
        %v1747 = vunpack.c.l.b16 %v1673
        %v1748 = vunpack.c.l.b16 %v1674
        %v1749 = vunpack.c.l.b16 %v1675
        %v1750 = vunpack.c.l.b16 %v1676
        %v1751 = vunpack.c.l.b16 %v1677
        %v1752 = vunpack.c.l.b16 %v1678
        %v1753 = vunpack.c.l.b16 %v1679
        %v1754 = vunpack.c.l.b16 %v1680
        %v1755 = vunpack.c.l.b16 %v1681
        %v1756 = vunpack.c.l.b16 %v1682
        %v1757 = vunpack.c.l.b16 %v1683
        %v1758 = vunpack.c.l.b16 %v1684
        %v1759 = vunpack.c.l.b16 %v1685
        %v1760 = vunpack.c.l.b16 %v1686
        %v1761 = vunpack.c.l.b16 %v1687
        %v1762 = vunpack.c.l.b16 %v1688
        %v1763 = vunpack.c.l.b16 %v1689
        %v1764 = vunpack.c.l.b16 %v1690
        %v1765 = vunpack.c.l.b16 %v1691
        %v1766 = vpack.c.b16 %v1746, %v1745
        %v1767 = vpack.c.b16 %v1748, %v1747
        %v1768 = vpack.c.b16 %v1750, %v1749
        %v1769 = vpack.c.b16 %v1752, %v1751
        %v1770 = vpack.c.b16 %v1754, %v1753
        %v1771 = vpack.c.b16 %v1756, %v1755
        %v1772 = vpack.c.b16 %v1758, %v1757
        %v1773 = vpack.c.b16 %v1760, %v1759
        %v1774 = vpack.c.b16 %v1762, %v1761
        %v1775 = vpack.c.b16 %v1764, %v1763
        %v1776 = vpack.c.b16 %v1765, %v1765
        %vm1787 = vcmask 326656
        %v1789 = vsel %vm1787, %v1693, 0
        %v1792 = vsel %vm1787, %v1695, 0
        %v1795 = vsel %vm1787, %v1697, 0
        %v1798 = vsel %vm1787, %v1699, 0
        %v1801 = vsel %vm1787, %v1701, 0
        %v1804 = vsel %vm1787, %v1703, 0
        %v1807 = vsel %vm1787, %v1705, 0
        %v1810 = vsel %vm1787, %v1707, 0
        %v1813 = vsel %vm1787, %v1709, 0
        %v1816 = vsel %vm1787, %v1711, 0
        %v1819 = vsel %vm1787, %v1713, 0
        %v1822 = vsel %vm1787, %v1715, 0
        %v1825 = vsel %vm1787, %v1717, 0
        %v1828 = vsel %vm1787, %v1719, 0
        %v1831 = vsel %vm1787, %v1721, 0
        %v1834 = vsel %vm1787, %v1723, 0
        %vm1836 = vcmask 1043456
        %v1838 = vsel %vm1836, %v1776, 0
        %1840 = vmatprep.subr.bf16.mxu0 0
        %1841 = vmatpush1.bf16.msra.mxu0 %v1766
        %1842 = vmatprep.subr.bf16.mxu0 0
        %1843 = vmatpush1.bf16.msra.mxu0 %v1767
        %1844 = vmatprep.subr.bf16.mxu0 0
        %1845 = vmatpush1.bf16.msra.mxu0 %v1768
        %1846 = vmatprep.subr.bf16.mxu0 0
        %1847 = vmatpush1.bf16.msra.mxu0 %v1769
        %1848 = vmatprep.subr.bf16.mxu0 0
        %1849 = vmatpush1.bf16.msra.mxu0 %v1770
        %1850 = vmatprep.subr.bf16.mxu0 0
        %1851 = vmatpush1.bf16.msra.mxu0 %v1771
        %1852 = vmatprep.subr.bf16.mxu0 0
        %1853 = vmatpush1.bf16.msra.mxu0 %v1772
        %1854 = vmatprep.subr.bf16.mxu0 0
        %1855 = vmatpush1.bf16.msra.mxu0 %v1773
        %1856 = vmatprep.subr.bf16.mxu0 0
        %1857 = vmatpush1.bf16.msra.mxu0 %v1774
        %1858 = vmatprep.subr.bf16.mxu0 0
        %1859 = vmatpush1.bf16.msra.mxu0 %v1775
        %1860 = vmatprep.subr.bf16.mxu0 0
        %1861 = vmatpush1.bf16.msra.mxu0 %v1838
        %1862 = vmatprep.subr.bf16.mxu0 0
        %1863 = vmatpush1.bf16.msra.mxu0 0
        %1864 = vmatprep.subr.bf16.mxu0 0
        %1865 = vmatpush1.bf16.msra.mxu0 0
        %1866 = vmatprep.subr.bf16.mxu0 0
        %1867 = vmatpush1.bf16.msra.mxu0 0
        %1868 = vmatprep.subr.bf16.mxu0 0
        %1869 = vmatpush1.bf16.msra.mxu0 0
        %1870 = vmatprep.subr.bf16.mxu0 0
        %1871 = vmatpush1.bf16.msra.mxu0 0
        %1872 = vmatprep.mubr.bf16.mxu0 %v1789
        %1873 = vmatmul.mubr.bf16.gmra.mrb[0].mxu0 %v1692
        %v1874 = vpop.f32.mrb[0].mxu0
        %v1875 = vadd.f32 0.0, %v1874
        %v1876 = vpop.f32.mrb[0].mxu0
        %v1877 = vpop.f32.mrb[0].mxu0
        %v1878 = vadd.f32 0.0, %v1877
        %v1879 = vpop.f32.mrb[0].mxu0
        %1880 = vmatprep.mubr.bf16.mxu0 %v1792
        %1881 = vmatmul.mubr.bf16.gmra.mrb[0].mxu0 %v1694
        %v1882 = vpop.f32.mrb[0].mxu0
        %v1883 = vadd.f32 0.0, %v1882
        %v1884 = vpop.f32.mrb[0].mxu0
        %v1885 = vpop.f32.mrb[0].mxu0
        %v1886 = vadd.f32 0.0, %v1885
        %v1887 = vpop.f32.mrb[0].mxu0
        %1888 = vmatprep.mubr.bf16.mxu0 %v1795
        %1889 = vmatmul.mubr.bf16.gmra.mrb[0].mxu0 %v1696
        %v1890 = vpop.f32.mrb[0].mxu0
        %v1891 = vadd.f32 0.0, %v1890
        %v1892 = vpop.f32.mrb[0].mxu0
        %v1893 = vpop.f32.mrb[0].mxu0
        %v1894 = vadd.f32 0.0, %v1893
        %v1895 = vpop.f32.mrb[0].mxu0
        %1896 = vmatprep.mubr.bf16.mxu0 %v1798
        %1897 = vmatmul.mubr.bf16.gmra.mrb[0].mxu0 %v1698
        %v1898 = vpop.f32.mrb[0].mxu0
        %v1899 = vadd.f32 0.0, %v1898
        %v1900 = vpop.f32.mrb[0].mxu0
        %v1901 = vpop.f32.mrb[0].mxu0
        %v1902 = vadd.f32 0.0, %v1901
        %v1903 = vpop.f32.mrb[0].mxu0
        %1904 = vmatprep.mubr.bf16.mxu0 %v1801
        %1905 = vmatmul.mubr.bf16.gmra.mrb[0].mxu0 %v1700
        %v1906 = vpop.f32.mrb[0].mxu0
        %v1907 = vadd.f32 0.0, %v1906
        %v1908 = vpop.f32.mrb[0].mxu0
        %v1909 = vpop.f32.mrb[0].mxu0
        %v1910 = vadd.f32 0.0, %v1909
        %v1911 = vpop.f32.mrb[0].mxu0
        %1912 = vmatprep.mubr.bf16.mxu0 %v1804
        %1913 = vmatmul.mubr.bf16.gmra.mrb[0].mxu0 %v1702
        %v1914 = vpop.f32.mrb[0].mxu0
        %v1915 = vadd.f32 0.0, %v1914
        %v1916 = vpop.f32.mrb[0].mxu0
        %v1917 = vpop.f32.mrb[0].mxu0
        %v1918 = vadd.f32 0.0, %v1917
        %v1919 = vpop.f32.mrb[0].mxu0
        %1920 = vmatprep.mubr.bf16.mxu0 %v1807
        %1921 = vmatmul.mubr.bf16.gmra.mrb[0].mxu0 %v1704
        %v1922 = vpop.f32.mrb[0].mxu0
        %v1923 = vadd.f32 0.0, %v1922
        %v1924 = vpop.f32.mrb[0].mxu0
        %v1925 = vpop.f32.mrb[0].mxu0
        %v1926 = vadd.f32 0.0, %v1925
        %v1927 = vpop.f32.mrb[0].mxu0
        %1928 = vmatprep.mubr.bf16.mxu0 %v1810
        %1929 = vmatmul.mubr.bf16.gmra.mrb[0].mxu0 %v1706
        %v1930 = vpop.f32.mrb[0].mxu0
        %v1931 = vadd.f32 0.0, %v1930
        %v1932 = vpop.f32.mrb[0].mxu0
        %v1933 = vpop.f32.mrb[0].mxu0
        %v1934 = vadd.f32 0.0, %v1933
        %v1935 = vpop.f32.mrb[0].mxu0
        %1936 = vmatprep.mubr.bf16.mxu0 %v1813
        %1937 = vmatmul.mubr.bf16.gmra.mrb[0].mxu0 %v1708
        %v1938 = vpop.f32.mrb[0].mxu0
        %v1939 = vadd.f32 0.0, %v1938
        %v1940 = vpop.f32.mrb[0].mxu0
        %v1941 = vpop.f32.mrb[0].mxu0
        %v1942 = vadd.f32 0.0, %v1941
        %v1943 = vpop.f32.mrb[0].mxu0
        %1944 = vmatprep.mubr.bf16.mxu0 %v1816
        %1945 = vmatmul.mubr.bf16.gmra.mrb[0].mxu0 %v1710
        %v1946 = vpop.f32.mrb[0].mxu0
        %v1947 = vadd.f32 0.0, %v1946
        %v1948 = vpop.f32.mrb[0].mxu0
        %v1949 = vpop.f32.mrb[0].mxu0
        %v1950 = vadd.f32 0.0, %v1949
        %v1951 = vpop.f32.mrb[0].mxu0
        %1952 = vmatprep.mubr.bf16.mxu0 %v1819
        %1953 = vmatmul.mubr.bf16.gmra.mrb[0].mxu0 %v1712
        %v1954 = vpop.f32.mrb[0].mxu0
        %v1955 = vadd.f32 0.0, %v1954
        %v1956 = vpop.f32.mrb[0].mxu0
        %v1957 = vpop.f32.mrb[0].mxu0
        %v1958 = vadd.f32 0.0, %v1957
        %v1959 = vpop.f32.mrb[0].mxu0
        %1960 = vmatprep.mubr.bf16.mxu0 %v1822
        %1961 = vmatmul.mubr.bf16.gmra.mrb[0].mxu0 %v1714
        %v1962 = vpop.f32.mrb[0].mxu0
        %v1963 = vadd.f32 0.0, %v1962
        %v1964 = vpop.f32.mrb[0].mxu0
        %v1965 = vpop.f32.mrb[0].mxu0
        %v1966 = vadd.f32 0.0, %v1965
        %v1967 = vpop.f32.mrb[0].mxu0
        %1968 = vmatprep.mubr.bf16.mxu0 %v1825
        %1969 = vmatmul.mubr.bf16.gmra.mrb[0].mxu0 %v1716
        %v1970 = vpop.f32.mrb[0].mxu0
        %v1971 = vadd.f32 0.0, %v1970
        %v1972 = vpop.f32.mrb[0].mxu0
        %v1973 = vpop.f32.mrb[0].mxu0
        %v1974 = vadd.f32 0.0, %v1973
        %v1975 = vpop.f32.mrb[0].mxu0
        %1976 = vmatprep.mubr.bf16.mxu0 %v1828
        %1977 = vmatmul.mubr.bf16.gmra.mrb[0].mxu0 %v1718
        %v1978 = vpop.f32.mrb[0].mxu0
        %v1979 = vadd.f32 0.0, %v1978
        %v1980 = vpop.f32.mrb[0].mxu0
        %v1981 = vpop.f32.mrb[0].mxu0
        %v1982 = vadd.f32 0.0, %v1981
        %v1983 = vpop.f32.mrb[0].mxu0
        %1984 = vmatprep.mubr.bf16.mxu0 %v1831
        %1985 = vmatmul.mubr.bf16.gmra.mrb[0].mxu0 %v1720
        %v1986 = vpop.f32.mrb[0].mxu0
        %v1987 = vadd.f32 0.0, %v1986
        %v1988 = vpop.f32.mrb[0].mxu0
        %v1989 = vpop.f32.mrb[0].mxu0
        %v1990 = vadd.f32 0.0, %v1989
        %v1991 = vpop.f32.mrb[0].mxu0
        %1992 = vmatprep.mubr.bf16.mxu0 %v1834
        %1993 = vmatmul.mubr.bf16.gmra.mrb[0].mxu0 %v1722
        %v1994 = vpop.f32.mrb[0].mxu0
        %v1995 = vadd.f32 0.0, %v1994
        %v1996 = vpop.f32.mrb[0].mxu0
        %v1997 = vpop.f32.mrb[0].mxu0
        %v1998 = vadd.f32 0.0, %v1997
        %v1999 = vpop.f32.mrb[0].mxu0
        %2000 = vdwg.mxu0
        %v2001 = vpack.c.bf16 %v1878, %v1875
        %v2002 = vpack.c.bf16 %v1886, %v1883
        %v2003 = vpack.c.bf16 %v1894, %v1891
        %v2004 = vpack.c.bf16 %v1902, %v1899
        %v2005 = vpack.c.bf16 %v1910, %v1907
        %v2006 = vpack.c.bf16 %v1918, %v1915
        %v2007 = vpack.c.bf16 %v1926, %v1923
        %v2008 = vpack.c.bf16 %v1934, %v1931
        %v2009 = vpack.c.bf16 %v1942, %v1939
        %v2010 = vpack.c.bf16 %v1950, %v1947
        %v2011 = vpack.c.bf16 %v1958, %v1955
        %v2012 = vpack.c.bf16 %v1966, %v1963
        %v2013 = vpack.c.bf16 %v1974, %v1971
        %v2014 = vpack.c.bf16 %v1982, %v1979
        %v2015 = vpack.c.bf16 %v1990, %v1987
        %v2016 = vpack.c.bf16 %v1998, %v1995
        %v2031 = vunpack.c.l.b16 %v1657
        %v2032 = vunpack.c.h.b16 %v1657
        %v2033 = vunpack.c.l.b16 %v1658
        %v2034 = vunpack.c.h.b16 %v1658
        %v2035 = vunpack.c.l.b16 %v1659
        %v2036 = vunpack.c.h.b16 %v1659
        %v2037 = vunpack.c.l.b16 %v1660
        %v2038 = vunpack.c.h.b16 %v1660
        %v2039 = vunpack.c.l.b16 %v1661
        %v2040 = vunpack.c.h.b16 %v1661
        %v2041 = vunpack.c.l.b16 %v1662
        %v2042 = vunpack.c.h.b16 %v1662
        %v2043 = vunpack.c.l.b16 %v1663
        %v2044 = vunpack.c.h.b16 %v1663
        %v2045 = vunpack.c.l.b16 %v1664
        %v2046 = vunpack.c.h.b16 %v1664
        %v2047 = vunpack.c.l.b16 %v1665
        %v2048 = vunpack.c.h.b16 %v1665
        %v2049 = vunpack.c.l.b16 %v1666
        %v2050 = vunpack.c.h.b16 %v1666
        %v2051 = vunpack.c.l.b16 %v1667
        %v2052 = vunpack.c.h.b16 %v1667
        %v2053 = vunpack.c.l.b16 %v1668
        %v2054 = vunpack.c.h.b16 %v1668
        %v2055 = vunpack.c.l.b16 %v1669
        %v2056 = vunpack.c.h.b16 %v1669
        %v2057 = vunpack.c.l.b16 %v1670
        %v2058 = vunpack.c.h.b16 %v1670
        %v2059 = vpack.c.b16 %v2033, %v2031
        %v2060 = vpack.c.b16 %v2034, %v2032
        %v2061 = vpack.c.b16 %v2037, %v2035
        %v2062 = vpack.c.b16 %v2038, %v2036
        %v2063 = vpack.c.b16 %v2041, %v2039
        %v2064 = vpack.c.b16 %v2042, %v2040
        %v2065 = vpack.c.b16 %v2045, %v2043
        %v2066 = vpack.c.b16 %v2046, %v2044
        %v2067 = vpack.c.b16 %v2049, %v2047
        %v2068 = vpack.c.b16 %v2050, %v2048
        %v2069 = vpack.c.b16 %v2053, %v2051
        %v2070 = vpack.c.b16 %v2054, %v2052
        %v2071 = vpack.c.b16 %v2057, %v2055
        %v2072 = vpack.c.b16 %v2058, %v2056
        %vm2080 = vcmask 1014784
        %v2082 = vsel %vm2080, %v2060, 0
        %v2085 = vsel %vm2080, %v2062, 0
        %v2088 = vsel %vm2080, %v2064, 0
        %v2091 = vsel %vm2080, %v2066, 0
        %v2094 = vsel %vm2080, %v2068, 0
        %v2097 = vsel %vm2080, %v2070, 0
        %v2100 = vsel %vm2080, %v2072, 0
        %vm2102 = vcmask 1045504
        %v2104 = vsel %vm2102, %v2016, 0
        %2106 = vmatprep.subr.bf16.mxu0 0
        %2107 = vmatpush1.bf16.msra.mxu0 %v2001
        %2108 = vmatprep.subr.bf16.mxu0 0
        %2109 = vmatpush1.bf16.msra.mxu0 %v2002
        %2110 = vmatprep.subr.bf16.mxu0 0
        %2111 = vmatpush1.bf16.msra.mxu0 %v2003
        %2112 = vmatprep.subr.bf16.mxu0 0
        %2113 = vmatpush1.bf16.msra.mxu0 %v2004
        %2114 = vmatprep.subr.bf16.mxu0 0
        %2115 = vmatpush1.bf16.msra.mxu0 %v2005
        %2116 = vmatprep.subr.bf16.mxu0 0
        %2117 = vmatpush1.bf16.msra.mxu0 %v2006
        %2118 = vmatprep.subr.bf16.mxu0 0
        %2119 = vmatpush1.bf16.msra.mxu0 %v2007
        %2120 = vmatprep.subr.bf16.mxu0 0
        %2121 = vmatpush1.bf16.msra.mxu0 %v2008
        %2122 = vmatprep.subr.bf16.mxu0 0
        %2123 = vmatpush1.bf16.msra.mxu0 %v2009
        %2124 = vmatprep.subr.bf16.mxu0 0
        %2125 = vmatpush1.bf16.msra.mxu0 %v2010
        %2126 = vmatprep.subr.bf16.mxu0 0
        %2127 = vmatpush1.bf16.msra.mxu0 %v2011
        %2128 = vmatprep.subr.bf16.mxu0 0
        %2129 = vmatpush1.bf16.msra.mxu0 %v2012
        %2130 = vmatprep.subr.bf16.mxu0 0
        %2131 = vmatpush1.bf16.msra.mxu0 %v2013
        %2132 = vmatprep.subr.bf16.mxu0 0
        %2133 = vmatpush1.bf16.msra.mxu0 %v2014
        %2134 = vmatprep.subr.bf16.mxu0 0
        %2135 = vmatpush1.bf16.msra.mxu0 %v2015
        %2136 = vmatprep.subr.bf16.mxu0 0
        %2137 = vmatpush1.bf16.msra.mxu0 %v2104
        %2138 = vmatprep.mubr.bf16.mxu0 %v2082
        %2139 = vmatmul.mubr.bf16.gmra.mrb[0].mxu0 %v2059
        %v2140 = vpop.f32.mrb[0].mxu0
        %v2141 = vadd.f32 0.0, %v2140
        %v2142 = vpop.f32.mrb[0].mxu0
        %v2143 = vpop.f32.mrb[0].mxu0
        %v2144 = vadd.f32 0.0, %v2143
        %v2145 = vpop.f32.mrb[0].mxu0
        %2146 = vmatprep.mubr.bf16.mxu0 %v2085
        %2147 = vmatmul.mubr.bf16.gmra.mrb[0].mxu0 %v2061
        %v2148 = vpop.f32.mrb[0].mxu0
        %v2149 = vadd.f32 0.0, %v2148
        %v2150 = vpop.f32.mrb[0].mxu0
        %v2151 = vpop.f32.mrb[0].mxu0
        %v2152 = vadd.f32 0.0, %v2151
        %v2153 = vpop.f32.mrb[0].mxu0
        %2154 = vmatprep.mubr.bf16.mxu0 %v2088
        %2155 = vmatmul.mubr.bf16.gmra.mrb[0].mxu0 %v2063
        %v2156 = vpop.f32.mrb[0].mxu0
        %v2157 = vadd.f32 0.0, %v2156
        %v2158 = vpop.f32.mrb[0].mxu0
        %v2159 = vpop.f32.mrb[0].mxu0
        %v2160 = vadd.f32 0.0, %v2159
        %v2161 = vpop.f32.mrb[0].mxu0
        %2162 = vmatprep.mubr.bf16.mxu0 %v2091
        %2163 = vmatmul.mubr.bf16.gmra.mrb[0].mxu0 %v2065
        %v2164 = vpop.f32.mrb[0].mxu0
        %v2165 = vadd.f32 0.0, %v2164
        %v2166 = vpop.f32.mrb[0].mxu0
        %v2167 = vpop.f32.mrb[0].mxu0
        %v2168 = vadd.f32 0.0, %v2167
        %v2169 = vpop.f32.mrb[0].mxu0
        %2170 = vmatprep.mubr.bf16.mxu0 %v2094
        %2171 = vmatmul.mubr.bf16.gmra.mrb[0].mxu0 %v2067
        %v2172 = vpop.f32.mrb[0].mxu0
        %v2173 = vadd.f32 0.0, %v2172
        %v2174 = vpop.f32.mrb[0].mxu0
        %v2175 = vpop.f32.mrb[0].mxu0
        %v2176 = vadd.f32 0.0, %v2175
        %v2177 = vpop.f32.mrb[0].mxu0
        %2178 = vmatprep.mubr.bf16.mxu0 %v2097
        %2179 = vmatmul.mubr.bf16.gmra.mrb[0].mxu0 %v2069
        %v2180 = vpop.f32.mrb[0].mxu0
        %v2181 = vadd.f32 0.0, %v2180
        %v2182 = vpop.f32.mrb[0].mxu0
        %v2183 = vpop.f32.mrb[0].mxu0
        %v2184 = vadd.f32 0.0, %v2183
        %v2185 = vpop.f32.mrb[0].mxu0
        %2186 = vmatprep.mubr.bf16.mxu0 %v2100
        %2187 = vmatmul.mubr.bf16.gmra.mrb[0].mxu0 %v2071
        %v2188 = vpop.f32.mrb[0].mxu0
        %v2189 = vadd.f32 0.0, %v2188
        %v2190 = vpop.f32.mrb[0].mxu0
        %v2191 = vpop.f32.mrb[0].mxu0
        %v2192 = vadd.f32 0.0, %v2191
        %v2193 = vpop.f32.mrb[0].mxu0
        %2194 = vdwg.mxu0
        %v2195 = vpack.c.bf16 %v2144, %v2141
        %v2196 = vpack.c.bf16 %v2152, %v2149
        %v2197 = vpack.c.bf16 %v2160, %v2157
        %v2198 = vpack.c.bf16 %v2168, %v2165
        %v2199 = vpack.c.bf16 %v2176, %v2173
        %v2200 = vpack.c.bf16 %v2184, %v2181
        %v2201 = vpack.c.bf16 %v2192, %v2189
        %v2203 = vshrl.u32 %v2195, 16
        %v2205 = vshll.u32 %v2195, 16
        %v2207 = vrot.slane %v2205, 1
        %v2208 = vor.u32 %v2203, %v2207
        %v2210 = vshll.u32 %v2196, 16
        %v2212 = vrot.slane %v2210, 1
        %v2213 = vsel %vm753, %v2208, %v2212
        %v2214 = vshrl.u32 %v2196, 16
        %v2216 = vor.u32 %v2214, %v2212
        %v2218 = vshll.u32 %v2197, 16
        %v2220 = vrot.slane %v2218, 1
        %v2221 = vsel %vm753, %v2216, %v2220
        %v2222 = vshrl.u32 %v2197, 16
        %v2224 = vor.u32 %v2222, %v2220
        %v2226 = vshll.u32 %v2198, 16
        %v2228 = vrot.slane %v2226, 1
        %v2229 = vsel %vm753, %v2224, %v2228
        %v2230 = vshrl.u32 %v2198, 16
        %v2232 = vor.u32 %v2230, %v2228
        %v2234 = vshll.u32 %v2199, 16
        %v2236 = vrot.slane %v2234, 1
        %v2237 = vsel %vm753, %v2232, %v2236
        %v2238 = vshrl.u32 %v2199, 16
        %v2240 = vor.u32 %v2238, %v2236
        %v2242 = vshll.u32 %v2200, 16
        %v2244 = vrot.slane %v2242, 1
        %v2245 = vsel %vm753, %v2240, %v2244
        %v2246 = vshrl.u32 %v2200, 16
        %v2248 = vor.u32 %v2246, %v2244
        %v2250 = vshll.u32 %v2201, 16
        %v2252 = vrot.slane %v2250, 1
        %v2253 = vsel %vm753, %v2248, %v2252
        %v2254 = vshrl.u32 %v2201, 16
        %v2256 = vor.u32 %v2254, %v2252
        %2257 = vrot.lane.b32.xlu0 %v2213, 84
        %v2258 = vpop.permute.xlu0 %2257
        %2259 = vrot.lane.b32.xlu0 %v2221, 84
        %v2260 = vpop.permute.xlu0 %2259
        %2261 = vrot.lane.b32.xlu0 %v2229, 84
        %v2262 = vpop.permute.xlu0 %2261
        %2263 = vrot.lane.b32.xlu0 %v2237, 84
        %v2264 = vpop.permute.xlu0 %2263
        %2265 = vrot.lane.b32.xlu0 %v2245, 84
        %v2266 = vpop.permute.xlu0 %2265
        %2267 = vrot.lane.b32.xlu0 %v2253, 84
        %v2268 = vpop.permute.xlu0 %2267
        %2269 = vrot.lane.b32.xlu0 %v2256, 84
        %v2270 = vpop.permute.xlu0 %2269
        %v2278 = vrot.slane %v2195, 1
        %v2279 = vrot.slane %v2196, 1
        %v2280 = vsel %vm913, %v2278, %v2279
        %v2281 = vrot.slane %v2197, 1
        %v2282 = vsel %vm913, %v2279, %v2281
        %v2283 = vrot.slane %v2198, 1
        %v2284 = vsel %vm913, %v2281, %v2283
        %v2285 = vrot.slane %v2199, 1
        %v2286 = vsel %vm913, %v2283, %v2285
        %v2287 = vrot.slane %v2200, 1
        %v2288 = vsel %vm913, %v2285, %v2287
        %v2289 = vrot.slane %v2201, 1
        %v2290 = vsel %vm913, %v2287, %v2289
        %2291 = vrot.lane.b32.xlu0 %v2280, 40
        %v2292 = vpop.permute.xlu0 %2291
        %2293 = vrot.lane.b32.xlu0 %v2282, 40
        %v2294 = vpop.permute.xlu0 %2293
        %2295 = vrot.lane.b32.xlu0 %v2284, 40
        %v2296 = vpop.permute.xlu0 %2295
        %2297 = vrot.lane.b32.xlu0 %v2286, 40
        %v2298 = vpop.permute.xlu0 %2297
        %2299 = vrot.lane.b32.xlu0 %v2288, 40
        %v2300 = vpop.permute.xlu0 %2299
        %2301 = vrot.lane.b32.xlu0 %v2290, 40
        %v2302 = vpop.permute.xlu0 %2301
        %2303 = vrot.lane.b32.xlu0 %v2289, 40
        %v2304 = vpop.permute.xlu0 %2303
        %v2305 = vrot.slane %v2203, 1
        %v2306 = vrot.slane %v2205, 2
        %v2307 = vor.u32 %v2305, %v2306
        %v2308 = vrot.slane %v2214, 1
        %v2309 = vrot.slane %v2210, 2
        %v2310 = vor.u32 %v2308, %v2309
        %v2311 = vsel %vm977, %v2307, %v2310
        %v2312 = vrot.slane %v2222, 1
        %v2313 = vrot.slane %v2218, 2
        %v2314 = vor.u32 %v2312, %v2313
        %v2315 = vsel %vm977, %v2310, %v2314
        %v2316 = vrot.slane %v2230, 1
        %v2317 = vrot.slane %v2226, 2
        %v2318 = vor.u32 %v2316, %v2317
        %v2319 = vsel %vm977, %v2314, %v2318
        %v2320 = vrot.slane %v2238, 1
        %v2321 = vrot.slane %v2234, 2
        %v2322 = vor.u32 %v2320, %v2321
        %v2323 = vsel %vm977, %v2318, %v2322
        %v2324 = vrot.slane %v2246, 1
        %v2325 = vrot.slane %v2242, 2
        %v2326 = vor.u32 %v2324, %v2325
        %v2327 = vsel %vm977, %v2322, %v2326
        %v2328 = vrot.slane %v2254, 1
        %v2329 = vrot.slane %v2250, 2
        %v2330 = vor.u32 %v2328, %v2329
        %v2331 = vsel %vm977, %v2326, %v2330
        %2332 = vrot.lane.b32.xlu0 %v2311, 124
        %v2333 = vpop.permute.xlu0 %2332
        %2334 = vrot.lane.b32.xlu0 %v2315, 124
        %v2335 = vpop.permute.xlu0 %2334
        %2336 = vrot.lane.b32.xlu0 %v2319, 124
        %v2337 = vpop.permute.xlu0 %2336
        %2338 = vrot.lane.b32.xlu0 %v2323, 124
        %v2339 = vpop.permute.xlu0 %2338
        %2340 = vrot.lane.b32.xlu0 %v2327, 124
        %v2341 = vpop.permute.xlu0 %2340
        %2342 = vrot.lane.b32.xlu0 %v2331, 124
        %v2343 = vpop.permute.xlu0 %2342
        %2344 = vrot.lane.b32.xlu0 %v2330, 124
        %v2345 = vpop.permute.xlu0 %2344
        %v2346 = vrot.slane %v2195, 2
        %v2347 = vrot.slane %v2196, 2
        %v2348 = vsel %vm1073, %v2346, %v2347
        %v2349 = vrot.slane %v2197, 2
        %v2350 = vsel %vm1073, %v2347, %v2349
        %v2351 = vrot.slane %v2198, 2
        %v2352 = vsel %vm1073, %v2349, %v2351
        %v2353 = vrot.slane %v2199, 2
        %v2354 = vsel %vm1073, %v2351, %v2353
        %v2355 = vrot.slane %v2200, 2
        %v2356 = vsel %vm1073, %v2353, %v2355
        %v2357 = vrot.slane %v2201, 2
        %v2358 = vsel %vm1073, %v2355, %v2357
        %2359 = vrot.lane.b32.xlu0 %v2348, 80
        %v2360 = vpop.permute.xlu0 %2359
        %2361 = vrot.lane.b32.xlu0 %v2350, 80
        %v2362 = vpop.permute.xlu0 %2361
        %2363 = vrot.lane.b32.xlu0 %v2352, 80
        %v2364 = vpop.permute.xlu0 %2363
        %2365 = vrot.lane.b32.xlu0 %v2354, 80
        %v2366 = vpop.permute.xlu0 %2365
        %2367 = vrot.lane.b32.xlu0 %v2356, 80
        %v2368 = vpop.permute.xlu0 %2367
        %2369 = vrot.lane.b32.xlu0 %v2358, 80
        %v2370 = vpop.permute.xlu0 %2369
        %2371 = vrot.lane.b32.xlu0 %v2357, 80
        %v2372 = vpop.permute.xlu0 %2371
        %vm2373 = vcmask 687104
        %v2375 = vsel %vm2373, %v2195, %v2258
        %v2378 = vsel %vm2373, %v2196, %v2260
        %v2381 = vsel %vm2373, %v2197, %v2262
        %v2384 = vsel %vm2373, %v2198, %v2264
        %v2387 = vsel %vm2373, %v2199, %v2266
        %v2390 = vsel %vm2373, %v2200, %v2268
        %v2393 = vsel %vm2373, %v2201, %v2270
        %v2396 = vsel %vm1787, %v2258, %v2292
        %v2398 = vsel %vm1787, %v2260, %v2294
        %v2400 = vsel %vm1787, %v2262, %v2296
        %v2402 = vsel %vm1787, %v2264, %v2298
        %v2404 = vsel %vm1787, %v2266, %v2300
        %v2406 = vsel %vm1787, %v2268, %v2302
        %v2408 = vsel %vm1787, %v2270, %v2304
        %v2410 = vsel %vm2080, %v2396, %v2333
        %v2413 = vsel %vm2080, %v2398, %v2335
        %v2416 = vsel %vm2080, %v2400, %v2337
        %v2419 = vsel %vm2080, %v2402, %v2339
        %v2422 = vsel %vm2080, %v2404, %v2341
        %v2425 = vsel %vm2080, %v2406, %v2343
        %v2428 = vsel %vm2080, %v2408, %v2345
        %vm2430 = vcmask 654336
        %v2432 = vsel %vm2430, %v2333, %v2360
        %v2435 = vsel %vm2430, %v2335, %v2362
        %v2438 = vsel %vm2430, %v2337, %v2364
        %v2441 = vsel %vm2430, %v2339, %v2366
        %v2444 = vsel %vm2430, %v2341, %v2368
        %v2447 = vsel %vm2430, %v2343, %v2370
        %v2450 = vsel %vm2430, %v2345, %v2372
        %v2452 = vld [vmem:[%s5] sm:$0xff]
        %v2453 = vld [vmem:[%s5 + $0x8] sm:$0xff]
        %v2454 = vld [vmem:[%s5 + $0x10] sm:$0xff]
        %v2455 = vld [vmem:[%s5 + $0x18] sm:$0xff]
        %v2456 = vld [vmem:[%s5 + $0x20] sm:$0xff]
        %v2457 = vld [vmem:[%s5 + $0x28] sm:$0xff]
        %v2458 = vld [vmem:[%s5 + $0x30] sm:$0xff]
        %v2459 = vld [vmem:[%s5 + $0x38] sm:$0xff]
        %v2460 = vld [vmem:[%s5 + $0x40] sm:$0xff]
        %v2461 = vld [vmem:[%s5 + $0x48] sm:$0xff]
        %v2462 = vld [vmem:[%s5 + $0x50] sm:$0xff]
        %v2463 = vld [vmem:[%s5 + $0x58] sm:$0xff]
        %v2464 = vld [vmem:[%s5 + $0x60] sm:$0xff]
        %v2465 = vld [vmem:[%s5 + $0x68] sm:$0xff]
        %v2466 = vld [vmem:[%s5 + $0x70] sm:$0xff]
        %v2467 = vld [vmem:[%s5 + $0x78] sm:$0xff]
        %v2468 = vld [vmem:[%s5 + $0x80] sm:$0xff]
        %v2469 = vld [vmem:[%s5 + $0x88] sm:$0xff]
        %v2470 = vld [vmem:[%s5 + $0x90] sm:$0xff]
        %v2471 = vld [vmem:[%s5 + $0x98] sm:$0xff]
        %v2472 = vld [vmem:[%s5 + $0xa0] sm:$0xff]
        %v2473 = vld [vmem:[%s5 + $0xa8] sm:$0xff]
        %v2474 = vld [vmem:[%s5 + $0xb0] sm:$0xff]
        %v2475 = vld [vmem:[%s5 + $0xb8] sm:$0xff]
        %v2476 = vld [vmem:[%s5 + $0xc0] sm:$0xff]
        %v2477 = vld [vmem:[%s5 + $0xc8] sm:$0xff]
        %v2478 = vld [vmem:[%s5 + $0xd0] sm:$0xff]
        %v2479 = vld [vmem:[%s5 + $0xd8] sm:$0xff]
        %v2480 = vld [vmem:[%s5 + $0xe0] sm:$0xff]
        %v2481 = vld [vmem:[%s5 + $0xe8] sm:$0xff]
        %v2482 = vld [vmem:[%s5 + $0xf0] sm:$0xff]
        %v2483 = vld [vmem:[%s5 + $0xf8] sm:$0xff]
        %v2484 = vld [vmem:[%s5 + $0x100] sm:$0xff]
        %v2485 = vld [vmem:[%s5 + $0x108] sm:$0xff]
        %v2486 = vld [vmem:[%s5 + $0x110] sm:$0xff]
        %v2487 = vld [vmem:[%s5 + $0x118] sm:$0xff]
        %v2488 = vld [vmem:[%s5 + $0x120] sm:$0xff]
        %v2489 = vld [vmem:[%s5 + $0x128] sm:$0xff]
        %v2490 = vld [vmem:[%s5 + $0x130] sm:$0xff]
        %v2491 = vld [vmem:[%s5 + $0x138] sm:$0xff]
        %v2492 = vld [vmem:[%s5 + $0x140] sm:$0xff]
        %v2493 = vld [vmem:[%s5 + $0x148] sm:$0xff]
        %v2494 = vld [vmem:[%s5 + $0x150] sm:$0xff]
        %v2495 = vld [vmem:[%s5 + $0x158] sm:$0xff]
        %v2496 = vld [vmem:[%s5 + $0x160] sm:$0xff]
        %v2497 = vld [vmem:[%s5 + $0x168] sm:$0xff]
        %v2498 = vld [vmem:[%s5 + $0x170] sm:$0xff]
        %v2499 = vld [vmem:[%s5 + $0x178] sm:$0xff]
        %v2500 = vld [vmem:[%s5 + $0x180] sm:$0xff]
        %v2501 = vld [vmem:[%s5 + $0x188] sm:$0xff]
        %v2502 = vld [vmem:[%s5 + $0x190] sm:$0xff]
        %v2503 = vld [vmem:[%s5 + $0x198] sm:$0xff]
        %v2504 = vld [vmem:[%s5 + $0x1a0] sm:$0x33]
        %v2505 = vld [vmem:[%s6] sm:$0x3]
        %v2507 = vlaneseq
        %v2508 = vshrl.u32 %v2507, 7
        %v2509 = vsub.s32 0, %v2508
        %v2510 = vrot.slane %v2505, %v2509
        %v2511 = vlaneseq
        %v2512 = vshrl.u32 %v2511, 7
        %v2513 = vsub.s32 1, %v2512
        %v2514 = vrot.slane %v2505, %v2513
        %v2570 = vunpack.c.l.b16 %v2452
        %v2571 = vunpack.c.h.b16 %v2452
        %v2572 = vunpack.c.l.b16 %v2453
        %v2573 = vunpack.c.h.b16 %v2453
        %v2574 = vunpack.c.l.b16 %v2454
        %v2575 = vunpack.c.h.b16 %v2454
        %v2576 = vunpack.c.l.b16 %v2455
        %v2577 = vunpack.c.h.b16 %v2455
        %v2578 = vunpack.c.l.b16 %v2456
        %v2579 = vunpack.c.h.b16 %v2456
        %v2580 = vunpack.c.l.b16 %v2457
        %v2581 = vunpack.c.h.b16 %v2457
        %v2582 = vunpack.c.l.b16 %v2458
        %v2583 = vunpack.c.h.b16 %v2458
        %v2584 = vunpack.c.l.b16 %v2459
        %v2585 = vunpack.c.h.b16 %v2459
        %v2586 = vunpack.c.l.b16 %v2460
        %v2587 = vunpack.c.h.b16 %v2460
        %v2588 = vunpack.c.l.b16 %v2461
        %v2589 = vunpack.c.h.b16 %v2461
        %v2590 = vunpack.c.l.b16 %v2462
        %v2591 = vunpack.c.h.b16 %v2462
        %v2592 = vunpack.c.l.b16 %v2463
        %v2593 = vunpack.c.h.b16 %v2463
        %v2594 = vunpack.c.l.b16 %v2464
        %v2595 = vunpack.c.h.b16 %v2464
        %v2596 = vunpack.c.l.b16 %v2465
        %v2597 = vunpack.c.h.b16 %v2465
        %v2598 = vunpack.c.l.b16 %v2466
        %v2599 = vunpack.c.h.b16 %v2466
        %v2600 = vunpack.c.l.b16 %v2467
        %v2601 = vunpack.c.h.b16 %v2467
        %v2602 = vunpack.c.l.b16 %v2468
        %v2603 = vunpack.c.h.b16 %v2468
        %v2604 = vunpack.c.l.b16 %v2469
        %v2605 = vunpack.c.h.b16 %v2469
        %v2606 = vunpack.c.l.b16 %v2470
        %v2607 = vunpack.c.h.b16 %v2470
        %v2608 = vunpack.c.l.b16 %v2471
        %v2609 = vunpack.c.h.b16 %v2471
        %v2610 = vunpack.c.l.b16 %v2472
        %v2611 = vunpack.c.h.b16 %v2472
        %v2612 = vunpack.c.l.b16 %v2473
        %v2613 = vunpack.c.h.b16 %v2473
        %v2614 = vunpack.c.l.b16 %v2474
        %v2615 = vunpack.c.h.b16 %v2474
        %v2616 = vunpack.c.l.b16 %v2475
        %v2617 = vunpack.c.h.b16 %v2475
        %v2618 = vunpack.c.l.b16 %v2476
        %v2619 = vunpack.c.h.b16 %v2476
        %v2620 = vunpack.c.l.b16 %v2477
        %v2621 = vunpack.c.h.b16 %v2477
        %v2622 = vunpack.c.l.b16 %v2478
        %v2623 = vunpack.c.h.b16 %v2478
        %v2624 = vunpack.c.l.b16 %v2479
        %v2625 = vunpack.c.h.b16 %v2479
        %v2626 = vunpack.c.l.b16 %v2480
        %v2627 = vunpack.c.h.b16 %v2480
        %v2628 = vunpack.c.l.b16 %v2481
        %v2629 = vunpack.c.h.b16 %v2481
        %v2630 = vunpack.c.l.b16 %v2482
        %v2631 = vunpack.c.h.b16 %v2482
        %v2632 = vunpack.c.l.b16 %v2483
        %v2633 = vunpack.c.h.b16 %v2483
        %v2634 = vunpack.c.l.b16 %v2484
        %v2635 = vunpack.c.h.b16 %v2484
        %v2636 = vunpack.c.l.b16 %v2485
        %v2637 = vunpack.c.h.b16 %v2485
        %v2638 = vunpack.c.l.b16 %v2486
        %v2639 = vunpack.c.h.b16 %v2486
        %v2640 = vunpack.c.l.b16 %v2487
        %v2641 = vunpack.c.h.b16 %v2487
        %v2642 = vunpack.c.l.b16 %v2488
        %v2643 = vunpack.c.h.b16 %v2488
        %v2644 = vunpack.c.l.b16 %v2489
        %v2645 = vunpack.c.h.b16 %v2489
        %v2646 = vunpack.c.l.b16 %v2490
        %v2647 = vunpack.c.h.b16 %v2490
        %v2648 = vunpack.c.l.b16 %v2491
        %v2649 = vunpack.c.h.b16 %v2491
        %v2650 = vunpack.c.l.b16 %v2492
        %v2651 = vunpack.c.h.b16 %v2492
        %v2652 = vunpack.c.l.b16 %v2493
        %v2653 = vunpack.c.h.b16 %v2493
        %v2654 = vunpack.c.l.b16 %v2494
        %v2655 = vunpack.c.h.b16 %v2494
        %v2656 = vunpack.c.l.b16 %v2495
        %v2657 = vunpack.c.h.b16 %v2495
        %v2658 = vunpack.c.l.b16 %v2496
        %v2659 = vunpack.c.h.b16 %v2496
        %v2660 = vunpack.c.l.b16 %v2497
        %v2661 = vunpack.c.h.b16 %v2497
        %v2662 = vunpack.c.l.b16 %v2498
        %v2663 = vunpack.c.h.b16 %v2498
        %v2664 = vunpack.c.l.b16 %v2499
        %v2665 = vunpack.c.h.b16 %v2499
        %v2666 = vunpack.c.l.b16 %v2500
        %v2667 = vunpack.c.h.b16 %v2500
        %v2668 = vunpack.c.l.b16 %v2501
        %v2669 = vunpack.c.h.b16 %v2501
        %v2670 = vunpack.c.l.b16 %v2502
        %v2671 = vunpack.c.h.b16 %v2502
        %v2672 = vunpack.c.l.b16 %v2503
        %v2673 = vunpack.c.h.b16 %v2503
        %v2674 = vunpack.c.l.b16 %v2504
        %v2675 = vunpack.c.h.b16 %v2504
        %v2676 = vpack.c.b16 %v2572, %v2570
        %v2677 = vpack.c.b16 %v2573, %v2571
        %v2678 = vpack.c.b16 %v2576, %v2574
        %v2679 = vpack.c.b16 %v2577, %v2575
        %v2680 = vpack.c.b16 %v2580, %v2578
        %v2681 = vpack.c.b16 %v2581, %v2579
        %v2682 = vpack.c.b16 %v2584, %v2582
        %v2683 = vpack.c.b16 %v2585, %v2583
        %v2684 = vpack.c.b16 %v2588, %v2586
        %v2685 = vpack.c.b16 %v2589, %v2587
        %v2686 = vpack.c.b16 %v2592, %v2590
        %v2687 = vpack.c.b16 %v2593, %v2591
        %v2688 = vpack.c.b16 %v2596, %v2594
        %v2689 = vpack.c.b16 %v2597, %v2595
        %v2690 = vpack.c.b16 %v2600, %v2598
        %v2691 = vpack.c.b16 %v2601, %v2599
        %v2692 = vpack.c.b16 %v2604, %v2602
        %v2693 = vpack.c.b16 %v2605, %v2603
        %v2694 = vpack.c.b16 %v2608, %v2606
        %v2695 = vpack.c.b16 %v2609, %v2607
        %v2696 = vpack.c.b16 %v2612, %v2610
        %v2697 = vpack.c.b16 %v2613, %v2611
        %v2698 = vpack.c.b16 %v2616, %v2614
        %v2699 = vpack.c.b16 %v2617, %v2615
        %v2700 = vpack.c.b16 %v2620, %v2618
        %v2701 = vpack.c.b16 %v2621, %v2619
        %v2702 = vpack.c.b16 %v2624, %v2622
        %v2703 = vpack.c.b16 %v2625, %v2623
        %v2704 = vpack.c.b16 %v2628, %v2626
        %v2705 = vpack.c.b16 %v2629, %v2627
        %v2706 = vpack.c.b16 %v2632, %v2630
        %v2707 = vpack.c.b16 %v2633, %v2631
        %v2708 = vpack.c.b16 %v2636, %v2634
        %v2709 = vpack.c.b16 %v2637, %v2635
        %v2710 = vpack.c.b16 %v2640, %v2638
        %v2711 = vpack.c.b16 %v2641, %v2639
        %v2712 = vpack.c.b16 %v2644, %v2642
        %v2713 = vpack.c.b16 %v2645, %v2643
        %v2714 = vpack.c.b16 %v2648, %v2646
        %v2715 = vpack.c.b16 %v2649, %v2647
        %v2716 = vpack.c.b16 %v2652, %v2650
        %v2717 = vpack.c.b16 %v2653, %v2651
        %v2718 = vpack.c.b16 %v2656, %v2654
        %v2719 = vpack.c.b16 %v2657, %v2655
        %v2720 = vpack.c.b16 %v2660, %v2658
        %v2721 = vpack.c.b16 %v2661, %v2659
        %v2722 = vpack.c.b16 %v2664, %v2662
        %v2723 = vpack.c.b16 %v2665, %v2663
        %v2724 = vpack.c.b16 %v2668, %v2666
        %v2725 = vpack.c.b16 %v2669, %v2667
        %v2726 = vpack.c.b16 %v2672, %v2670
        %v2727 = vpack.c.b16 %v2673, %v2671
        %v2728 = vpack.c.b16 %v2674, %v2674
        %v2729 = vpack.c.b16 %v2675, %v2675
        %vm2782 = vcmask 293888
        %v2783 = vsel %vm2782, %v2360, 0
        %v2785 = vsel %vm2782, %v2362, 0
        %v2787 = vsel %vm2782, %v2364, 0
        %v2789 = vsel %vm2782, %v2366, 0
        %v2791 = vsel %vm2782, %v2368, 0
        %v2793 = vsel %vm2782, %v2370, 0
        %v2795 = vsel %vm2782, %v2372, 0
        %vm2797 = vcmask 1041408
        %v2799 = vsel %vm2797, %v2728, 0
        %v2802 = vsel %vm2797, %v2729, 0
        %2804 = vmatprep.subr.bf16.mxu0 %v2677
        %2805 = vmatpush1.bf16.msra.mxu0 %v2676
        %2806 = vmatprep.subr.bf16.mxu0 %v2679
        %2807 = vmatpush1.bf16.msra.mxu0 %v2678
        %2808 = vmatprep.subr.bf16.mxu0 %v2681
        %2809 = vmatpush1.bf16.msra.mxu0 %v2680
        %2810 = vmatprep.subr.bf16.mxu0 %v2683
        %2811 = vmatpush1.bf16.msra.mxu0 %v2682
        %2812 = vmatprep.subr.bf16.mxu0 %v2685
        %2813 = vmatpush1.bf16.msra.mxu0 %v2684
        %2814 = vmatprep.subr.bf16.mxu0 %v2687
        %2815 = vmatpush1.bf16.msra.mxu0 %v2686
        %2816 = vmatprep.subr.bf16.mxu0 %v2689
        %2817 = vmatpush1.bf16.msra.mxu0 %v2688
        %2818 = vmatprep.subr.bf16.mxu0 %v2691
        %2819 = vmatpush1.bf16.msra.mxu0 %v2690
        %2820 = vmatprep.subr.bf16.mxu0 %v2693
        %2821 = vmatpush1.bf16.msra.mxu0 %v2692
        %2822 = vmatprep.subr.bf16.mxu0 %v2695
        %2823 = vmatpush1.bf16.msra.mxu0 %v2694
        %2824 = vmatprep.subr.bf16.mxu0 %v2697
        %2825 = vmatpush1.bf16.msra.mxu0 %v2696
        %2826 = vmatprep.subr.bf16.mxu0 %v2699
        %2827 = vmatpush1.bf16.msra.mxu0 %v2698
        %2828 = vmatprep.subr.bf16.mxu0 %v2701
        %2829 = vmatpush1.bf16.msra.mxu0 %v2700
        %2830 = vmatprep.subr.bf16.mxu0 %v2703
        %2831 = vmatpush1.bf16.msra.mxu0 %v2702
        %2832 = vmatprep.subr.bf16.mxu0 %v2705
        %2833 = vmatpush1.bf16.msra.mxu0 %v2704
        %2834 = vmatprep.subr.bf16.mxu0 %v2707
        %2835 = vmatpush1.bf16.msra.mxu0 %v2706
        %2836 = vmatprep.mubr.bf16.mxu0 %v2410
        %2837 = vmatmul.mubr.bf16.gmra.mrb[0].mxu0 %v2375
        %v2838 = vpop.f32.mrb[0].mxu0
        %v2839 = vadd.f32 %v2510, %v2838
        %v2840 = vpop.f32.mrb[0].mxu0
        %v2841 = vadd.f32 %v2514, %v2840
        %v2842 = vpop.f32.mrb[0].mxu0
        %v2843 = vadd.f32 %v2510, %v2842
        %v2844 = vpop.f32.mrb[0].mxu0
        %v2845 = vadd.f32 %v2514, %v2844
        %2846 = vmatprep.mubr.bf16.mxu0 %v2413
        %2847 = vmatmul.mubr.bf16.gmra.mrb[0].mxu0 %v2378
        %v2848 = vpop.f32.mrb[0].mxu0
        %v2849 = vadd.f32 %v2510, %v2848
        %v2850 = vpop.f32.mrb[0].mxu0
        %v2851 = vadd.f32 %v2514, %v2850
        %v2852 = vpop.f32.mrb[0].mxu0
        %v2853 = vadd.f32 %v2510, %v2852
        %v2854 = vpop.f32.mrb[0].mxu0
        %v2855 = vadd.f32 %v2514, %v2854
        %2856 = vmatprep.mubr.bf16.mxu0 %v2416
        %2857 = vmatmul.mubr.bf16.gmra.mrb[0].mxu0 %v2381
        %v2858 = vpop.f32.mrb[0].mxu0
        %v2859 = vadd.f32 %v2510, %v2858
        %v2860 = vpop.f32.mrb[0].mxu0
        %v2861 = vadd.f32 %v2514, %v2860
        %v2862 = vpop.f32.mrb[0].mxu0
        %v2863 = vadd.f32 %v2510, %v2862
        %v2864 = vpop.f32.mrb[0].mxu0
        %v2865 = vadd.f32 %v2514, %v2864
        %2866 = vmatprep.mubr.bf16.mxu0 %v2419
        %2867 = vmatmul.mubr.bf16.gmra.mrb[0].mxu0 %v2384
        %v2868 = vpop.f32.mrb[0].mxu0
        %v2869 = vadd.f32 %v2510, %v2868
        %v2870 = vpop.f32.mrb[0].mxu0
        %v2871 = vadd.f32 %v2514, %v2870
        %v2872 = vpop.f32.mrb[0].mxu0
        %v2873 = vadd.f32 %v2510, %v2872
        %v2874 = vpop.f32.mrb[0].mxu0
        %v2875 = vadd.f32 %v2514, %v2874
        %2876 = vmatprep.mubr.bf16.mxu0 %v2422
        %2877 = vmatmul.mubr.bf16.gmra.mrb[0].mxu0 %v2387
        %v2878 = vpop.f32.mrb[0].mxu0
        %v2879 = vadd.f32 %v2510, %v2878
        %v2880 = vpop.f32.mrb[0].mxu0
        %v2881 = vadd.f32 %v2514, %v2880
        %v2882 = vpop.f32.mrb[0].mxu0
        %v2883 = vadd.f32 %v2510, %v2882
        %v2884 = vpop.f32.mrb[0].mxu0
        %v2885 = vadd.f32 %v2514, %v2884
        %2886 = vmatprep.mubr.bf16.mxu0 %v2425
        %2887 = vmatmul.mubr.bf16.gmra.mrb[0].mxu0 %v2390
        %v2888 = vpop.f32.mrb[0].mxu0
        %v2889 = vadd.f32 %v2510, %v2888
        %v2890 = vpop.f32.mrb[0].mxu0
        %v2891 = vadd.f32 %v2514, %v2890
        %v2892 = vpop.f32.mrb[0].mxu0
        %v2893 = vadd.f32 %v2510, %v2892
        %v2894 = vpop.f32.mrb[0].mxu0
        %v2895 = vadd.f32 %v2514, %v2894
        %2896 = vmatprep.mubr.bf16.mxu0 %v2428
        %2897 = vmatmul.mubr.bf16.gmra.mrb[0].mxu0 %v2393
        %v2898 = vpop.f32.mrb[0].mxu0
        %v2899 = vadd.f32 %v2510, %v2898
        %v2900 = vpop.f32.mrb[0].mxu0
        %v2901 = vadd.f32 %v2514, %v2900
        %v2902 = vpop.f32.mrb[0].mxu0
        %v2903 = vadd.f32 %v2510, %v2902
        %v2904 = vpop.f32.mrb[0].mxu0
        %v2905 = vadd.f32 %v2514, %v2904
        %2906 = vdwg.mxu0
        %2907 = vmatprep.subr.bf16.mxu0 %v2709
        %2908 = vmatpush1.bf16.msra.mxu0 %v2708
        %2909 = vmatprep.subr.bf16.mxu0 %v2711
        %2910 = vmatpush1.bf16.msra.mxu0 %v2710
        %2911 = vmatprep.subr.bf16.mxu0 %v2713
        %2912 = vmatpush1.bf16.msra.mxu0 %v2712
        %2913 = vmatprep.subr.bf16.mxu0 %v2715
        %2914 = vmatpush1.bf16.msra.mxu0 %v2714
        %2915 = vmatprep.subr.bf16.mxu0 %v2717
        %2916 = vmatpush1.bf16.msra.mxu0 %v2716
        %2917 = vmatprep.subr.bf16.mxu0 %v2719
        %2918 = vmatpush1.bf16.msra.mxu0 %v2718
        %2919 = vmatprep.subr.bf16.mxu0 %v2721
        %2920 = vmatpush1.bf16.msra.mxu0 %v2720
        %2921 = vmatprep.subr.bf16.mxu0 %v2723
        %2922 = vmatpush1.bf16.msra.mxu0 %v2722
        %2923 = vmatprep.subr.bf16.mxu0 %v2725
        %2924 = vmatpush1.bf16.msra.mxu0 %v2724
        %2925 = vmatprep.subr.bf16.mxu0 %v2727
        %2926 = vmatpush1.bf16.msra.mxu0 %v2726
        %2927 = vmatprep.subr.bf16.mxu0 %v2802
        %2928 = vmatpush1.bf16.msra.mxu0 %v2799
        %2929 = vmatprep.subr.bf16.mxu0 0
        %2930 = vmatpush1.bf16.msra.mxu0 0
        %2931 = vmatprep.subr.bf16.mxu0 0
        %2932 = vmatpush1.bf16.msra.mxu0 0
        %2933 = vmatprep.subr.bf16.mxu0 0
        %2934 = vmatpush1.bf16.msra.mxu0 0
        %2935 = vmatprep.subr.bf16.mxu0 0
        %2936 = vmatpush1.bf16.msra.mxu0 0
        %2937 = vmatprep.subr.bf16.mxu0 0
        %2938 = vmatpush1.bf16.msra.mxu0 0
        %2939 = vmatprep.mubr.bf16.mxu0 %v2783
        %2940 = vmatmul.mubr.bf16.gmra.mrb[0].mxu0 %v2432
        %v2941 = vpop.f32.mrb[0].mxu0
        %v2942 = vadd.f32 %v2839, %v2941
        %v2943 = vpop.f32.mrb[0].mxu0
        %v2944 = vadd.f32 %v2841, %v2943
        %v2945 = vpop.f32.mrb[0].mxu0
        %v2946 = vadd.f32 %v2843, %v2945
        %v2947 = vpop.f32.mrb[0].mxu0
        %v2948 = vadd.f32 %v2845, %v2947
        %2949 = vmatprep.mubr.bf16.mxu0 %v2785
        %2950 = vmatmul.mubr.bf16.gmra.mrb[0].mxu0 %v2435
        %v2951 = vpop.f32.mrb[0].mxu0
        %v2952 = vadd.f32 %v2849, %v2951
        %v2953 = vpop.f32.mrb[0].mxu0
        %v2954 = vadd.f32 %v2851, %v2953
        %v2955 = vpop.f32.mrb[0].mxu0
        %v2956 = vadd.f32 %v2853, %v2955
        %v2957 = vpop.f32.mrb[0].mxu0
        %v2958 = vadd.f32 %v2855, %v2957
        %2959 = vmatprep.mubr.bf16.mxu0 %v2787
        %2960 = vmatmul.mubr.bf16.gmra.mrb[0].mxu0 %v2438
        %v2961 = vpop.f32.mrb[0].mxu0
        %v2962 = vadd.f32 %v2859, %v2961
        %v2963 = vpop.f32.mrb[0].mxu0
        %v2964 = vadd.f32 %v2861, %v2963
        %v2965 = vpop.f32.mrb[0].mxu0
        %v2966 = vadd.f32 %v2863, %v2965
        %v2967 = vpop.f32.mrb[0].mxu0
        %v2968 = vadd.f32 %v2865, %v2967
        %2969 = vmatprep.mubr.bf16.mxu0 %v2789
        %2970 = vmatmul.mubr.bf16.gmra.mrb[0].mxu0 %v2441
        %v2971 = vpop.f32.mrb[0].mxu0
        %v2972 = vadd.f32 %v2869, %v2971
        %v2973 = vpop.f32.mrb[0].mxu0
        %v2974 = vadd.f32 %v2871, %v2973
        %v2975 = vpop.f32.mrb[0].mxu0
        %v2976 = vadd.f32 %v2873, %v2975
        %v2977 = vpop.f32.mrb[0].mxu0
        %v2978 = vadd.f32 %v2875, %v2977
        %2979 = vmatprep.mubr.bf16.mxu0 %v2791
        %2980 = vmatmul.mubr.bf16.gmra.mrb[0].mxu0 %v2444
        %v2981 = vpop.f32.mrb[0].mxu0
        %v2982 = vadd.f32 %v2879, %v2981
        %v2983 = vpop.f32.mrb[0].mxu0
        %v2984 = vadd.f32 %v2881, %v2983
        %v2985 = vpop.f32.mrb[0].mxu0
        %v2986 = vadd.f32 %v2883, %v2985
        %v2987 = vpop.f32.mrb[0].mxu0
        %v2988 = vadd.f32 %v2885, %v2987
        %2989 = vmatprep.mubr.bf16.mxu0 %v2793
        %2990 = vmatmul.mubr.bf16.gmra.mrb[0].mxu0 %v2447
        %v2991 = vpop.f32.mrb[0].mxu0
        %v2992 = vadd.f32 %v2889, %v2991
        %v2993 = vpop.f32.mrb[0].mxu0
        %v2994 = vadd.f32 %v2891, %v2993
        %v2995 = vpop.f32.mrb[0].mxu0
        %v2996 = vadd.f32 %v2893, %v2995
        %v2997 = vpop.f32.mrb[0].mxu0
        %v2998 = vadd.f32 %v2895, %v2997
        %2999 = vmatprep.mubr.bf16.mxu0 %v2795
        %3000 = vmatmul.mubr.bf16.gmra.mrb[0].mxu0 %v2450
        %v3001 = vpop.f32.mrb[0].mxu0
        %v3002 = vadd.f32 %v2899, %v3001
        %v3003 = vpop.f32.mrb[0].mxu0
        %v3004 = vadd.f32 %v2901, %v3003
        %v3005 = vpop.f32.mrb[0].mxu0
        %v3006 = vadd.f32 %v2903, %v3005
        %v3007 = vpop.f32.mrb[0].mxu0
        %v3008 = vadd.f32 %v2905, %v3007
        %3009 = vdwg.mxu0
        %v3010 = vtanh.pop %v2942
        %v3011 = vtanh.pop %v2944
        %v3012 = vtanh.pop %v2946
        %v3013 = vtanh.pop %v2948
        %v3014 = vtanh.pop %v2952
        %v3015 = vtanh.pop %v2954
        %v3016 = vtanh.pop %v2956
        %v3017 = vtanh.pop %v2958
        %v3018 = vtanh.pop %v2962
        %v3019 = vtanh.pop %v2964
        %v3020 = vtanh.pop %v2966
        %v3021 = vtanh.pop %v2968
        %v3022 = vtanh.pop %v2972
        %v3023 = vtanh.pop %v2974
        %v3024 = vtanh.pop %v2976
        %v3025 = vtanh.pop %v2978
        %v3026 = vtanh.pop %v2982
        %v3027 = vtanh.pop %v2984
        %v3028 = vtanh.pop %v2986
        %v3029 = vtanh.pop %v2988
        %v3030 = vtanh.pop %v2992
        %v3031 = vtanh.pop %v2994
        %v3032 = vtanh.pop %v2996
        %v3033 = vtanh.pop %v2998
        %v3034 = vtanh.pop %v3002
        %v3035 = vtanh.pop %v3004
        %v3036 = vtanh.pop %v3006
        %v3037 = vtanh.pop %v3008
        %v3038 = vld [vmem:[#allocation5] sm:$0xf]
        %v3039 = vld [vmem:[#allocation5 + $0x4] sm:$0xf]
        %v3040 = vld [vmem:[#allocation5 + $0x8] sm:$0xf]
        %v3041 = vld [vmem:[#allocation5 + $0xc] sm:$0xf]
        %v3042 = vld [vmem:[#allocation5 + $0x10] sm:$0xf]
        %v3043 = vld [vmem:[%s8] sm:$0xf]
        %v3044 = vld [vmem:[%s8 + $0x4] sm:$0xf]
        %v3045 = vld [vmem:[%s8 + $0x8] sm:$0xf]
        %v3046 = vld [vmem:[%s8 + $0xc] sm:$0xf]
        %v3047 = vld [vmem:[%s8 + $0x10] sm:$0xf]
        %v3048 = vld [vmem:[%s8 + $0x14] sm:$0xf]
        %v3049 = vld [vmem:[%s8 + $0x18] sm:$0xf]
        %v3050 = vld [vmem:[%s8 + $0x1c] sm:$0xf]
        %v3051 = vld [vmem:[%s8 + $0x20] sm:$0xf]
        %v3052 = vld [vmem:[%s8 + $0x24] sm:$0xf]
        %v3053 = vld [vmem:[%s8 + $0x28] sm:$0xf]
        %v3054 = vld [vmem:[%s8 + $0x2c] sm:$0xf]
        %v3055 = vld [vmem:[%s8 + $0x30] sm:$0xf]
        %v3056 = vld [vmem:[%s8 + $0x34] sm:$0xf]
        %v3057 = vld [vmem:[%s8 + $0x38] sm:$0xf]
        %v3058 = vld [vmem:[%s8 + $0x3c] sm:$0xf]
        %v3059 = vld [vmem:[%s8 + $0x40] sm:$0xf]
        %v3060 = vld [vmem:[%s8 + $0x44] sm:$0xf]
        %v3061 = vld [vmem:[%s8 + $0x48] sm:$0xf]
        %v3062 = vld [vmem:[%s8 + $0x4c] sm:$0xf]
        %v3063 = vpack.c.bf16 %v3012, %v3010
        %v3064 = vpack.c.bf16 %v3013, %v3011
        %v3065 = vpack.c.bf16 %v3016, %v3014
        %v3066 = vpack.c.bf16 %v3017, %v3015
        %v3067 = vpack.c.bf16 %v3020, %v3018
        %v3068 = vpack.c.bf16 %v3021, %v3019
        %v3069 = vpack.c.bf16 %v3024, %v3022
        %v3070 = vpack.c.bf16 %v3025, %v3023
        %v3071 = vpack.c.bf16 %v3028, %v3026
        %v3072 = vpack.c.bf16 %v3029, %v3027
        %v3073 = vpack.c.bf16 %v3032, %v3030
        %v3074 = vpack.c.bf16 %v3033, %v3031
        %v3075 = vpack.c.bf16 %v3036, %v3034
        %v3076 = vpack.c.bf16 %v3037, %v3035
        %v3097 = vunpack.c.l.b16 %v3043
        %v3098 = vunpack.c.l.b16 %v3044
        %v3099 = vunpack.c.l.b16 %v3045
        %v3100 = vunpack.c.l.b16 %v3046
        %v3101 = vunpack.c.l.b16 %v3047
        %v3102 = vunpack.c.l.b16 %v3048
        %v3103 = vunpack.c.l.b16 %v3049
        %v3104 = vunpack.c.l.b16 %v3050
        %v3105 = vunpack.c.l.b16 %v3051
        %v3106 = vunpack.c.l.b16 %v3052
        %v3107 = vunpack.c.l.b16 %v3053
        %v3108 = vunpack.c.l.b16 %v3054
        %v3109 = vunpack.c.l.b16 %v3055
        %v3110 = vunpack.c.l.b16 %v3056
        %v3111 = vunpack.c.l.b16 %v3057
        %v3112 = vunpack.c.l.b16 %v3058
        %v3113 = vunpack.c.l.b16 %v3059
        %v3114 = vunpack.c.l.b16 %v3060
        %v3115 = vunpack.c.l.b16 %v3061
        %v3116 = vunpack.c.l.b16 %v3062
        %v3117 = vpack.c.b16 %v3098, %v3097
        %v3118 = vpack.c.b16 %v3100, %v3099
        %v3119 = vpack.c.b16 %v3102, %v3101
        %v3120 = vpack.c.b16 %v3104, %v3103
        %v3121 = vpack.c.b16 %v3106, %v3105
        %v3122 = vpack.c.b16 %v3108, %v3107
        %v3123 = vpack.c.b16 %v3110, %v3109
        %v3124 = vpack.c.b16 %v3112, %v3111
        %v3125 = vpack.c.b16 %v3114, %v3113
        %v3126 = vpack.c.b16 %v3116, %v3115
        %v3138 = vsel %vm1105, %v3064, 0
        %v3141 = vsel %vm1105, %v3066, 0
        %v3144 = vsel %vm1105, %v3068, 0
        %v3147 = vsel %vm1105, %v3070, 0
        %v3150 = vsel %vm1105, %v3072, 0
        %v3153 = vsel %vm1105, %v3074, 0
        %v3156 = vsel %vm1105, %v3076, 0
        %3158 = vmatprep.subr.bf16.mxu0 0
        %3159 = vmatpush1.bf16.msra.mxu0 %v3117
        %3160 = vmatprep.subr.bf16.mxu0 0
        %3161 = vmatpush1.bf16.msra.mxu0 %v3118
        %3162 = vmatprep.subr.bf16.mxu0 0
        %3163 = vmatpush1.bf16.msra.mxu0 %v3119
        %3164 = vmatprep.subr.bf16.mxu0 0
        %3165 = vmatpush1.bf16.msra.mxu0 %v3120
        %3166 = vmatprep.subr.bf16.mxu0 0
        %3167 = vmatpush1.bf16.msra.mxu0 %v3121
        %3168 = vmatprep.subr.bf16.mxu0 0
        %3169 = vmatpush1.bf16.msra.mxu0 %v3122
        %3170 = vmatprep.subr.bf16.mxu0 0
        %3171 = vmatpush1.bf16.msra.mxu0 %v3123
        %3172 = vmatprep.subr.bf16.mxu0 0
        %3173 = vmatpush1.bf16.msra.mxu0 %v3124
        %3174 = vmatprep.subr.bf16.mxu0 0
        %3175 = vmatpush1.bf16.msra.mxu0 %v3125
        %3176 = vmatprep.subr.bf16.mxu0 0
        %3177 = vmatpush1.bf16.msra.mxu0 %v3126
        %3178 = vmatprep.subr.bf16.mxu0 0
        %3179 = vmatpush1.bf16.msra.mxu0 0
        %3180 = vmatprep.subr.bf16.mxu0 0
        %3181 = vmatpush1.bf16.msra.mxu0 0
        %3182 = vmatprep.subr.bf16.mxu0 0
        %3183 = vmatpush1.bf16.msra.mxu0 0
        %3184 = vmatprep.subr.bf16.mxu0 0
        %3185 = vmatpush1.bf16.msra.mxu0 0
        %3186 = vmatprep.subr.bf16.mxu0 0
        %3187 = vmatpush1.bf16.msra.mxu0 0
        %3188 = vmatprep.subr.bf16.mxu0 0
        %3189 = vmatpush1.bf16.msra.mxu0 0
        %3190 = vmatprep.mubr.bf16.mxu0 %v3138
        %3191 = vmatmul.mubr.bf16.gmra.mrb[0].mxu0 %v3063
        %v3192 = vpop.f32.mrb[0].mxu0
        %v3193 = vadd.f32 0.0, %v3192
        %v3194 = vpop.f32.mrb[0].mxu0
        %v3195 = vpop.f32.mrb[0].mxu0
        %v3196 = vadd.f32 0.0, %v3195
        %v3197 = vpop.f32.mrb[0].mxu0
        %3198 = vmatprep.mubr.bf16.mxu0 %v3141
        %3199 = vmatmul.mubr.bf16.gmra.mrb[0].mxu0 %v3065
        %v3200 = vpop.f32.mrb[0].mxu0
        %v3201 = vadd.f32 0.0, %v3200
        %v3202 = vpop.f32.mrb[0].mxu0
        %v3203 = vpop.f32.mrb[0].mxu0
        %v3204 = vadd.f32 0.0, %v3203
        %v3205 = vpop.f32.mrb[0].mxu0
        %3206 = vmatprep.mubr.bf16.mxu0 %v3144
        %3207 = vmatmul.mubr.bf16.gmra.mrb[0].mxu0 %v3067
        %v3208 = vpop.f32.mrb[0].mxu0
        %v3209 = vadd.f32 0.0, %v3208
        %v3210 = vpop.f32.mrb[0].mxu0
        %v3211 = vpop.f32.mrb[0].mxu0
        %v3212 = vadd.f32 0.0, %v3211
        %v3213 = vpop.f32.mrb[0].mxu0
        %3214 = vmatprep.mubr.bf16.mxu0 %v3147
        %3215 = vmatmul.mubr.bf16.gmra.mrb[0].mxu0 %v3069
        %v3216 = vpop.f32.mrb[0].mxu0
        %v3217 = vadd.f32 0.0, %v3216
        %v3218 = vpop.f32.mrb[0].mxu0
        %v3219 = vpop.f32.mrb[0].mxu0
        %v3220 = vadd.f32 0.0, %v3219
        %v3221 = vpop.f32.mrb[0].mxu0
        %3222 = vmatprep.mubr.bf16.mxu0 %v3150
        %3223 = vmatmul.mubr.bf16.gmra.mrb[0].mxu0 %v3071
        %v3224 = vpop.f32.mrb[0].mxu0
        %v3225 = vadd.f32 0.0, %v3224
        %v3226 = vpop.f32.mrb[0].mxu0
        %v3227 = vpop.f32.mrb[0].mxu0
        %v3228 = vadd.f32 0.0, %v3227
        %v3229 = vpop.f32.mrb[0].mxu0
        %3230 = vmatprep.mubr.bf16.mxu0 %v3153
        %3231 = vmatmul.mubr.bf16.gmra.mrb[0].mxu0 %v3073
        %v3232 = vpop.f32.mrb[0].mxu0
        %v3233 = vadd.f32 0.0, %v3232
        %v3234 = vpop.f32.mrb[0].mxu0
        %v3235 = vpop.f32.mrb[0].mxu0
        %v3236 = vadd.f32 0.0, %v3235
        %v3237 = vpop.f32.mrb[0].mxu0
        %3238 = vmatprep.mubr.bf16.mxu0 %v3156
        %3239 = vmatmul.mubr.bf16.gmra.mrb[0].mxu0 %v3075
        %v3240 = vpop.f32.mrb[0].mxu0
        %v3241 = vadd.f32 0.0, %v3240
        %v3242 = vpop.f32.mrb[0].mxu0
        %v3243 = vpop.f32.mrb[0].mxu0
        %v3244 = vadd.f32 0.0, %v3243
        %v3245 = vpop.f32.mrb[0].mxu0
        %3246 = vdwg.mxu0
        %v3247 = vpack.c.bf16 %v3196, %v3193
        %v3248 = vpack.c.bf16 %v3204, %v3201
        %v3249 = vpack.c.bf16 %v3212, %v3209
        %v3250 = vpack.c.bf16 %v3220, %v3217
        %v3251 = vpack.c.bf16 %v3228, %v3225
        %v3252 = vpack.c.bf16 %v3236, %v3233
        %v3253 = vpack.c.bf16 %v3244, %v3241
        %v3259 = vunpack.c.l.b16 %v3038
        %v3260 = vunpack.c.l.b16 %v3039
        %v3261 = vunpack.c.l.b16 %v3040
        %v3262 = vunpack.c.l.b16 %v3041
        %v3263 = vunpack.c.l.b16 %v3042
        %v3264 = vpack.c.b16 %v3260, %v3259
        %v3265 = vpack.c.b16 %v3262, %v3261
        %v3266 = vpack.c.b16 %v3263, %v3263
        %vm3267 = vcmask 883712
        %v3269 = vsel %vm3267, %v3264, 0
        %v3272 = vsel %vm3267, %v3265, 0
        %v3275 = vsel %vm3267, %v3266, 0
        %v3278 = vsel %vm2102, %v3253, 0
        %3280 = vmatprep.subr.bf16.mxu0 0
        %3281 = vmatpush1.bf16.msra.mxu0 %v3247
        %3282 = vmatprep.subr.bf16.mxu0 0
        %3283 = vmatpush1.bf16.msra.mxu0 %v3248
        %3284 = vmatprep.subr.bf16.mxu0 0
        %3285 = vmatpush1.bf16.msra.mxu0 %v3249
        %3286 = vmatprep.subr.bf16.mxu0 0
        %3287 = vmatpush1.bf16.msra.mxu0 %v3250
        %3288 = vmatprep.subr.bf16.mxu0 0
        %3289 = vmatpush1.bf16.msra.mxu0 %v3251
        %3290 = vmatprep.subr.bf16.mxu0 0
        %3291 = vmatpush1.bf16.msra.mxu0 %v3252
        %3292 = vmatprep.subr.bf16.mxu0 0
        %3293 = vmatpush1.bf16.msra.mxu0 %v3278
        %3294 = vmatprep.subr.bf16.mxu0 0
        %3295 = vmatpush1.bf16.msra.mxu0 0
        %3296 = vmatprep.subr.bf16.mxu0 0
        %3297 = vmatpush1.bf16.msra.mxu0 0
        %3298 = vmatprep.subr.bf16.mxu0 0
        %3299 = vmatpush1.bf16.msra.mxu0 0
        %3300 = vmatprep.subr.bf16.mxu0 0
        %3301 = vmatpush1.bf16.msra.mxu0 0
        %3302 = vmatprep.subr.bf16.mxu0 0
        %3303 = vmatpush1.bf16.msra.mxu0 0
        %3304 = vmatprep.subr.bf16.mxu0 0
        %3305 = vmatpush1.bf16.msra.mxu0 0
        %3306 = vmatprep.subr.bf16.mxu0 0
        %3307 = vmatpush1.bf16.msra.mxu0 0
        %3308 = vmatprep.subr.bf16.mxu0 0
        %3309 = vmatpush1.bf16.msra.mxu0 0
        %3310 = vmatprep.subr.bf16.mxu0 0
        %3311 = vmatpush1.bf16.msra.mxu0 0
        %3312 = vmatprep.mubr.bf16.mxu0 0
        %3313 = vmatmul.mubr.bf16.gmra.mrb[0].mxu0 %v3269
        %v3314 = vpop.f32.mrb[0].mxu0
        %v3315 = vadd.f32 0.0, %v3314
        %v3316 = vpop.f32.mrb[0].mxu0
        %v3317 = vpop.f32.mrb[0].mxu0
        %v3318 = vadd.f32 0.0, %v3317
        %v3319 = vpop.f32.mrb[0].mxu0
        %3320 = vmatprep.mubr.bf16.mxu0 0
        %3321 = vmatmul.mubr.bf16.gmra.mrb[0].mxu0 %v3272
        %v3322 = vpop.f32.mrb[0].mxu0
        %v3323 = vadd.f32 0.0, %v3322
        %v3324 = vpop.f32.mrb[0].mxu0
        %v3325 = vpop.f32.mrb[0].mxu0
        %v3326 = vadd.f32 0.0, %v3325
        %v3327 = vpop.f32.mrb[0].mxu0
        %3328 = vmatprep.mubr.bf16.mxu0 0
        %3329 = vmatmul.mubr.bf16.gmra.mrb[0].mxu0 %v3275
        %v3330 = vpop.f32.mrb[0].mxu0
        %v3331 = vadd.f32 0.0, %v3330
        %v3332 = vpop.f32.mrb[0].mxu0
        %v3333 = vpop.f32.mrb[0].mxu0
        %v3334 = vpop.f32.mrb[0].mxu0
        %3335 = vdwg.mxu0
        %v3336 = vpack.c.bf16 %v3318, %v3315
        %v3337 = vpack.c.bf16 %v3326, %v3323
        %v3338 = vpack.c.bf16 %v3331, %v3331
        %v3340 = vshrl.u32 %v3336, 16
        %v3342 = vshll.u32 %v3336, 16
        %v3344 = vrot.slane %v3342, 1
        %v3345 = vor.u32 %v3340, %v3344
        %v3347 = vshll.u32 %v3337, 16
        %v3349 = vrot.slane %v3347, 1
        %v3350 = vsel %vm753, %v3345, %v3349
        %v3351 = vshrl.u32 %v3337, 16
        %v3353 = vor.u32 %v3351, %v3349
        %v3355 = vshll.u32 %v3338, 16
        %v3357 = vrot.slane %v3355, 1
        %v3358 = vsel %vm753, %v3353, %v3357
        %v3359 = vshrl.u32 %v3338, 16
        %v3361 = vor.u32 %v3359, %v3357
        %3362 = vrot.lane.b32.xlu0 %v3350, 80
        %v3363 = vpop.permute.xlu0 %3362
        %3364 = vrot.lane.b32.xlu0 %v3358, 80
        %v3365 = vpop.permute.xlu0 %3364
        %3366 = vrot.lane.b32.xlu0 %v3361, 80
        %v3367 = vpop.permute.xlu0 %3366
        %v3371 = vrot.slane %v3336, 1
        %v3372 = vrot.slane %v3337, 1
        %v3373 = vsel %vm913, %v3371, %v3372
        %v3374 = vrot.slane %v3338, 1
        %v3375 = vsel %vm913, %v3372, %v3374
        %3376 = vrot.lane.b32.xlu0 %v3373, 32
        %v3377 = vpop.permute.xlu0 %3376
        %3378 = vrot.lane.b32.xlu0 %v3375, 32
        %v3379 = vpop.permute.xlu0 %3378
        %3380 = vrot.lane.b32.xlu0 %v3374, 32
        %v3381 = vpop.permute.xlu0 %3380
        %v3382 = vrot.slane %v3340, 1
        %v3383 = vrot.slane %v3342, 2
        %v3384 = vor.u32 %v3382, %v3383
        %v3385 = vrot.slane %v3351, 1
        %v3386 = vrot.slane %v3347, 2
        %v3387 = vor.u32 %v3385, %v3386
        %v3388 = vsel %vm977, %v3384, %v3387
        %v3389 = vrot.slane %v3359, 1
        %v3390 = vrot.slane %v3355, 2
        %v3391 = vor.u32 %v3389, %v3390
        %v3392 = vsel %vm977, %v3387, %v3391
        %3393 = vrot.lane.b32.xlu0 %v3388, 112
        %v3394 = vpop.permute.xlu0 %3393
        %3395 = vrot.lane.b32.xlu0 %v3392, 112
        %v3396 = vpop.permute.xlu0 %3395
        %3397 = vrot.lane.b32.xlu0 %v3391, 112
        %v3398 = vpop.permute.xlu0 %3397
        %v3399 = vrot.slane %v3336, 2
        %v3400 = vrot.slane %v3337, 2
        %v3401 = vsel %vm1073, %v3399, %v3400
        %v3402 = vrot.slane %v3338, 2
        %v3403 = vsel %vm1073, %v3400, %v3402
        %3404 = vrot.lane.b32.xlu0 %v3401, 64
        %v3405 = vpop.permute.xlu0 %3404
        %3406 = vrot.lane.b32.xlu0 %v3403, 64
        %v3407 = vpop.permute.xlu0 %3406
        %3408 = vrot.lane.b32.xlu0 %v3402, 64
        %v3409 = vpop.permute.xlu0 %3408
        %v3411 = vsel %vm2430, %v3336, %v3363
        %v3414 = vsel %vm2430, %v3337, %v3365
        %v3417 = vsel %vm2430, %v3338, %v3367
        %v3420 = vsel %vm1105, %v3363, %v3377
        %v3422 = vsel %vm1105, %v3365, %v3379
        %v3424 = vsel %vm1105, %v3367, %v3381
        %vm3425 = vcmask 916480
        %v3427 = vsel %vm3425, %v3420, %v3394
        %v3430 = vsel %vm3425, %v3422, %v3396
        %v3433 = vsel %vm3425, %v3424, %v3398
        %v3436 = vsel %vm1138, %v3394, %v3405
        %v3439 = vsel %vm1138, %v3396, %v3407
        %v3442 = vsel %vm1138, %v3398, %v3409
        %v3444 = vld [vmem:[#allocation8] sm:$0xf]
        %v3445 = vld [vmem:[%s9] sm:$0xf]
        %v3446 = vld [vmem:[%s9 + $0x4] sm:$0xf]
        %v3447 = vld [vmem:[%s9 + $0x8] sm:$0xf]
        %v3448 = vld [vmem:[%s9 + $0xc] sm:$0xf]
        %v3449 = vld [vmem:[%s9 + $0x10] sm:$0xf]
        %v3450 = vld [vmem:[%s9 + $0x14] sm:$0xf]
        %v3451 = vld [vmem:[%s9 + $0x18] sm:$0xf]
        %v3452 = vld [vmem:[%s9 + $0x1c] sm:$0xf]
        %v3453 = vld [vmem:[%s9 + $0x20] sm:$0xf]
        %v3454 = vld [vmem:[%s9 + $0x24] sm:$0xf]
        %v3455 = vld [vmem:[%s9 + $0x28] sm:$0xf]
        %v3456 = vld [vmem:[%s9 + $0x2c] sm:$0xf]
        %v3457 = vld [vmem:[%s9 + $0x30] sm:$0xf]
        %v3458 = vld [vmem:[%s9 + $0x34] sm:$0xf]
        %v3459 = vld [vmem:[%s9 + $0x38] sm:$0xf]
        %v3460 = vld [vmem:[%s9 + $0x3c] sm:$0xf]
        %v3461 = vld [vmem:[%s9 + $0x40] sm:$0xf]
        %v3462 = vld [vmem:[%s9 + $0x44] sm:$0xf]
        %v3463 = vld [vmem:[%s9 + $0x48] sm:$0xf]
        %v3464 = vld [vmem:[%s9 + $0x4c] sm:$0xf]
        %v3465 = vld [vmem:[%s9 + $0x50] sm:$0xf]
        %v3466 = vld [vmem:[%s9 + $0x54] sm:$0xf]
        %v3467 = vld [vmem:[%s9 + $0x58] sm:$0xf]
        %v3468 = vld [vmem:[%s9 + $0x5c] sm:$0xf]
        %v3469 = vld [vmem:[%s9 + $0x60] sm:$0xf]
        %v3470 = vld [vmem:[%s9 + $0x64] sm:$0xf]
        %v3471 = vld [vmem:[%s9 + $0x68] sm:$0xf]
        %v3472 = vld [vmem:[%s9 + $0x6c] sm:$0xf]
        %v3473 = vld [vmem:[%s9 + $0x70] sm:$0xf]
        %v3474 = vld [vmem:[%s9 + $0x74] sm:$0xf]
        %v3475 = vld [vmem:[%s9 + $0x78] sm:$0xf]
        %v3476 = vld [vmem:[%s9 + $0x7c] sm:$0xf]
        %v3477 = vld [vmem:[%s9 + $0x80] sm:$0xf]
        %v3478 = vld [vmem:[%s9 + $0x84] sm:$0xf]
        %v3479 = vld [vmem:[%s9 + $0x88] sm:$0xf]
        %v3480 = vld [vmem:[%s9 + $0x8c] sm:$0xf]
        %v3481 = vld [vmem:[%s9 + $0x90] sm:$0xf]
        %v3482 = vld [vmem:[%s9 + $0x94] sm:$0xf]
        %v3483 = vld [vmem:[%s9 + $0x98] sm:$0xf]
        %v3484 = vld [vmem:[%s9 + $0x9c] sm:$0xf]
        %v3485 = vld [vmem:[%s9 + $0xa0] sm:$0xf]
        %v3486 = vld [vmem:[%s9 + $0xa4] sm:$0xf]
        %v3487 = vld [vmem:[%s9 + $0xa8] sm:$0xf]
        %v3488 = vld [vmem:[%s9 + $0xac] sm:$0xf]
        %v3489 = vld [vmem:[%s9 + $0xb0] sm:$0xf]
        %v3490 = vld [vmem:[%s9 + $0xb4] sm:$0xf]
        %v3491 = vld [vmem:[%s9 + $0xb8] sm:$0xf]
        %v3492 = vld [vmem:[%s9 + $0xbc] sm:$0xf]
        %v3493 = vld [vmem:[%s9 + $0xc0] sm:$0xf]
        %v3494 = vld [vmem:[%s9 + $0xc4] sm:$0xf]
        %v3545 = vunpack.c.l.b16 %v3445
        %v3546 = vunpack.c.l.b16 %v3446
        %v3547 = vunpack.c.l.b16 %v3447
        %v3548 = vunpack.c.l.b16 %v3448
        %v3549 = vunpack.c.l.b16 %v3449
        %v3550 = vunpack.c.l.b16 %v3450
        %v3551 = vunpack.c.l.b16 %v3451
        %v3552 = vunpack.c.l.b16 %v3452
        %v3553 = vunpack.c.l.b16 %v3453
        %v3554 = vunpack.c.l.b16 %v3454
        %v3555 = vunpack.c.l.b16 %v3455
        %v3556 = vunpack.c.l.b16 %v3456
        %v3557 = vunpack.c.l.b16 %v3457
        %v3558 = vunpack.c.l.b16 %v3458
        %v3559 = vunpack.c.l.b16 %v3459
        %v3560 = vunpack.c.l.b16 %v3460
        %v3561 = vunpack.c.l.b16 %v3461
        %v3562 = vunpack.c.l.b16 %v3462
        %v3563 = vunpack.c.l.b16 %v3463
        %v3564 = vunpack.c.l.b16 %v3464
        %v3565 = vunpack.c.l.b16 %v3465
        %v3566 = vunpack.c.l.b16 %v3466
        %v3567 = vunpack.c.l.b16 %v3467
        %v3568 = vunpack.c.l.b16 %v3468
        %v3569 = vunpack.c.l.b16 %v3469
        %v3570 = vunpack.c.l.b16 %v3470
        %v3571 = vunpack.c.l.b16 %v3471
        %v3572 = vunpack.c.l.b16 %v3472
        %v3573 = vunpack.c.l.b16 %v3473
        %v3574 = vunpack.c.l.b16 %v3474
        %v3575 = vunpack.c.l.b16 %v3475
        %v3576 = vunpack.c.l.b16 %v3476
        %v3577 = vunpack.c.l.b16 %v3477
        %v3578 = vunpack.c.l.b16 %v3478
        %v3579 = vunpack.c.l.b16 %v3479
        %v3580 = vunpack.c.l.b16 %v3480
        %v3581 = vunpack.c.l.b16 %v3481
        %v3582 = vunpack.c.l.b16 %v3482
        %v3583 = vunpack.c.l.b16 %v3483
        %v3584 = vunpack.c.l.b16 %v3484
        %v3585 = vunpack.c.l.b16 %v3485
        %v3586 = vunpack.c.l.b16 %v3486
        %v3587 = vunpack.c.l.b16 %v3487
        %v3588 = vunpack.c.l.b16 %v3488
        %v3589 = vunpack.c.l.b16 %v3489
        %v3590 = vunpack.c.l.b16 %v3490
        %v3591 = vunpack.c.l.b16 %v3491
        %v3592 = vunpack.c.l.b16 %v3492
        %v3593 = vunpack.c.l.b16 %v3493
        %v3594 = vunpack.c.l.b16 %v3494
        %v3595 = vpack.c.b16 %v3546, %v3545
        %v3596 = vpack.c.b16 %v3548, %v3547
        %v3597 = vpack.c.b16 %v3550, %v3549
        %v3598 = vpack.c.b16 %v3552, %v3551
        %v3599 = vpack.c.b16 %v3554, %v3553
        %v3600 = vpack.c.b16 %v3556, %v3555
        %v3601 = vpack.c.b16 %v3558, %v3557
        %v3602 = vpack.c.b16 %v3560, %v3559
        %v3603 = vpack.c.b16 %v3562, %v3561
        %v3604 = vpack.c.b16 %v3564, %v3563
        %v3605 = vpack.c.b16 %v3566, %v3565
        %v3606 = vpack.c.b16 %v3568, %v3567
        %v3607 = vpack.c.b16 %v3570, %v3569
        %v3608 = vpack.c.b16 %v3572, %v3571
        %v3609 = vpack.c.b16 %v3574, %v3573
        %v3610 = vpack.c.b16 %v3576, %v3575
        %v3611 = vpack.c.b16 %v3578, %v3577
        %v3612 = vpack.c.b16 %v3580, %v3579
        %v3613 = vpack.c.b16 %v3582, %v3581
        %v3614 = vpack.c.b16 %v3584, %v3583
        %v3615 = vpack.c.b16 %v3586, %v3585
        %v3616 = vpack.c.b16 %v3588, %v3587
        %v3617 = vpack.c.b16 %v3590, %v3589
        %v3618 = vpack.c.b16 %v3592, %v3591
        %v3619 = vpack.c.b16 %v3594, %v3593
        %vm3645 = vcmask 130048
        %v3646 = vsel %vm3645, %v3405, 0
        %v3648 = vsel %vm3645, %v3407, 0
        %v3650 = vsel %vm3645, %v3409, 0
        %3652 = vmatprep.subr.bf16.mxu0 0
        %3653 = vmatpush1.bf16.msra.mxu0 %v3595
        %3654 = vmatprep.subr.bf16.mxu0 0
        %3655 = vmatpush1.bf16.msra.mxu0 %v3596
        %3656 = vmatprep.subr.bf16.mxu0 0
        %3657 = vmatpush1.bf16.msra.mxu0 %v3597
        %3658 = vmatprep.subr.bf16.mxu0 0
        %3659 = vmatpush1.bf16.msra.mxu0 %v3598
        %3660 = vmatprep.subr.bf16.mxu0 0
        %3661 = vmatpush1.bf16.msra.mxu0 %v3599
        %3662 = vmatprep.subr.bf16.mxu0 0
        %3663 = vmatpush1.bf16.msra.mxu0 %v3600
        %3664 = vmatprep.subr.bf16.mxu0 0
        %3665 = vmatpush1.bf16.msra.mxu0 %v3601
        %3666 = vmatprep.subr.bf16.mxu0 0
        %3667 = vmatpush1.bf16.msra.mxu0 %v3602
        %3668 = vmatprep.subr.bf16.mxu0 0
        %3669 = vmatpush1.bf16.msra.mxu0 %v3603
        %3670 = vmatprep.subr.bf16.mxu0 0
        %3671 = vmatpush1.bf16.msra.mxu0 %v3604
        %3672 = vmatprep.subr.bf16.mxu0 0
        %3673 = vmatpush1.bf16.msra.mxu0 %v3605
        %3674 = vmatprep.subr.bf16.mxu0 0
        %3675 = vmatpush1.bf16.msra.mxu0 %v3606
        %3676 = vmatprep.subr.bf16.mxu0 0
        %3677 = vmatpush1.bf16.msra.mxu0 %v3607
        %3678 = vmatprep.subr.bf16.mxu0 0
        %3679 = vmatpush1.bf16.msra.mxu0 %v3608
        %3680 = vmatprep.subr.bf16.mxu0 0
        %3681 = vmatpush1.bf16.msra.mxu0 %v3609
        %3682 = vmatprep.subr.bf16.mxu0 0
        %3683 = vmatpush1.bf16.msra.mxu0 %v3610
        %3684 = vmatprep.mubr.bf16.mxu0 %v3427
        %3685 = vmatmul.mubr.bf16.gmra.mrb[0].mxu0 %v3411
        %v3686 = vpop.f32.mrb[0].mxu0
        %v3687 = vadd.f32 0.0, %v3686
        %v3688 = vpop.f32.mrb[0].mxu0
        %v3689 = vpop.f32.mrb[0].mxu0
        %v3690 = vadd.f32 0.0, %v3689
        %v3691 = vpop.f32.mrb[0].mxu0
        %3692 = vmatprep.mubr.bf16.mxu0 %v3430
        %3693 = vmatmul.mubr.bf16.gmra.mrb[0].mxu0 %v3414
        %v3694 = vpop.f32.mrb[0].mxu0
        %v3695 = vadd.f32 0.0, %v3694
        %v3696 = vpop.f32.mrb[0].mxu0
        %v3697 = vpop.f32.mrb[0].mxu0
        %v3698 = vadd.f32 0.0, %v3697
        %v3699 = vpop.f32.mrb[0].mxu0
        %3700 = vmatprep.mubr.bf16.mxu0 %v3433
        %3701 = vmatmul.mubr.bf16.gmra.mrb[0].mxu0 %v3417
        %v3702 = vpop.f32.mrb[0].mxu0
        %v3703 = vadd.f32 0.0, %v3702
        %v3704 = vpop.f32.mrb[0].mxu0
        %v3705 = vpop.f32.mrb[0].mxu0
        %v3706 = vpop.f32.mrb[0].mxu0
        %3707 = vdwg.mxu0
        %3708 = vmatprep.subr.bf16.mxu0 0
        %3709 = vmatpush1.bf16.msra.mxu0 %v3611
        %3710 = vmatprep.subr.bf16.mxu0 0
        %3711 = vmatpush1.bf16.msra.mxu0 %v3612
        %3712 = vmatprep.subr.bf16.mxu0 0
        %3713 = vmatpush1.bf16.msra.mxu0 %v3613
        %3714 = vmatprep.subr.bf16.mxu0 0
        %3715 = vmatpush1.bf16.msra.mxu0 %v3614
        %3716 = vmatprep.subr.bf16.mxu0 0
        %3717 = vmatpush1.bf16.msra.mxu0 %v3615
        %3718 = vmatprep.subr.bf16.mxu0 0
        %3719 = vmatpush1.bf16.msra.mxu0 %v3616
        %3720 = vmatprep.subr.bf16.mxu0 0
        %3721 = vmatpush1.bf16.msra.mxu0 %v3617
        %3722 = vmatprep.subr.bf16.mxu0 0
        %3723 = vmatpush1.bf16.msra.mxu0 %v3618
        %3724 = vmatprep.subr.bf16.mxu0 0
        %3725 = vmatpush1.bf16.msra.mxu0 %v3619
        %3726 = vmatprep.subr.bf16.mxu0 0
        %3727 = vmatpush1.bf16.msra.mxu0 0
        %3728 = vmatprep.subr.bf16.mxu0 0
        %3729 = vmatpush1.bf16.msra.mxu0 0
        %3730 = vmatprep.subr.bf16.mxu0 0
        %3731 = vmatpush1.bf16.msra.mxu0 0
        %3732 = vmatprep.subr.bf16.mxu0 0
        %3733 = vmatpush1.bf16.msra.mxu0 0
        %3734 = vmatprep.subr.bf16.mxu0 0
        %3735 = vmatpush1.bf16.msra.mxu0 0
        %3736 = vmatprep.subr.bf16.mxu0 0
        %3737 = vmatpush1.bf16.msra.mxu0 0
        %3738 = vmatprep.subr.bf16.mxu0 0
        %3739 = vmatpush1.bf16.msra.mxu0 0
        %3740 = vmatprep.mubr.bf16.mxu0 %v3646
        %3741 = vmatmul.mubr.bf16.gmra.mrb[0].mxu0 %v3436
        %v3742 = vpop.f32.mrb[0].mxu0
        %v3743 = vadd.f32 %v3687, %v3742
        %v3744 = vpop.f32.mrb[0].mxu0
        %v3745 = vpop.f32.mrb[0].mxu0
        %v3746 = vadd.f32 %v3690, %v3745
        %v3747 = vpop.f32.mrb[0].mxu0
        %3748 = vmatprep.mubr.bf16.mxu0 %v3648
        %3749 = vmatmul.mubr.bf16.gmra.mrb[0].mxu0 %v3439
        %v3750 = vpop.f32.mrb[0].mxu0
        %v3751 = vadd.f32 %v3695, %v3750
        %v3752 = vpop.f32.mrb[0].mxu0
        %v3753 = vpop.f32.mrb[0].mxu0
        %v3754 = vadd.f32 %v3698, %v3753
        %v3755 = vpop.f32.mrb[0].mxu0
        %3756 = vmatprep.mubr.bf16.mxu0 %v3650
        %3757 = vmatmul.mubr.bf16.gmra.mrb[0].mxu0 %v3442
        %v3758 = vpop.f32.mrb[0].mxu0
        %v3759 = vadd.f32 %v3703, %v3758
        %v3760 = vpop.f32.mrb[0].mxu0
        %v3761 = vpop.f32.mrb[0].mxu0
        %v3762 = vpop.f32.mrb[0].mxu0
        %3763 = vdwg.mxu0
        %v3764 = vpack.c.bf16 %v3746, %v3743
        %v3765 = vpack.c.bf16 %v3754, %v3751
        %v3766 = vpack.c.bf16 %v3759, %v3759
        %v3767 = vld [vmem:[#allocation7] sm:$0x1]
        %v3769 = vlaneseq
        %v3770 = vshrl.u32 %v3769, 7
        %v3771 = vsub.s32 0, %v3770
        %v3772 = vrot.slane %v3767, %v3771
        %v3775 = vsel %vm2782, %v3444, 0
        %v3778 = vsel %vm2797, %v3766, 0
        %3780 = vmatprep.subr.bf16.mxu0 0
        %3781 = vmatpush1.bf16.msra.mxu0 %v3764
        %3782 = vmatprep.subr.bf16.mxu0 0
        %3783 = vmatpush1.bf16.msra.mxu0 %v3765
        %3784 = vmatprep.subr.bf16.mxu0 0
        %3785 = vmatpush1.bf16.msra.mxu0 %v3778
        %3786 = vmatprep.subr.bf16.mxu0 0
        %3787 = vmatpush1.bf16.msra.mxu0 0
        %3788 = vmatprep.subr.bf16.mxu0 0
        %3789 = vmatpush1.bf16.msra.mxu0 0
        %3790 = vmatprep.subr.bf16.mxu0 0
        %3791 = vmatpush1.bf16.msra.mxu0 0
        %3792 = vmatprep.subr.bf16.mxu0 0
        %3793 = vmatpush1.bf16.msra.mxu0 0
        %3794 = vmatprep.subr.bf16.mxu0 0
        %3795 = vmatpush1.bf16.msra.mxu0 0
        %3796 = vmatprep.subr.bf16.mxu0 0
        %3797 = vmatpush1.bf16.msra.mxu0 0
        %3798 = vmatprep.subr.bf16.mxu0 0
        %3799 = vmatpush1.bf16.msra.mxu0 0
        %3800 = vmatprep.subr.bf16.mxu0 0
        %3801 = vmatpush1.bf16.msra.mxu0 0
        %3802 = vmatprep.subr.bf16.mxu0 0
        %3803 = vmatpush1.bf16.msra.mxu0 0
        %3804 = vmatprep.subr.bf16.mxu0 0
        %3805 = vmatpush1.bf16.msra.mxu0 0
        %3806 = vmatprep.subr.bf16.mxu0 0
        %3807 = vmatpush1.bf16.msra.mxu0 0
        %3808 = vmatprep.subr.bf16.mxu0 0
        %3809 = vmatpush1.bf16.msra.mxu0 0
        %3810 = vmatprep.subr.bf16.mxu0 0
        %3811 = vmatpush1.bf16.msra.mxu0 0
        %3812 = vmatprep.mubr.bf16.mxu0 0
        %3813 = vmatmul.mubr.bf16.gmra.mrb[0].mxu0 %v3775
        %v3814 = vpop.f32.mrb[0].mxu0
        %v3815 = vadd.f32 %v3772, %v3814
        %v3816 = vpop.f32.mrb[0].mxu0
        %v3817 = vpop.f32.mrb[0].mxu0
        %v3818 = vpop.f32.mrb[0].mxu0
        %3819 = vdwg.mxu0
        %v3820 = vtanh.pop %v3815
        %v3821 = vld [vmem:[#allocation10] sm:$0xf]
        %v3822 = vld [vmem:[#allocation10 + $0x4] sm:$0xf]
        %v3823 = vld [vmem:[#allocation10 + $0x8] sm:$0xf]
        %v3824 = vld [vmem:[#allocation10 + $0xc] sm:$0xf]
        %v3825 = vld [vmem:[#allocation10 + $0x10] sm:$0xf]
        %v3826 = vld [vmem:[#allocation10 + $0x14] sm:$0xf]
        %v3827 = vld [vmem:[#allocation10 + $0x18] sm:$0xf]
        %v3828 = vld [vmem:[#allocation10 + $0x1c] sm:$0xf]
        %v3829 = vld [vmem:[#allocation10 + $0x20] sm:$0xf]
        %v3830 = vld [vmem:[#allocation10 + $0x24] sm:$0xf]
        %v3831 = vld [vmem:[#allocation10 + $0x28] sm:$0xf]
        %v3832 = vld [vmem:[#allocation10 + $0x2c] sm:$0xf]
        %v3833 = vld [vmem:[#allocation10 + $0x30] sm:$0xf]
        %v3834 = vld [vmem:[#allocation10 + $0x34] sm:$0xf]
        %v3835 = vld [vmem:[#allocation10 + $0x38] sm:$0xf]
        %v3836 = vpack.c.bf16 %v3820, %v3820
        %v3837 = vld [vmem:[#allocation11] sm:$0x1]
        %v3839 = vlaneseq
        %v3840 = vshrl.u32 %v3839, 7
        %v3841 = vsub.s32 0, %v3840
        %v3842 = vrot.slane %v3837, %v3841
        %v3859 = vunpack.c.l.b16 %v3821
        %v3860 = vunpack.c.l.b16 %v3822
        %v3861 = vunpack.c.l.b16 %v3823
        %v3862 = vunpack.c.l.b16 %v3824
        %v3863 = vunpack.c.l.b16 %v3825
        %v3864 = vunpack.c.l.b16 %v3826
        %v3865 = vunpack.c.l.b16 %v3827
        %v3866 = vunpack.c.l.b16 %v3828
        %v3867 = vunpack.c.l.b16 %v3829
        %v3868 = vunpack.c.l.b16 %v3830
        %v3869 = vunpack.c.l.b16 %v3831
        %v3870 = vunpack.c.l.b16 %v3832
        %v3871 = vunpack.c.l.b16 %v3833
        %v3872 = vunpack.c.l.b16 %v3834
        %v3873 = vunpack.c.l.b16 %v3835
        %v3874 = vpack.c.b16 %v3860, %v3859
        %v3875 = vpack.c.b16 %v3862, %v3861
        %v3876 = vpack.c.b16 %v3864, %v3863
        %v3877 = vpack.c.b16 %v3866, %v3865
        %v3878 = vpack.c.b16 %v3868, %v3867
        %v3879 = vpack.c.b16 %v3870, %v3869
        %v3880 = vpack.c.b16 %v3872, %v3871
        %v3881 = vpack.c.b16 %v3873, %v3873
        %vm3889 = vcmask 982016
        %v3891 = vsel %vm3889, %v3836, 0
        %v3894 = vsel %vm1836, %v3881, 0
        %3896 = vmatprep.subr.bf16.mxu0 0
        %3897 = vmatpush1.bf16.msra.mxu0 %v3874
        %3898 = vmatprep.subr.bf16.mxu0 0
        %3899 = vmatpush1.bf16.msra.mxu0 %v3875
        %3900 = vmatprep.subr.bf16.mxu0 0
        %3901 = vmatpush1.bf16.msra.mxu0 %v3876
        %3902 = vmatprep.subr.bf16.mxu0 0
        %3903 = vmatpush1.bf16.msra.mxu0 %v3877
        %3904 = vmatprep.subr.bf16.mxu0 0
        %3905 = vmatpush1.bf16.msra.mxu0 %v3878
        %3906 = vmatprep.subr.bf16.mxu0 0
        %3907 = vmatpush1.bf16.msra.mxu0 %v3879
        %3908 = vmatprep.subr.bf16.mxu0 0
        %3909 = vmatpush1.bf16.msra.mxu0 %v3880
        %3910 = vmatprep.subr.bf16.mxu0 0
        %3911 = vmatpush1.bf16.msra.mxu0 %v3894
        %3912 = vmatprep.subr.bf16.mxu0 0
        %3913 = vmatpush1.bf16.msra.mxu0 0
        %3914 = vmatprep.subr.bf16.mxu0 0
        %3915 = vmatpush1.bf16.msra.mxu0 0
        %3916 = vmatprep.subr.bf16.mxu0 0
        %3917 = vmatpush1.bf16.msra.mxu0 0
        %3918 = vmatprep.subr.bf16.mxu0 0
        %3919 = vmatpush1.bf16.msra.mxu0 0
        %3920 = vmatprep.subr.bf16.mxu0 0
        %3921 = vmatpush1.bf16.msra.mxu0 0
        %3922 = vmatprep.subr.bf16.mxu0 0
        %3923 = vmatpush1.bf16.msra.mxu0 0
        %3924 = vmatprep.subr.bf16.mxu0 0
        %3925 = vmatpush1.bf16.msra.mxu0 0
        %3926 = vmatprep.subr.bf16.mxu0 0
        %3927 = vmatpush1.bf16.msra.mxu0 0
        %3928 = vmatprep.mubr.bf16.mxu0 0
        %3929 = vmatmul.mubr.bf16.gmra.mrb[0].mxu0 %v3891
        %v3930 = vpop.f32.mrb[0].mxu0
        %v3931 = vadd.f32 %v3842, %v3930
        %v3932 = vpop.f32.mrb[0].mxu0
        %v3933 = vpop.f32.mrb[0].mxu0
        %v3934 = vpop.f32.mrb[0].mxu0
        %3935 = vdwg.mxu0
        %v3936 = vtanh.pop %v3931
        %v3937 = vld [vmem:[%s14] sm:$0xf]
        %v3938 = vld [vmem:[%s14 + $0x4] sm:$0xf]
        %v3939 = vld [vmem:[%s14 + $0x8] sm:$0xf]
        %v3940 = vld [vmem:[%s14 + $0xc] sm:$0xf]
        %v3941 = vld [vmem:[%s14 + $0x10] sm:$0xf]
        %v3942 = vld [vmem:[%s14 + $0x14] sm:$0xf]
        %v3943 = vld [vmem:[%s14 + $0x18] sm:$0xf]
        %v3944 = vld [vmem:[%s14 + $0x1c] sm:$0xf]
        %v3945 = vld [vmem:[%s14 + $0x20] sm:$0xf]
        %v3946 = vld [vmem:[%s14 + $0x24] sm:$0xf]
        %v3947 = vld [vmem:[%s14 + $0x28] sm:$0x3]
        %v3948 = vpack.c.bf16 %v3936, %v3936
        %v3949 = vld [vmem:[%s15] sm:$0x1]
        %v3951 = vlaneseq
        %v3952 = vshrl.u32 %v3951, 7
        %v3953 = vsub.s32 0, %v3952
        %v3954 = vrot.slane %v3949, %v3953
        %v3967 = vunpack.c.l.b16 %v3937
        %v3968 = vunpack.c.l.b16 %v3938
        %v3969 = vunpack.c.l.b16 %v3939
        %v3970 = vunpack.c.l.b16 %v3940
        %v3971 = vunpack.c.l.b16 %v3941
        %v3972 = vunpack.c.l.b16 %v3942
        %v3973 = vunpack.c.l.b16 %v3943
        %v3974 = vunpack.c.l.b16 %v3944
        %v3975 = vunpack.c.l.b16 %v3945
        %v3976 = vunpack.c.l.b16 %v3946
        %v3977 = vunpack.c.l.b16 %v3947
        %v3978 = vpack.c.b16 %v3968, %v3967
        %v3979 = vpack.c.b16 %v3970, %v3969
        %v3980 = vpack.c.b16 %v3972, %v3971
        %v3981 = vpack.c.b16 %v3974, %v3973
        %v3982 = vpack.c.b16 %v3976, %v3975
        %v3983 = vpack.c.b16 %v3977, %v3977
        %v3990 = vsel %vm2373, %v3948, 0
        %v3993 = vsel %vm2797, %v3983, 0
        %3995 = vmatprep.subr.bf16.mxu0 0
        %3996 = vmatpush1.bf16.msra.mxu0 %v3978
        %3997 = vmatprep.subr.bf16.mxu0 0
        %3998 = vmatpush1.bf16.msra.mxu0 %v3979
        %3999 = vmatprep.subr.bf16.mxu0 0
        %4000 = vmatpush1.bf16.msra.mxu0 %v3980
        %4001 = vmatprep.subr.bf16.mxu0 0
        %4002 = vmatpush1.bf16.msra.mxu0 %v3981
        %4003 = vmatprep.subr.bf16.mxu0 0
        %4004 = vmatpush1.bf16.msra.mxu0 %v3982
        %4005 = vmatprep.subr.bf16.mxu0 0
        %4006 = vmatpush1.bf16.msra.mxu0 %v3993
        %4007 = vmatprep.subr.bf16.mxu0 0
        %4008 = vmatpush1.bf16.msra.mxu0 0
        %4009 = vmatprep.subr.bf16.mxu0 0
        %4010 = vmatpush1.bf16.msra.mxu0 0
        %4011 = vmatprep.subr.bf16.mxu0 0
        %4012 = vmatpush1.bf16.msra.mxu0 0
        %4013 = vmatprep.subr.bf16.mxu0 0
        %4014 = vmatpush1.bf16.msra.mxu0 0
        %4015 = vmatprep.subr.bf16.mxu0 0
        %4016 = vmatpush1.bf16.msra.mxu0 0
        %4017 = vmatprep.subr.bf16.mxu0 0
        %4018 = vmatpush1.bf16.msra.mxu0 0
        %4019 = vmatprep.subr.bf16.mxu0 0
        %4020 = vmatpush1.bf16.msra.mxu0 0
        %4021 = vmatprep.subr.bf16.mxu0 0
        %4022 = vmatpush1.bf16.msra.mxu0 0
        %4023 = vmatprep.subr.bf16.mxu0 0
        %4024 = vmatpush1.bf16.msra.mxu0 0
        %4025 = vmatprep.subr.bf16.mxu0 0
        %4026 = vmatpush1.bf16.msra.mxu0 0
        %4027 = vmatprep.mubr.bf16.mxu0 0
        %4028 = vmatmul.mubr.bf16.gmra.mrb[0].mxu0 %v3990
        %v4029 = vpop.f32.mrb[0].mxu0
        %v4030 = vadd.f32 %v3954, %v4029
        %v4031 = vpop.f32.mrb[0].mxu0
        %v4032 = vpop.f32.mrb[0].mxu0
        %v4033 = vpop.f32.mrb[0].mxu0
        %4034 = vdwg.mxu0
        %4035 = vst [vmem:[%s626] sm:$0xff] %v4030
        %4036 = vmax.xlane.f32.xlu0 %v4030
        %v4037 = vpop.xlane.xlu0 %4036
        %v4038 = vsub.f32 %v4030, %v4037
        %v4039 = vmul.f32 %v4038, 1.442695
        %v4040 = vpow.pop %v4039
        %4041 = vadd.xlane.f32.xlu0 %v4040
        %v4042 = vpop.xlane.xlu0 %4041
        %v4043 = vrcp.pop %v4042
        %v4044 = vmul.f32 %v4040, %v4043
        %4045 = vst [vmem:[%s633] sm:$0xff] %v4044
        %s4046 = sand.u32 %s388, 1
        %s4047 = scalar_lea.sflag [#allocation4], %s4046
        %s4048 = sand.u32 %s388, 1
        %s4049 = smul.addr %s4048, 8
        %s4050 = scalar_lea.vmem [#allocation13], %s4049
        %s4051 = sand.u32 %s414, 1
        %s4052 = scalar_lea.sflag [#allocation15], %s4051
        %s4053 = sand.u32 %s414, 1
        %s4054 = smul.addr %s4053, 8
        %s4055 = scalar_lea.vmem [#allocation14], %s4054
        // Predicated region
        $region109: #{lenet5_forward.1} parent=83 // pred_check
          %p4056 = pneg %p398
        $region110: #{lenet5_forward.1} parent=83 // pred_check_branch
          %4058 = sbr.rel (%p4056) target = $region112
        $region111: #{lenet5_forward.1} parent=83 // pred_region
          %s4060 = ssub.s32 128, 128
          %4061 = vsyncadd %s4047, %s4060
          %s4062 = smul.addr %s39, 128
          %s4063 = scalar_lea.hbm %s16, %s4062
          %s4065 = sshll.u32 %s4050, 4
          %s4066 = int_to_ptr.vmem [resolvable:$true] %s4065
          %4068 = dma.vmem_to_hbm [thread:$0]  %s4066, 128, %s4063, %s4047
        $region112: #{lenet5_forward.1} parent=83 // pred_fallthru
          _
        // Predicated region
        $region113: #{lenet5_forward.1} parent=83 // pred_check
          %p4069 = pneg %p424
        $region114: #{lenet5_forward.1} parent=83 // pred_check_branch
          %4071 = sbr.rel (%p4069) target = $region116
        $region115: #{lenet5_forward.1} parent=83 // pred_region
          %s4073 = ssub.s32 128, 128
          %4074 = vsyncadd %s4052, %s4073
          %s4075 = smul.addr %s39, 128
          %s4076 = scalar_lea.hbm %s17, %s4075
          %s4078 = sshll.u32 %s4055, 4
          %s4079 = int_to_ptr.vmem [resolvable:$true] %s4078
          %4081 = dma.vmem_to_hbm [thread:$0]  %s4079, 128, %s4076, %s4052
        $region116: #{lenet5_forward.1} parent=83 // pred_fallthru
          _
      $region84: #{lenet5_forward.1} parent=5 // pred_fallthru
        _
      %p4082 = scmp.le.s32.totalorder 2, %s34
      // Predicated region
      $region117: #{lenet5_forward.1} parent=5 // pred_check
        %p4083 = pneg %p4082
      $region118: #{lenet5_forward.1} parent=5 // pred_check_branch
        %4085 = sbr.rel (%p4083) target = $region120
      $region119: #{lenet5_forward.1} parent=5 // pred_region
        %s4086 = ssub.s32 %s34, 2
        // Predicated region
        $region121: #{lenet5_forward.1} parent=119 // pred_check
          %p4087 = pneg %p404
        $region122: #{lenet5_forward.1} parent=119 // pred_check_branch
          %4089 = sbr.rel (%p4087) target = $region124
        $region123: #{lenet5_forward.1} parent=119 // pred_region
          %s4090 = sand.u32 %s389, 1
          %s4091 = scalar_lea.sflag [#allocation4], %s4090
          %s4092 = sand.u32 %s389, 1
          %s4093 = smul.addr %s4092, 8
          %s4094 = scalar_lea.vmem [#allocation13], %s4093
          %4095 = dma.done %s4091, 128
        $region124: #{lenet5_forward.1} parent=119 // pred_fallthru
          _
        // Predicated region
        $region125: #{lenet5_forward.1} parent=119 // pred_check
          %p4096 = pneg %p430
        $region126: #{lenet5_forward.1} parent=119 // pred_check_branch
          %4098 = sbr.rel (%p4096) target = $region128
        $region127: #{lenet5_forward.1} parent=119 // pred_region
          %s4099 = sand.u32 %s415, 1
          %s4100 = scalar_lea.sflag [#allocation15], %s4099
          %s4101 = sand.u32 %s415, 1
          %s4102 = smul.addr %s4101, 8
          %s4103 = scalar_lea.vmem [#allocation14], %s4102
          %4104 = dma.done %s4100, 128
        $region128: #{lenet5_forward.1} parent=119 // pred_fallthru
          _
      $region120: #{lenet5_forward.1} parent=5 // pred_fallthru
        _
    $region6: #{lenet5_forward.1} parent=1 // loop_footer
      %s38 = sadd.s32 1, %s34
    $region7: #{lenet5_forward.1} parent=1 // loop_footer_branch
      %33 = sbr.rel target = $region3
    $region8: #{lenet5_forward.1} parent=1 // loop_exit
      _
    %4105 = vsyncpa [#allocation3], 1
    %s4106 = scalar_lea.sflag [#allocation3], 1
    %4107 = vsyncpa %s4106, 1
    %4108 = vsyncpa [#allocation6], 1
    %4109 = vsyncpa [#allocation9], 1
    %4110 = vsyncpa [#allocation12], 1
    %4111 = vsyncpa [#allocation4], 1
    %s4112 = scalar_lea.sflag [#allocation4], 1
    %4113 = vsyncpa %s4112, 1
    %4114 = vsyncpa [#allocation15], 1
    %s4115 = scalar_lea.sflag [#allocation15], 1
    %4116 = vsyncpa %s4115, 1

</llo_original>
